<compile_context>
chip_gen: v7x
topology: tpu7x:2x2x1
jax: 0.10.0
libtpu: 0.0.40
codegen_flags: <defaults>
</compile_context>

<pallas_src>
import jax
import jax.numpy as jnp
from jax.experimental import pallas as pl
from jax.experimental.pallas import tpu as pltpu

# ---- module hyper-parameters (P2AffinityAggregation / VAE defaults) ----
D = 16           # node_feature_dim
H = 128          # hidden_ch
L = 5            # latent_features
LP = 8           # latent padded to 8 lanes (extra cols/rows are exact zeros)
BETA = 10.0      # VAE beta
V2 = 3.5         # P2AffinityAggregation v2
TE_MAX = 2048    # max edge tile (MXU M dim); sweep 1024-2048 for very large E
MIN_TILES = 4    # keep >= this many grid steps (v7x megacore sharding)


# -------------------------------------------------------------------------
# Parameters
# -------------------------------------------------------------------------
def init_params(key):
    """Standard VAE layers (torch layout): 8 x (W, b), biases zero, f32."""
    dims = [(2 * D, H), (H, H), (H, H), (H, 2 * L),        # encoder
            (L, H), (H, H), (H, H), (H, 2 * D)]            # decoder
    params = []
    for (fi, fo) in dims:
        key, kw = jax.random.split(key)
        w = jax.random.normal(kw, (fi, fo), jnp.float32) / jnp.sqrt(float(fi))
        b = jnp.zeros((1, fo), jnp.float32)
        params += [w, b]
    return tuple(params)


def prepare_kernel_params(params):
    """Kernel layout (done ONCE, outside the per-call path):
       * fused encoder head: one (H, 16) matrix, mu cols in lanes [0:L],
         logv cols in lanes [LP:LP+L]; remaining lanes are exact zeros so the
         padded latent lanes satisfy mu = logv = 0 (KL contribution exactly 0).
       * decoder first layer zero-padded (L -> LP) rows.
       * weights cast to bf16, biases stay f32."""
    (ew0, eb0, ew1, eb1, ew2, eb2, ew3, eb3,
     dw0, db0, dw1, db1, dw2, db2, dw3, db3) = params
    ewh = jnp.zeros((H, 2 * LP), jnp.float32)
    ewh = ewh.at[:, :L].set(ew3[:, :L]).at[:, LP:LP + L].set(ew3[:, L:])
    ebh = jnp.zeros((1, 2 * LP), jnp.float32)
    ebh = ebh.at[:, :L].set(eb3[:, :L]).at[:, LP:LP + L].set(eb3[:, L:])
    dw0p = jnp.pad(dw0, ((0, LP - L), (0, 0)))   # zero rows for padded latent
    ws = [ew0, ew1, ew2, ewh, dw0p, dw1, dw2, dw3]
    bs = [eb0, eb1, eb2, ebh, db0, db1, db2, db3]
    out = []
    for w, b in zip(ws, bs):
        out += [w.astype(jnp.bfloat16), b.astype(jnp.float32)]
    return tuple(out)


# -------------------------------------------------------------------------
# Kernel
# -------------------------------------------------------------------------
def _linear(h_bf16, w_ref, b_ref):
    """bf16 MXU matmul, f32 accumulate, f32 bias add."""
    return jnp.dot(h_bf16, w_ref[...],
                   preferred_element_type=jnp.float32) + b_ref[...]


def _relu_bf16(a_f32):
    """ReLU in f32, then a single cast so intermediates stay bf16."""
    return jnp.maximum(a_f32, 0.0).astype(jnp.bfloat16)


def p2_kernel(xp_ref, eps_ref,
              ew0, eb0, ew1, eb1, ew2, eb2, ewh, ebh,
              dw0, db0, dw1, db1, dw2, db2, dw3, db3,
              out_ref):
    xp = xp_ref[...]                                          # (TE, 2D) f32
    # encoder (hidden activations kept bf16 between layers)
    h = _relu_bf16(_linear(xp.astype(jnp.bfloat16), ew0, eb0))
    h = _relu_bf16(_linear(h, ew1, eb1))
    h = _relu_bf16(_linear(h, ew2, eb2))
    head = _linear(h, ewh, ebh)                               # (TE, 2*LP) f32
    mu = head[:, :LP]                                         # (TE, LP)
    logv = head[:, LP:]                                       # (TE, LP)
    # reparameterized sample (padded lanes: mu = logv = 0, eps = 0)
    z = mu + eps_ref[...] * jnp.exp(0.5 * logv)               # (TE, LP) f32
    # decoder
    g = _relu_bf16(_linear(z.astype(jnp.bfloat16), dw0, db0))
    g = _relu_bf16(_linear(g, dw1, db1))
    g = _relu_bf16(_linear(g, dw2, db2))
    recon = _linear(g, dw3, db3)                              # (TE, 2D) f32
    # losses (padded latent lanes contribute exactly 0 to kl)
    diff = recon - xp
    rloss = jnp.sqrt(jnp.sum(diff * diff, axis=1))            # (TE,)
    kl = -0.5 * BETA * (1.0 + logv - mu * mu - jnp.exp(logv)) # (TE, LP)
    kl_row = jnp.sum(kl, axis=1)                              # (TE,)
    affin = pl.reciprocal(1.0 + V2 * rloss, approx=True)      # (TE,)
    # lane-dense (3, TE) output slab: [affinity, recon_loss, kl_rowsum]
    out_ref[0, :] = affin
    out_ref[1, :] = rloss
    out_ref[2, :] = kl_row


# -------------------------------------------------------------------------
# Wrapper
# -------------------------------------------------------------------------
def _pick_te(n_edges, te_max=TE_MAX, min_tiles=MIN_TILES):
    """Edge tile: multiple of 128 (lane-dense output), capped at te_max,
    chosen so the grid keeps >= min_tiles steps when possible."""
    te = -(-n_edges // min_tiles)          # ceil(E / min_tiles)
    te = -(-te // 128) * 128               # round up to a lane multiple
    return max(128, min(te_max, te))


def p2_affinity_aggregation(x, row, col, eps, kparams,
                            *, te_max=TE_MAX, min_tiles=MIN_TILES):
    E = row.shape[0]
    te = _pick_te(E, te_max, min_tiles)
    e_pad = pl.cdiv(E, te) * te

    # glue: per-edge gather + concat (tiny relative to the MLP compute; the
    # whole wrapper is jitted so this fuses with padding / epilogue).
    xp = jnp.concatenate([x[row], x[col]], axis=1).astype(jnp.float32)
    xp = jnp.pad(xp, ((0, e_pad - E), (0, 0)))
    eps_p = jnp.pad(eps.astype(jnp.float32),
                    ((0, e_pad - E), (0, LP - eps.shape[1])))

    def full(p):
        return pl.BlockSpec(p.shape, lambda i: (0, 0))

    in_specs = [pl.BlockSpec((te, 2 * D), lambda i: (i, 0)),   # xp tile
                pl.BlockSpec((te, LP), lambda i: (i, 0))]      # eps tile
    in_specs += [full(p) for p in kparams]                     # whole weights

    stats = pl.pallas_call(
        p2_kernel,
        out_shape=jax.ShapeDtypeStruct((3, e_pad), jnp.float32),
        grid_spec=pltpu.PrefetchScalarGridSpec(
            num_scalar_prefetch=0,
            grid=(e_pad // te,),
            in_specs=in_specs,
            out_specs=pl.BlockSpec((3, te), lambda i: (0, i))),
        compiler_params=pltpu.CompilerParams(
            dimension_semantics=("parallel",)),
    )(xp, eps_p, *kparams)

    edge_affinities = stats[0, :E]
    rloss = stats[1, :E]
    kl_rowsum = stats[2, :E]
    losses = {"recon_loss": rloss.mean(),
              "kl_loss": kl_rowsum.sum() / (E * L)}
    return edge_affinities, 0.5, losses


def make_p2_affinity_fn(params, *, te_max=TE_MAX, min_tiles=MIN_TILES):
    """Prepare weights once, return a jitted end-to-end forward."""
    kparams = prepare_kernel_params(params)

    def fwd(x, row, col, eps):
        return p2_affinity_aggregation(x, row, col, eps, kparams,
                                       te_max=te_max, min_tiles=min_tiles)

    return jax.jit(fwd)


# -------------------------------------------------------------------------
# Pure-JAX reference (same bf16 matmul casting as the kernel)
# -------------------------------------------------------------------------
def _mlp_bf16(h, layers):
    n = len(layers)
    for idx, (w, b) in enumerate(layers):
        h = jnp.dot(h.astype(jnp.bfloat16), w.astype(jnp.bfloat16),
                    preferred_element_type=jnp.float32) + b
        if idx < n - 1:
            h = jnp.maximum(h, 0.0)
    return h


def _reference(x, row, col, eps, params):
    (ew0, eb0, ew1, eb1, ew2, eb2, ew3, eb3,
     dw0, db0, dw1, db1, dw2, db2, dw3, db3) = params
    xp = jnp.concatenate([x[row], x[col]], axis=1).astype(jnp.float32)
    enc = _mlp_bf16(xp, [(ew0, eb0), (ew1, eb1), (ew2, eb2), (ew3, eb3)])
    mu, logv = enc[:, :L], enc[:, L:]
    z = mu + eps * jnp.exp(0.5 * logv)
    recon = _mlp_bf16(z, [(dw0, db0), (dw1, db1), (dw2, db2), (dw3, db3)])
    rl = jnp.linalg.norm(recon - xp, axis=1)
    kl = -0.5 * BETA * (1.0 + logv - mu ** 2 - jnp.exp(logv))
    return 1.0 / (1.0 + V2 * rl), rl.mean(), kl.mean()


if __name__ == "__main__":
    key = jax.random.PRNGKey(0)
    k_x, k_row, k_col, k_eps, k_par = jax.random.split(key, 5)

    # E is deliberately NOT a multiple of the edge tile to exercise padding.
    N, E = 16, 500
    x = jax.random.normal(k_x, (N, D), jnp.float32)
    row = jax.random.randint(k_row, (E,), 0, N)
    col = jax.random.randint(k_col, (E,), 0, N)
    eps = jax.random.normal(k_eps, (E, L), jnp.float32)
    params = init_params(k_par)

    fwd = make_p2_affinity_fn(params)
    affin, thresh, losses = fwd(x, row, col, eps)
    jax.block_until_ready((affin, losses["recon_loss"], losses["kl_loss"]))

    # sanity-check against the pure-JAX reference
    ref_affin, ref_rl, ref_kl = _reference(x, row, col, eps, params)
    assert affin.shape == (E,)
    assert jnp.allclose(affin, ref_affin, atol=1e-2, rtol=1e-2)
    assert jnp.allclose(losses["recon_loss"], ref_rl, atol=1e-2, rtol=1e-2)
    assert jnp.allclose(losses["kl_loss"], ref_kl, atol=1e-2, rtol=1e-2)
    assert thresh == 0.5

    print("KERNEL_OK")
</pallas_src>

<mosaic_0001>
module attributes {stable_mosaic.version = 11 : i64} {
  func.func @p2_kernel(%arg0: i32, %arg1: memref<128x32xf32, #tpu.memory_space<vmem>>, %arg2: memref<128x8xf32, #tpu.memory_space<vmem>>, %arg3: memref<32x128xbf16, #tpu.memory_space<vmem>>, %arg4: memref<1x128xf32, #tpu.memory_space<vmem>>, %arg5: memref<128x128xbf16, #tpu.memory_space<vmem>>, %arg6: memref<1x128xf32, #tpu.memory_space<vmem>>, %arg7: memref<128x128xbf16, #tpu.memory_space<vmem>>, %arg8: memref<1x128xf32, #tpu.memory_space<vmem>>, %arg9: memref<128x16xbf16, #tpu.memory_space<vmem>>, %arg10: memref<1x16xf32, #tpu.memory_space<vmem>>, %arg11: memref<8x128xbf16, #tpu.memory_space<vmem>>, %arg12: memref<1x128xf32, #tpu.memory_space<vmem>>, %arg13: memref<128x128xbf16, #tpu.memory_space<vmem>>, %arg14: memref<1x128xf32, #tpu.memory_space<vmem>>, %arg15: memref<128x128xbf16, #tpu.memory_space<vmem>>, %arg16: memref<1x128xf32, #tpu.memory_space<vmem>>, %arg17: memref<128x32xbf16, #tpu.memory_space<vmem>>, %arg18: memref<1x32xf32, #tpu.memory_space<vmem>>, %arg19: memref<3x128xf32, #tpu.memory_space<vmem>>) attributes {dimension_semantics = [#tpu.dimension_semantics<parallel>], iteration_bounds = array<i64: 4>, scalar_prefetch = 0 : i64, scratch_operands = 0 : i64, tpu.core_type = #tpu.core_type<tc>, window_params = [{transform_indices = @transform_0, window_bounds = array<i64: 128, 32>}, {transform_indices = @transform_1, window_bounds = array<i64: 128, 8>}, {pipeline_mode = #tpu.pipeline_mode<synchronous>, transform_indices = @transform_2, window_bounds = array<i64: 32, 128>}, {pipeline_mode = #tpu.pipeline_mode<synchronous>, transform_indices = @transform_3, window_bounds = array<i64: 1, 128>}, {pipeline_mode = #tpu.pipeline_mode<synchronous>, transform_indices = @transform_4, window_bounds = array<i64: 128, 128>}, {pipeline_mode = #tpu.pipeline_mode<synchronous>, transform_indices = @transform_5, window_bounds = array<i64: 1, 128>}, {pipeline_mode = #tpu.pipeline_mode<synchronous>, transform_indices = @transform_6, window_bounds = array<i64: 128, 128>}, {pipeline_mode = #tpu.pipeline_mode<synchronous>, transform_indices = @transform_7, window_bounds = array<i64: 1, 128>}, {pipeline_mode = #tpu.pipeline_mode<synchronous>, transform_indices = @transform_8, window_bounds = array<i64: 128, 16>}, {pipeline_mode = #tpu.pipeline_mode<synchronous>, transform_indices = @transform_9, window_bounds = array<i64: 1, 16>}, {pipeline_mode = #tpu.pipeline_mode<synchronous>, transform_indices = @transform_10, window_bounds = array<i64: 8, 128>}, {pipeline_mode = #tpu.pipeline_mode<synchronous>, transform_indices = @transform_11, window_bounds = array<i64: 1, 128>}, {pipeline_mode = #tpu.pipeline_mode<synchronous>, transform_indices = @transform_12, window_bounds = array<i64: 128, 128>}, {pipeline_mode = #tpu.pipeline_mode<synchronous>, transform_indices = @transform_13, window_bounds = array<i64: 1, 128>}, {pipeline_mode = #tpu.pipeline_mode<synchronous>, transform_indices = @transform_14, window_bounds = array<i64: 128, 128>}, {pipeline_mode = #tpu.pipeline_mode<synchronous>, transform_indices = @transform_15, window_bounds = array<i64: 1, 128>}, {pipeline_mode = #tpu.pipeline_mode<synchronous>, transform_indices = @transform_16, window_bounds = array<i64: 128, 32>}, {pipeline_mode = #tpu.pipeline_mode<synchronous>, transform_indices = @transform_17, window_bounds = array<i64: 1, 32>}, {transform_indices = @transform_18, window_bounds = array<i64: 3, 128>}]} {
    %c0 = arith.constant 0 : index
    %c0_0 = arith.constant 0 : index
    %0 = vector.load %arg1[%c0, %c0_0] : memref<128x32xf32, #tpu.memory_space<vmem>>, vector<128x32xf32>
    %1 = arith.truncf %0 : vector<128x32xf32> to vector<128x32xbf16>
    %c0_1 = arith.constant 0 : index
    %c0_2 = arith.constant 0 : index
    %2 = vector.load %arg3[%c0_1, %c0_2] : memref<32x128xbf16, #tpu.memory_space<vmem>>, vector<32x128xbf16>
    %cst = arith.constant dense<0.000000e+00> : vector<128x128xf32>
    %3 = tpu.matmul %1, %2, %cst {dimension_numbers = #tpu.dot_dimension_numbers<[1], [0], [0], [1], [0, 0, 1, 1], [], []>} : vector<128x32xbf16>, vector<32x128xbf16>, vector<128x128xf32> -> vector<128x128xf32>
    %c0_3 = arith.constant 0 : index
    %c0_4 = arith.constant 0 : index
    %4 = vector.load %arg4[%c0_3, %c0_4] : memref<1x128xf32, #tpu.memory_space<vmem>>, vector<1x128xf32>
    %5 = vector.broadcast %4 : vector<1x128xf32> to vector<128x128xf32>
    %6 = arith.addf %3, %5 : vector<128x128xf32>
    %cst_5 = arith.constant 0.000000e+00 : f32
    %7 = vector.broadcast %cst_5 : f32 to vector<128x128xf32>
    %8 = arith.maximumf %6, %7 : vector<128x128xf32>
    %9 = arith.truncf %8 : vector<128x128xf32> to vector<128x128xbf16>
    %c0_6 = arith.constant 0 : index
    %c0_7 = arith.constant 0 : index
    %10 = vector.load %arg5[%c0_6, %c0_7] : memref<128x128xbf16, #tpu.memory_space<vmem>>, vector<128x128xbf16>
    %cst_8 = arith.constant dense<0.000000e+00> : vector<128x128xf32>
    %11 = tpu.matmul %9, %10, %cst_8 {dimension_numbers = #tpu.dot_dimension_numbers<[1], [0], [0], [1], [0, 0, 1, 1], [], []>} : vector<128x128xbf16>, vector<128x128xbf16>, vector<128x128xf32> -> vector<128x128xf32>
    %c0_9 = arith.constant 0 : index
    %c0_10 = arith.constant 0 : index
    %12 = vector.load %arg6[%c0_9, %c0_10] : memref<1x128xf32, #tpu.memory_space<vmem>>, vector<1x128xf32>
    %13 = vector.broadcast %12 : vector<1x128xf32> to vector<128x128xf32>
    %14 = arith.addf %11, %13 : vector<128x128xf32>
    %cst_11 = arith.constant 0.000000e+00 : f32
    %15 = vector.broadcast %cst_11 : f32 to vector<128x128xf32>
    %16 = arith.maximumf %14, %15 : vector<128x128xf32>
    %17 = arith.truncf %16 : vector<128x128xf32> to vector<128x128xbf16>
    %c0_12 = arith.constant 0 : index
    %c0_13 = arith.constant 0 : index
    %18 = vector.load %arg7[%c0_12, %c0_13] : memref<128x128xbf16, #tpu.memory_space<vmem>>, vector<128x128xbf16>
    %cst_14 = arith.constant dense<0.000000e+00> : vector<128x128xf32>
    %19 = tpu.matmul %17, %18, %cst_14 {dimension_numbers = #tpu.dot_dimension_numbers<[1], [0], [0], [1], [0, 0, 1, 1], [], []>} : vector<128x128xbf16>, vector<128x128xbf16>, vector<128x128xf32> -> vector<128x128xf32>
    %c0_15 = arith.constant 0 : index
    %c0_16 = arith.constant 0 : index
    %20 = vector.load %arg8[%c0_15, %c0_16] : memref<1x128xf32, #tpu.memory_space<vmem>>, vector<1x128xf32>
    %21 = vector.broadcast %20 : vector<1x128xf32> to vector<128x128xf32>
    %22 = arith.addf %19, %21 : vector<128x128xf32>
    %cst_17 = arith.constant 0.000000e+00 : f32
    %23 = vector.broadcast %cst_17 : f32 to vector<128x128xf32>
    %24 = arith.maximumf %22, %23 : vector<128x128xf32>
    %25 = arith.truncf %24 : vector<128x128xf32> to vector<128x128xbf16>
    %c0_18 = arith.constant 0 : index
    %c0_19 = arith.constant 0 : index
    %26 = vector.load %arg9[%c0_18, %c0_19] : memref<128x16xbf16, #tpu.memory_space<vmem>>, vector<128x16xbf16>
    %cst_20 = arith.constant dense<0.000000e+00> : vector<128x16xf32>
    %27 = tpu.matmul %25, %26, %cst_20 {dimension_numbers = #tpu.dot_dimension_numbers<[1], [0], [0], [1], [0, 0, 1, 1], [], []>} : vector<128x128xbf16>, vector<128x16xbf16>, vector<128x16xf32> -> vector<128x16xf32>
    %c0_21 = arith.constant 0 : index
    %c0_22 = arith.constant 0 : index
    %28 = vector.load %arg10[%c0_21, %c0_22] : memref<1x16xf32, #tpu.memory_space<vmem>>, vector<1x16xf32>
    %29 = vector.broadcast %28 : vector<1x16xf32> to vector<128x16xf32>
    %30 = arith.addf %27, %29 : vector<128x16xf32>
    %31 = vector.extract_strided_slice %30 {offsets = [0, 0], sizes = [128, 8], strides = [1, 1]} : vector<128x16xf32> to vector<128x8xf32>
    %32 = vector.extract_strided_slice %30 {offsets = [0, 8], sizes = [128, 8], strides = [1, 1]} : vector<128x16xf32> to vector<128x8xf32>
    %c0_23 = arith.constant 0 : index
    %c0_24 = arith.constant 0 : index
    %33 = vector.load %arg2[%c0_23, %c0_24] : memref<128x8xf32, #tpu.memory_space<vmem>>, vector<128x8xf32>
    %cst_25 = arith.constant 5.000000e-01 : f32
    %34 = vector.broadcast %cst_25 : f32 to vector<128x8xf32>
    %35 = arith.mulf %34, %32 : vector<128x8xf32>
    %36 = math.exp %35 : vector<128x8xf32>
    %37 = arith.mulf %33, %36 : vector<128x8xf32>
    %38 = arith.addf %31, %37 : vector<128x8xf32>
    %39 = arith.truncf %38 : vector<128x8xf32> to vector<128x8xbf16>
    %c0_26 = arith.constant 0 : index
    %c0_27 = arith.constant 0 : index
    %40 = vector.load %arg11[%c0_26, %c0_27] : memref<8x128xbf16, #tpu.memory_space<vmem>>, vector<8x128xbf16>
    %cst_28 = arith.constant dense<0.000000e+00> : vector<128x128xf32>
    %41 = tpu.matmul %39, %40, %cst_28 {dimension_numbers = #tpu.dot_dimension_numbers<[1], [0], [0], [1], [0, 0, 1, 1], [], []>} : vector<128x8xbf16>, vector<8x128xbf16>, vector<128x128xf32> -> vector<128x128xf32>
    %c0_29 = arith.constant 0 : index
    %c0_30 = arith.constant 0 : index
    %42 = vector.load %arg12[%c0_29, %c0_30] : memref<1x128xf32, #tpu.memory_space<vmem>>, vector<1x128xf32>
    %43 = vector.broadcast %42 : vector<1x128xf32> to vector<128x128xf32>
    %44 = arith.addf %41, %43 : vector<128x128xf32>
    %cst_31 = arith.constant 0.000000e+00 : f32
    %45 = vector.broadcast %cst_31 : f32 to vector<128x128xf32>
    %46 = arith.maximumf %44, %45 : vector<128x128xf32>
    %47 = arith.truncf %46 : vector<128x128xf32> to vector<128x128xbf16>
    %c0_32 = arith.constant 0 : index
    %c0_33 = arith.constant 0 : index
    %48 = vector.load %arg13[%c0_32, %c0_33] : memref<128x128xbf16, #tpu.memory_space<vmem>>, vector<128x128xbf16>
    %cst_34 = arith.constant dense<0.000000e+00> : vector<128x128xf32>
    %49 = tpu.matmul %47, %48, %cst_34 {dimension_numbers = #tpu.dot_dimension_numbers<[1], [0], [0], [1], [0, 0, 1, 1], [], []>} : vector<128x128xbf16>, vector<128x128xbf16>, vector<128x128xf32> -> vector<128x128xf32>
    %c0_35 = arith.constant 0 : index
    %c0_36 = arith.constant 0 : index
    %50 = vector.load %arg14[%c0_35, %c0_36] : memref<1x128xf32, #tpu.memory_space<vmem>>, vector<1x128xf32>
    %51 = vector.broadcast %50 : vector<1x128xf32> to vector<128x128xf32>
    %52 = arith.addf %49, %51 : vector<128x128xf32>
    %cst_37 = arith.constant 0.000000e+00 : f32
    %53 = vector.broadcast %cst_37 : f32 to vector<128x128xf32>
    %54 = arith.maximumf %52, %53 : vector<128x128xf32>
    %55 = arith.truncf %54 : vector<128x128xf32> to vector<128x128xbf16>
    %c0_38 = arith.constant 0 : index
    %c0_39 = arith.constant 0 : index
    %56 = vector.load %arg15[%c0_38, %c0_39] : memref<128x128xbf16, #tpu.memory_space<vmem>>, vector<128x128xbf16>
    %cst_40 = arith.constant dense<0.000000e+00> : vector<128x128xf32>
    %57 = tpu.matmul %55, %56, %cst_40 {dimension_numbers = #tpu.dot_dimension_numbers<[1], [0], [0], [1], [0, 0, 1, 1], [], []>} : vector<128x128xbf16>, vector<128x128xbf16>, vector<128x128xf32> -> vector<128x128xf32>
    %c0_41 = arith.constant 0 : index
    %c0_42 = arith.constant 0 : index
    %58 = vector.load %arg16[%c0_41, %c0_42] : memref<1x128xf32, #tpu.memory_space<vmem>>, vector<1x128xf32>
    %59 = vector.broadcast %58 : vector<1x128xf32> to vector<128x128xf32>
    %60 = arith.addf %57, %59 : vector<128x128xf32>
    %cst_43 = arith.constant 0.000000e+00 : f32
    %61 = vector.broadcast %cst_43 : f32 to vector<128x128xf32>
    %62 = arith.maximumf %60, %61 : vector<128x128xf32>
    %63 = arith.truncf %62 : vector<128x128xf32> to vector<128x128xbf16>
    %c0_44 = arith.constant 0 : index
    %c0_45 = arith.constant 0 : index
    %64 = vector.load %arg17[%c0_44, %c0_45] : memref<128x32xbf16, #tpu.memory_space<vmem>>, vector<128x32xbf16>
    %cst_46 = arith.constant dense<0.000000e+00> : vector<128x32xf32>
    %65 = tpu.matmul %63, %64, %cst_46 {dimension_numbers = #tpu.dot_dimension_numbers<[1], [0], [0], [1], [0, 0, 1, 1], [], []>} : vector<128x128xbf16>, vector<128x32xbf16>, vector<128x32xf32> -> vector<128x32xf32>
    %c0_47 = arith.constant 0 : index
    %c0_48 = arith.constant 0 : index
    %66 = vector.load %arg18[%c0_47, %c0_48] : memref<1x32xf32, #tpu.memory_space<vmem>>, vector<1x32xf32>
    %67 = vector.broadcast %66 : vector<1x32xf32> to vector<128x32xf32>
    %68 = arith.addf %65, %67 : vector<128x32xf32>
    %69 = arith.subf %68, %0 : vector<128x32xf32>
    %70 = arith.mulf %69, %69 : vector<128x32xf32>
    %cst_49 = arith.constant dense<0.000000e+00> : vector<128xf32>
    %71 = vector.multi_reduction <add>, %70, %cst_49 [1] : vector<128x32xf32> to vector<128xf32>
    %72 = math.sqrt %71 : vector<128xf32>
    %cst_50 = arith.constant 1.000000e+00 : f32
    %73 = vector.broadcast %cst_50 : f32 to vector<128x8xf32>
    %74 = arith.addf %73, %32 : vector<128x8xf32>
    %75 = arith.mulf %31, %31 : vector<128x8xf32>
    %76 = arith.subf %74, %75 : vector<128x8xf32>
    %77 = math.exp %32 : vector<128x8xf32>
    %78 = arith.subf %76, %77 : vector<128x8xf32>
    %cst_51 = arith.constant -5.000000e+00 : f32
    %79 = vector.broadcast %cst_51 : f32 to vector<128x8xf32>
    %80 = arith.mulf %79, %78 : vector<128x8xf32>
    %cst_52 = arith.constant dense<0.000000e+00> : vector<128xf32>
    %81 = vector.multi_reduction <add>, %80, %cst_52 [1] : vector<128x8xf32> to vector<128xf32>
    %cst_53 = arith.constant 3.500000e+00 : f32
    %82 = vector.broadcast %cst_53 : f32 to vector<128xf32>
    %83 = arith.mulf %82, %72 : vector<128xf32>
    %cst_54 = arith.constant 1.000000e+00 : f32
    %84 = vector.broadcast %cst_54 : f32 to vector<128xf32>
    %85 = arith.addf %84, %83 : vector<128xf32>
    %86 = tpu.reciprocal %85 {approx = true} : vector<128xf32> -> vector<128xf32>
    %c0_55 = arith.constant 0 : index
    %c0_56 = arith.constant 0 : index
    %87 = vector.load %arg19[%c0_55, %c0_56] : memref<3x128xf32, #tpu.memory_space<vmem>>, vector<1x128xf32>
    %88 = vector.shape_cast %87 : vector<1x128xf32> to vector<128xf32>
    %89 = vector.shape_cast %86 : vector<128xf32> to vector<1x128xf32>
    tpu.vector_store %arg19[%c0_55, %c0_56], %89 {strides = array<i32>} : memref<3x128xf32, #tpu.memory_space<vmem>>, vector<1x128xf32>,
    %c1 = arith.constant 1 : index
    %c0_57 = arith.constant 0 : index
    %90 = vector.load %arg19[%c1, %c0_57] : memref<3x128xf32, #tpu.memory_space<vmem>>, vector<1x128xf32>
    %91 = vector.shape_cast %90 : vector<1x128xf32> to vector<128xf32>
    %92 = vector.shape_cast %72 : vector<128xf32> to vector<1x128xf32>
    tpu.vector_store %arg19[%c1, %c0_57], %92 {strides = array<i32>} : memref<3x128xf32, #tpu.memory_space<vmem>>, vector<1x128xf32>,
    %c2 = arith.constant 2 : index
    %c0_58 = arith.constant 0 : index
    %93 = vector.load %arg19[%c2, %c0_58] : memref<3x128xf32, #tpu.memory_space<vmem>>, vector<1x128xf32>
    %94 = vector.shape_cast %93 : vector<1x128xf32> to vector<128xf32>
    %95 = vector.shape_cast %81 : vector<128xf32> to vector<1x128xf32>
    tpu.vector_store %arg19[%c2, %c0_58], %95 {strides = array<i32>} : memref<3x128xf32, #tpu.memory_space<vmem>>, vector<1x128xf32>,
    return
  }
  func.func @transform_0(%arg0: i32) -> (i32, i32) {
    %c0_i32 = arith.constant 0 : i32
    %c0_i32_0 = arith.constant 0 : i32
    return %arg0, %c0_i32 : i32, i32
  }
  func.func @transform_1(%arg0: i32) -> (i32, i32) {
    %c0_i32 = arith.constant 0 : i32
    %c0_i32_0 = arith.constant 0 : i32
    return %arg0, %c0_i32 : i32, i32
  }
  func.func @transform_2(%arg0: i32) -> (i32, i32) {
    %c0_i32 = arith.constant 0 : i32
    %c0_i32_0 = arith.constant 0 : i32
    %c0_i32_1 = arith.constant 0 : i32
    return %c0_i32, %c0_i32_0 : i32, i32
  }
  func.func @transform_3(%arg0: i32) -> (i32, i32) {
    %c0_i32 = arith.constant 0 : i32
    %c0_i32_0 = arith.constant 0 : i32
    %c0_i32_1 = arith.constant 0 : i32
    return %c0_i32, %c0_i32_0 : i32, i32
  }
  func.func @transform_4(%arg0: i32) -> (i32, i32) {
    %c0_i32 = arith.constant 0 : i32
    %c0_i32_0 = arith.constant 0 : i32
    %c0_i32_1 = arith.constant 0 : i32
    return %c0_i32, %c0_i32_0 : i32, i32
  }
  func.func @transform_5(%arg0: i32) -> (i32, i32) {
    %c0_i32 = arith.constant 0 : i32
    %c0_i32_0 = arith.constant 0 : i32
    %c0_i32_1 = arith.constant 0 : i32
    return %c0_i32, %c0_i32_0 : i32, i32
  }
  func.func @transform_6(%arg0: i32) -> (i32, i32) {
    %c0_i32 = arith.constant 0 : i32
    %c0_i32_0 = arith.constant 0 : i32
    %c0_i32_1 = arith.constant 0 : i32
    return %c0_i32, %c0_i32_0 : i32, i32
  }
  func.func @transform_7(%arg0: i32) -> (i32, i32) {
    %c0_i32 = arith.constant 0 : i32
    %c0_i32_0 = arith.constant 0 : i32
    %c0_i32_1 = arith.constant 0 : i32
    return %c0_i32, %c0_i32_0 : i32, i32
  }
  func.func @transform_8(%arg0: i32) -> (i32, i32) {
    %c0_i32 = arith.constant 0 : i32
    %c0_i32_0 = arith.constant 0 : i32
    %c0_i32_1 = arith.constant 0 : i32
    return %c0_i32, %c0_i32_0 : i32, i32
  }
  func.func @transform_9(%arg0: i32) -> (i32, i32) {
    %c0_i32 = arith.constant 0 : i32
    %c0_i32_0 = arith.constant 0 : i32
    %c0_i32_1 = arith.constant 0 : i32
    return %c0_i32, %c0_i32_0 : i32, i32
  }
  func.func @transform_10(%arg0: i32) -> (i32, i32) {
    %c0_i32 = arith.constant 0 : i32
    %c0_i32_0 = arith.constant 0 : i32
    %c0_i32_1 = arith.constant 0 : i32
    return %c0_i32, %c0_i32_0 : i32, i32
  }
  func.func @transform_11(%arg0: i32) -> (i32, i32) {
    %c0_i32 = arith.constant 0 : i32
    %c0_i32_0 = arith.constant 0 : i32
    %c0_i32_1 = arith.constant 0 : i32
    return %c0_i32, %c0_i32_0 : i32, i32
  }
  func.func @transform_12(%arg0: i32) -> (i32, i32) {
    %c0_i32 = arith.constant 0 : i32
    %c0_i32_0 = arith.constant 0 : i32
    %c0_i32_1 = arith.constant 0 : i32
    return %c0_i32, %c0_i32_0 : i32, i32
  }
  func.func @transform_13(%arg0: i32) -> (i32, i32) {
    %c0_i32 = arith.constant 0 : i32
    %c0_i32_0 = arith.constant 0 : i32
    %c0_i32_1 = arith.constant 0 : i32
    return %c0_i32, %c0_i32_0 : i32, i32
  }
  func.func @transform_14(%arg0: i32) -> (i32, i32) {
    %c0_i32 = arith.constant 0 : i32
    %c0_i32_0 = arith.constant 0 : i32
    %c0_i32_1 = arith.constant 0 : i32
    return %c0_i32, %c0_i32_0 : i32, i32
  }
  func.func @transform_15(%arg0: i32) -> (i32, i32) {
    %c0_i32 = arith.constant 0 : i32
    %c0_i32_0 = arith.constant 0 : i32
    %c0_i32_1 = arith.constant 0 : i32
    return %c0_i32, %c0_i32_0 : i32, i32
  }
  func.func @transform_16(%arg0: i32) -> (i32, i32) {
    %c0_i32 = arith.constant 0 : i32
    %c0_i32_0 = arith.constant 0 : i32
    %c0_i32_1 = arith.constant 0 : i32
    return %c0_i32, %c0_i32_0 : i32, i32
  }
  func.func @transform_17(%arg0: i32) -> (i32, i32) {
    %c0_i32 = arith.constant 0 : i32
    %c0_i32_0 = arith.constant 0 : i32
    %c0_i32_1 = arith.constant 0 : i32
    return %c0_i32, %c0_i32_0 : i32, i32
  }
  func.func @transform_18(%arg0: i32) -> (i32, i32) {
    %c0_i32 = arith.constant 0 : i32
    %c0_i32_0 = arith.constant 0 : i32
    return %c0_i32, %arg0 : i32, i32
  }
}

</mosaic_0001>

<llo_original>
// kernel: fwd.1
$region0: #{fwd.1}
  #allocation0 [shape = 'u32[]', space=smem, size = 0x4, offset = 0x4, fixed_abs, tag = 'smem constant byte address 0x4 - core index']
  #allocation1 [shape = 'u32[144,128]{1,0:T(1,128)}', space=vmem, size = 0x12000, scoped, tag = 'internal scratch']
  %s0 = inlined_call_operand.vmem [shape: f32[512,32], index: 0, kind: input, shape index: {}]
  %s1 = inlined_call_operand.vmem [shape: f32[512,8], index: 1, kind: input, shape index: {}]
  %s2 = inlined_call_operand.vmem [shape: bf16[32,128], index: 2, kind: input, shape index: {}]
  %s3 = inlined_call_operand.vmem [shape: f32[1,128], index: 3, kind: input, shape index: {}, may-alias: {3,5,7,11,13,15}]
  %s4 = inlined_call_operand.vmem [shape: bf16[128,128], index: 4, kind: input, shape index: {}]
  %s5 = inlined_call_operand.vmem [shape: f32[1,128], index: 5, kind: input, shape index: {}, may-alias: {3,5,7,11,13,15}]
  %s6 = inlined_call_operand.vmem [shape: bf16[128,128], index: 6, kind: input, shape index: {}]
  %s7 = inlined_call_operand.vmem [shape: f32[1,128], index: 7, kind: input, shape index: {}, may-alias: {3,5,7,11,13,15}]
  %s8 = inlined_call_operand.vmem [shape: bf16[128,16], index: 8, kind: input, shape index: {}]
  %s9 = inlined_call_operand.vmem [shape: f32[1,16], index: 9, kind: input, shape index: {}]
  %s10 = inlined_call_operand.vmem [shape: bf16[8,128], index: 10, kind: input, shape index: {}]
  %s11 = inlined_call_operand.vmem [shape: f32[1,128], index: 11, kind: input, shape index: {}, may-alias: {3,5,7,11,13,15}]
  %s12 = inlined_call_operand.vmem [shape: bf16[128,128], index: 12, kind: input, shape index: {}]
  %s13 = inlined_call_operand.vmem [shape: f32[1,128], index: 13, kind: input, shape index: {}, may-alias: {3,5,7,11,13,15}]
  %s14 = inlined_call_operand.vmem [shape: bf16[128,128], index: 14, kind: input, shape index: {}]
  %s15 = inlined_call_operand.vmem [shape: f32[1,128], index: 15, kind: input, shape index: {}, may-alias: {3,5,7,11,13,15}]
  %s16 = inlined_call_operand.vmem [shape: bf16[128,32], index: 16, kind: input, shape index: {}]
  %s17 = inlined_call_operand.vmem [shape: f32[1,32], index: 17, kind: input, shape index: {}]
  %s18 = inlined_call_operand.vmem [shape: f32[3,512], index: 18, kind: output, shape index: {}]
  %s19 = sld [smem:[#allocation0]]
  $region105: #{fwd.1} parent=0
    _
  %s21 = ssub.s32 1, %s19
  %s22 = scalar_select 0, %s21, %s19
  loop: start=0, step=1, limit=6
  $region2: #{fwd.1} parent=0 // loop_pre_header
    _
  $region3: #{fwd.1} parent=0 // loop_header
    %s24 = sphi 0, %s28
    %p25 = scmp.ge.s32.totalorder %s24, 6
    %s34 = sphi 0, %s36
    %s37 = sphi 0, %s34
    %s38 = sphi 0, %s37
    %s54 = sphi 0, %s38
    %s60 = sphi 0, %s62
    %s63 = sphi 0, %s60
    %s64 = sphi 0, %s63
    %s80 = sphi 0, %s64
    %s84 = sphi 0, %s84
    %s86 = sphi 0, %s84
    %s87 = sphi 0, %s86
    %s101 = sphi 0, %s87
    %s105 = sphi 0, %s105
    %s107 = sphi 0, %s105
    %s108 = sphi 0, %s107
    %s122 = sphi 0, %s108
    %s126 = sphi 0, %s126
    %s128 = sphi 0, %s126
    %s129 = sphi 0, %s128
    %s143 = sphi 0, %s129
    %s147 = sphi 0, %s147
    %s149 = sphi 0, %s147
    %s150 = sphi 0, %s149
    %s164 = sphi 0, %s150
    %s168 = sphi 0, %s168
    %s170 = sphi 0, %s168
    %s171 = sphi 0, %s170
    %s185 = sphi 0, %s171
    %s189 = sphi 0, %s189
    %s191 = sphi 0, %s189
    %s192 = sphi 0, %s191
    %s206 = sphi 0, %s192
    %s210 = sphi 0, %s210
    %s212 = sphi 0, %s210
    %s213 = sphi 0, %s212
    %s227 = sphi 0, %s213
    %s231 = sphi 0, %s231
    %s233 = sphi 0, %s231
    %s234 = sphi 0, %s233
    %s248 = sphi 0, %s234
    %s252 = sphi 0, %s252
    %s254 = sphi 0, %s252
    %s255 = sphi 0, %s254
    %s269 = sphi 0, %s255
    %s273 = sphi 0, %s273
    %s275 = sphi 0, %s273
    %s276 = sphi 0, %s275
    %s290 = sphi 0, %s276
    %s294 = sphi 0, %s294
    %s296 = sphi 0, %s294
    %s297 = sphi 0, %s296
    %s311 = sphi 0, %s297
    %s315 = sphi 0, %s315
    %s317 = sphi 0, %s315
    %s318 = sphi 0, %s317
    %s332 = sphi 0, %s318
    %s336 = sphi 0, %s336
    %s338 = sphi 0, %s336
    %s339 = sphi 0, %s338
    %s353 = sphi 0, %s339
    %s357 = sphi 0, %s357
    %s359 = sphi 0, %s357
    %s360 = sphi 0, %s359
    %s374 = sphi 0, %s360
    %s378 = sphi 0, %s378
    %s380 = sphi 0, %s378
    %s381 = sphi 0, %s380
    %s395 = sphi 0, %s381
    %s399 = sphi 0, %s399
    %s401 = sphi 0, %s399
    %s402 = sphi 0, %s401
    %s416 = sphi 0, %s402
    %s422 = sphi 0, %s424
    %s425 = sphi 0, %s422
    %s426 = sphi 0, %s425
    %s442 = sphi 0, %s426
  $region4: #{fwd.1} parent=0 // loop_header_branch
    %27 = sbr.rel (%p25) target = $region8
  $region5: #{fwd.1} parent=0 // loop_body
    %s29 = ssub.s32 %s24, 1
    %s30 = ssub.s32 %s24, 2
    %s31 = sadd.s32 %s24, 1
    %s32 = ssub.s32 %s24, %s31
    %p33 = scmp.eq.s32.totalorder %s32, 0
    %s35 = sadd.s32 %s34, 1
    %s36 = scalar_select %p33, %s34, %s35
    %p39 = pneg %p33
    %p40 = scmp.eq.s32.totalorder %s24, 3
    %p41 = por %p39, %p40
    %p42 = scmp.ne.s32.totalorder %s34, %s37
    %p43 = scmp.eq.s32.totalorder %s24, 0
    %p44 = por %p42, %p43
    %p45 = scmp.ne.s32.totalorder %s34, %s37
    %p46 = scmp.eq.s32.totalorder %s29, 3
    %p47 = por %p45, %p46
    %p48 = scmp.ne.s32.totalorder %s37, %s38
    %p49 = scmp.eq.s32.totalorder %s29, 0
    %p50 = por %p48, %p49
    %p51 = scmp.ne.s32.totalorder %s37, %s38
    %p52 = scmp.eq.s32.totalorder %s30, 3
    %p53 = por %p51, %p52
    %p55 = scmp.ne.s32.totalorder %s38, %s54
    %p56 = scmp.eq.s32.totalorder %s30, 0
    %p57 = por %p55, %p56
    %s58 = ssub.s32 %s24, %s31
    %p59 = scmp.eq.s32.totalorder %s58, 0
    %s61 = sadd.s32 %s60, 1
    %s62 = scalar_select %p59, %s60, %s61
    %p65 = pneg %p59
    %p66 = scmp.eq.s32.totalorder %s24, 3
    %p67 = por %p65, %p66
    %p68 = scmp.ne.s32.totalorder %s60, %s63
    %p69 = scmp.eq.s32.totalorder %s24, 0
    %p70 = por %p68, %p69
    %p71 = scmp.ne.s32.totalorder %s60, %s63
    %p72 = scmp.eq.s32.totalorder %s29, 3
    %p73 = por %p71, %p72
    %p74 = scmp.ne.s32.totalorder %s63, %s64
    %p75 = scmp.eq.s32.totalorder %s29, 0
    %p76 = por %p74, %p75
    %p77 = scmp.ne.s32.totalorder %s63, %s64
    %p78 = scmp.eq.s32.totalorder %s30, 3
    %p79 = por %p77, %p78
    %p81 = scmp.ne.s32.totalorder %s64, %s80
    %p82 = scmp.eq.s32.totalorder %s30, 0
    %p83 = por %p81, %p82
    %s85 = sadd.s32 %s84, 1
    %p88 = scmp.eq.s32.totalorder %s24, 3
    %p89 = scmp.ne.s32.totalorder %s84, %s86
    %p90 = scmp.eq.s32.totalorder %s24, 0
    %p91 = por %p89, %p90
    %p92 = scmp.ne.s32.totalorder %s84, %s86
    %p93 = scmp.eq.s32.totalorder %s29, 3
    %p94 = por %p92, %p93
    %p95 = scmp.ne.s32.totalorder %s86, %s87
    %p96 = scmp.eq.s32.totalorder %s29, 0
    %p97 = por %p95, %p96
    %p98 = scmp.ne.s32.totalorder %s86, %s87
    %p99 = scmp.eq.s32.totalorder %s30, 3
    %p100 = por %p98, %p99
    %p102 = scmp.ne.s32.totalorder %s87, %s101
    %p103 = scmp.eq.s32.totalorder %s30, 0
    %p104 = por %p102, %p103
    %s106 = sadd.s32 %s105, 1
    %p109 = scmp.eq.s32.totalorder %s24, 3
    %p110 = scmp.ne.s32.totalorder %s105, %s107
    %p111 = scmp.eq.s32.totalorder %s24, 0
    %p112 = por %p110, %p111
    %p113 = scmp.ne.s32.totalorder %s105, %s107
    %p114 = scmp.eq.s32.totalorder %s29, 3
    %p115 = por %p113, %p114
    %p116 = scmp.ne.s32.totalorder %s107, %s108
    %p117 = scmp.eq.s32.totalorder %s29, 0
    %p118 = por %p116, %p117
    %p119 = scmp.ne.s32.totalorder %s107, %s108
    %p120 = scmp.eq.s32.totalorder %s30, 3
    %p121 = por %p119, %p120
    %p123 = scmp.ne.s32.totalorder %s108, %s122
    %p124 = scmp.eq.s32.totalorder %s30, 0
    %p125 = por %p123, %p124
    %s127 = sadd.s32 %s126, 1
    %p130 = scmp.eq.s32.totalorder %s24, 3
    %p131 = scmp.ne.s32.totalorder %s126, %s128
    %p132 = scmp.eq.s32.totalorder %s24, 0
    %p133 = por %p131, %p132
    %p134 = scmp.ne.s32.totalorder %s126, %s128
    %p135 = scmp.eq.s32.totalorder %s29, 3
    %p136 = por %p134, %p135
    %p137 = scmp.ne.s32.totalorder %s128, %s129
    %p138 = scmp.eq.s32.totalorder %s29, 0
    %p139 = por %p137, %p138
    %p140 = scmp.ne.s32.totalorder %s128, %s129
    %p141 = scmp.eq.s32.totalorder %s30, 3
    %p142 = por %p140, %p141
    %p144 = scmp.ne.s32.totalorder %s129, %s143
    %p145 = scmp.eq.s32.totalorder %s30, 0
    %p146 = por %p144, %p145
    %s148 = sadd.s32 %s147, 1
    %p151 = scmp.eq.s32.totalorder %s24, 3
    %p152 = scmp.ne.s32.totalorder %s147, %s149
    %p153 = scmp.eq.s32.totalorder %s24, 0
    %p154 = por %p152, %p153
    %p155 = scmp.ne.s32.totalorder %s147, %s149
    %p156 = scmp.eq.s32.totalorder %s29, 3
    %p157 = por %p155, %p156
    %p158 = scmp.ne.s32.totalorder %s149, %s150
    %p159 = scmp.eq.s32.totalorder %s29, 0
    %p160 = por %p158, %p159
    %p161 = scmp.ne.s32.totalorder %s149, %s150
    %p162 = scmp.eq.s32.totalorder %s30, 3
    %p163 = por %p161, %p162
    %p165 = scmp.ne.s32.totalorder %s150, %s164
    %p166 = scmp.eq.s32.totalorder %s30, 0
    %p167 = por %p165, %p166
    %s169 = sadd.s32 %s168, 1
    %p172 = scmp.eq.s32.totalorder %s24, 3
    %p173 = scmp.ne.s32.totalorder %s168, %s170
    %p174 = scmp.eq.s32.totalorder %s24, 0
    %p175 = por %p173, %p174
    %p176 = scmp.ne.s32.totalorder %s168, %s170
    %p177 = scmp.eq.s32.totalorder %s29, 3
    %p178 = por %p176, %p177
    %p179 = scmp.ne.s32.totalorder %s170, %s171
    %p180 = scmp.eq.s32.totalorder %s29, 0
    %p181 = por %p179, %p180
    %p182 = scmp.ne.s32.totalorder %s170, %s171
    %p183 = scmp.eq.s32.totalorder %s30, 3
    %p184 = por %p182, %p183
    %p186 = scmp.ne.s32.totalorder %s171, %s185
    %p187 = scmp.eq.s32.totalorder %s30, 0
    %p188 = por %p186, %p187
    %s190 = sadd.s32 %s189, 1
    %p193 = scmp.eq.s32.totalorder %s24, 3
    %p194 = scmp.ne.s32.totalorder %s189, %s191
    %p195 = scmp.eq.s32.totalorder %s24, 0
    %p196 = por %p194, %p195
    %p197 = scmp.ne.s32.totalorder %s189, %s191
    %p198 = scmp.eq.s32.totalorder %s29, 3
    %p199 = por %p197, %p198
    %p200 = scmp.ne.s32.totalorder %s191, %s192
    %p201 = scmp.eq.s32.totalorder %s29, 0
    %p202 = por %p200, %p201
    %p203 = scmp.ne.s32.totalorder %s191, %s192
    %p204 = scmp.eq.s32.totalorder %s30, 3
    %p205 = por %p203, %p204
    %p207 = scmp.ne.s32.totalorder %s192, %s206
    %p208 = scmp.eq.s32.totalorder %s30, 0
    %p209 = por %p207, %p208
    %s211 = sadd.s32 %s210, 1
    %p214 = scmp.eq.s32.totalorder %s24, 3
    %p215 = scmp.ne.s32.totalorder %s210, %s212
    %p216 = scmp.eq.s32.totalorder %s24, 0
    %p217 = por %p215, %p216
    %p218 = scmp.ne.s32.totalorder %s210, %s212
    %p219 = scmp.eq.s32.totalorder %s29, 3
    %p220 = por %p218, %p219
    %p221 = scmp.ne.s32.totalorder %s212, %s213
    %p222 = scmp.eq.s32.totalorder %s29, 0
    %p223 = por %p221, %p222
    %p224 = scmp.ne.s32.totalorder %s212, %s213
    %p225 = scmp.eq.s32.totalorder %s30, 3
    %p226 = por %p224, %p225
    %p228 = scmp.ne.s32.totalorder %s213, %s227
    %p229 = scmp.eq.s32.totalorder %s30, 0
    %p230 = por %p228, %p229
    %s232 = sadd.s32 %s231, 1
    %p235 = scmp.eq.s32.totalorder %s24, 3
    %p236 = scmp.ne.s32.totalorder %s231, %s233
    %p237 = scmp.eq.s32.totalorder %s24, 0
    %p238 = por %p236, %p237
    %p239 = scmp.ne.s32.totalorder %s231, %s233
    %p240 = scmp.eq.s32.totalorder %s29, 3
    %p241 = por %p239, %p240
    %p242 = scmp.ne.s32.totalorder %s233, %s234
    %p243 = scmp.eq.s32.totalorder %s29, 0
    %p244 = por %p242, %p243
    %p245 = scmp.ne.s32.totalorder %s233, %s234
    %p246 = scmp.eq.s32.totalorder %s30, 3
    %p247 = por %p245, %p246
    %p249 = scmp.ne.s32.totalorder %s234, %s248
    %p250 = scmp.eq.s32.totalorder %s30, 0
    %p251 = por %p249, %p250
    %s253 = sadd.s32 %s252, 1
    %p256 = scmp.eq.s32.totalorder %s24, 3
    %p257 = scmp.ne.s32.totalorder %s252, %s254
    %p258 = scmp.eq.s32.totalorder %s24, 0
    %p259 = por %p257, %p258
    %p260 = scmp.ne.s32.totalorder %s252, %s254
    %p261 = scmp.eq.s32.totalorder %s29, 3
    %p262 = por %p260, %p261
    %p263 = scmp.ne.s32.totalorder %s254, %s255
    %p264 = scmp.eq.s32.totalorder %s29, 0
    %p265 = por %p263, %p264
    %p266 = scmp.ne.s32.totalorder %s254, %s255
    %p267 = scmp.eq.s32.totalorder %s30, 3
    %p268 = por %p266, %p267
    %p270 = scmp.ne.s32.totalorder %s255, %s269
    %p271 = scmp.eq.s32.totalorder %s30, 0
    %p272 = por %p270, %p271
    %s274 = sadd.s32 %s273, 1
    %p277 = scmp.eq.s32.totalorder %s24, 3
    %p278 = scmp.ne.s32.totalorder %s273, %s275
    %p279 = scmp.eq.s32.totalorder %s24, 0
    %p280 = por %p278, %p279
    %p281 = scmp.ne.s32.totalorder %s273, %s275
    %p282 = scmp.eq.s32.totalorder %s29, 3
    %p283 = por %p281, %p282
    %p284 = scmp.ne.s32.totalorder %s275, %s276
    %p285 = scmp.eq.s32.totalorder %s29, 0
    %p286 = por %p284, %p285
    %p287 = scmp.ne.s32.totalorder %s275, %s276
    %p288 = scmp.eq.s32.totalorder %s30, 3
    %p289 = por %p287, %p288
    %p291 = scmp.ne.s32.totalorder %s276, %s290
    %p292 = scmp.eq.s32.totalorder %s30, 0
    %p293 = por %p291, %p292
    %s295 = sadd.s32 %s294, 1
    %p298 = scmp.eq.s32.totalorder %s24, 3
    %p299 = scmp.ne.s32.totalorder %s294, %s296
    %p300 = scmp.eq.s32.totalorder %s24, 0
    %p301 = por %p299, %p300
    %p302 = scmp.ne.s32.totalorder %s294, %s296
    %p303 = scmp.eq.s32.totalorder %s29, 3
    %p304 = por %p302, %p303
    %p305 = scmp.ne.s32.totalorder %s296, %s297
    %p306 = scmp.eq.s32.totalorder %s29, 0
    %p307 = por %p305, %p306
    %p308 = scmp.ne.s32.totalorder %s296, %s297
    %p309 = scmp.eq.s32.totalorder %s30, 3
    %p310 = por %p308, %p309
    %p312 = scmp.ne.s32.totalorder %s297, %s311
    %p313 = scmp.eq.s32.totalorder %s30, 0
    %p314 = por %p312, %p313
    %s316 = sadd.s32 %s315, 1
    %p319 = scmp.eq.s32.totalorder %s24, 3
    %p320 = scmp.ne.s32.totalorder %s315, %s317
    %p321 = scmp.eq.s32.totalorder %s24, 0
    %p322 = por %p320, %p321
    %p323 = scmp.ne.s32.totalorder %s315, %s317
    %p324 = scmp.eq.s32.totalorder %s29, 3
    %p325 = por %p323, %p324
    %p326 = scmp.ne.s32.totalorder %s317, %s318
    %p327 = scmp.eq.s32.totalorder %s29, 0
    %p328 = por %p326, %p327
    %p329 = scmp.ne.s32.totalorder %s317, %s318
    %p330 = scmp.eq.s32.totalorder %s30, 3
    %p331 = por %p329, %p330
    %p333 = scmp.ne.s32.totalorder %s318, %s332
    %p334 = scmp.eq.s32.totalorder %s30, 0
    %p335 = por %p333, %p334
    %s337 = sadd.s32 %s336, 1
    %p340 = scmp.eq.s32.totalorder %s24, 3
    %p341 = scmp.ne.s32.totalorder %s336, %s338
    %p342 = scmp.eq.s32.totalorder %s24, 0
    %p343 = por %p341, %p342
    %p344 = scmp.ne.s32.totalorder %s336, %s338
    %p345 = scmp.eq.s32.totalorder %s29, 3
    %p346 = por %p344, %p345
    %p347 = scmp.ne.s32.totalorder %s338, %s339
    %p348 = scmp.eq.s32.totalorder %s29, 0
    %p349 = por %p347, %p348
    %p350 = scmp.ne.s32.totalorder %s338, %s339
    %p351 = scmp.eq.s32.totalorder %s30, 3
    %p352 = por %p350, %p351
    %p354 = scmp.ne.s32.totalorder %s339, %s353
    %p355 = scmp.eq.s32.totalorder %s30, 0
    %p356 = por %p354, %p355
    %s358 = sadd.s32 %s357, 1
    %p361 = scmp.eq.s32.totalorder %s24, 3
    %p362 = scmp.ne.s32.totalorder %s357, %s359
    %p363 = scmp.eq.s32.totalorder %s24, 0
    %p364 = por %p362, %p363
    %p365 = scmp.ne.s32.totalorder %s357, %s359
    %p366 = scmp.eq.s32.totalorder %s29, 3
    %p367 = por %p365, %p366
    %p368 = scmp.ne.s32.totalorder %s359, %s360
    %p369 = scmp.eq.s32.totalorder %s29, 0
    %p370 = por %p368, %p369
    %p371 = scmp.ne.s32.totalorder %s359, %s360
    %p372 = scmp.eq.s32.totalorder %s30, 3
    %p373 = por %p371, %p372
    %p375 = scmp.ne.s32.totalorder %s360, %s374
    %p376 = scmp.eq.s32.totalorder %s30, 0
    %p377 = por %p375, %p376
    %s379 = sadd.s32 %s378, 1
    %p382 = scmp.eq.s32.totalorder %s24, 3
    %p383 = scmp.ne.s32.totalorder %s378, %s380
    %p384 = scmp.eq.s32.totalorder %s24, 0
    %p385 = por %p383, %p384
    %p386 = scmp.ne.s32.totalorder %s378, %s380
    %p387 = scmp.eq.s32.totalorder %s29, 3
    %p388 = por %p386, %p387
    %p389 = scmp.ne.s32.totalorder %s380, %s381
    %p390 = scmp.eq.s32.totalorder %s29, 0
    %p391 = por %p389, %p390
    %p392 = scmp.ne.s32.totalorder %s380, %s381
    %p393 = scmp.eq.s32.totalorder %s30, 3
    %p394 = por %p392, %p393
    %p396 = scmp.ne.s32.totalorder %s381, %s395
    %p397 = scmp.eq.s32.totalorder %s30, 0
    %p398 = por %p396, %p397
    %s400 = sadd.s32 %s399, 1
    %p403 = scmp.eq.s32.totalorder %s24, 3
    %p404 = scmp.ne.s32.totalorder %s399, %s401
    %p405 = scmp.eq.s32.totalorder %s24, 0
    %p406 = por %p404, %p405
    %p407 = scmp.ne.s32.totalorder %s399, %s401
    %p408 = scmp.eq.s32.totalorder %s29, 3
    %p409 = por %p407, %p408
    %p410 = scmp.ne.s32.totalorder %s401, %s402
    %p411 = scmp.eq.s32.totalorder %s29, 0
    %p412 = por %p410, %p411
    %p413 = scmp.ne.s32.totalorder %s401, %s402
    %p414 = scmp.eq.s32.totalorder %s30, 3
    %p415 = por %p413, %p414
    %p417 = scmp.ne.s32.totalorder %s402, %s416
    %p418 = scmp.eq.s32.totalorder %s30, 0
    %p419 = por %p417, %p418
    %s420 = ssub.s32 %s24, %s31
    %p421 = scmp.eq.s32.totalorder %s420, 0
    %s423 = sadd.s32 %s422, 1
    %s424 = scalar_select %p421, %s422, %s423
    %p427 = pneg %p421
    %p428 = scmp.eq.s32.totalorder %s24, 3
    %p429 = por %p427, %p428
    %p430 = scmp.ne.s32.totalorder %s422, %s425
    %p431 = scmp.eq.s32.totalorder %s24, 0
    %p432 = por %p430, %p431
    %p433 = scmp.ne.s32.totalorder %s422, %s425
    %p434 = scmp.eq.s32.totalorder %s29, 3
    %p435 = por %p433, %p434
    %p436 = scmp.ne.s32.totalorder %s425, %s426
    %p437 = scmp.eq.s32.totalorder %s29, 0
    %p438 = por %p436, %p437
    %p439 = scmp.ne.s32.totalorder %s425, %s426
    %p440 = scmp.eq.s32.totalorder %s30, 3
    %p441 = por %p439, %p440
    %p443 = scmp.ne.s32.totalorder %s426, %s442
    %p444 = scmp.eq.s32.totalorder %s30, 0
    %p445 = por %p443, %p444
    %p446 = scmp.le.s32.totalorder 1, %s24
    %p447 = scmp.lt.s32.totalorder %s24, 5
    %p448 = pnand %p446, %p447
    %p449 = pneg %p448
    // Predicated region
    $region9: #{fwd.1} parent=5 // pred_check
      _
    $region10: #{fwd.1} parent=5 // pred_check_branch
      %451 = sbr.rel (%p448) target = $region12
    $region11: #{fwd.1} parent=5 // pred_region
      %s452 = ssub.s32 %s24, 1
      // Predicated region
      $region13: #{fwd.1} parent=11 // pred_check
        %p453 = pneg %p97
      $region14: #{fwd.1} parent=11 // pred_check_branch
        %455 = sbr.rel (%p453) target = $region16
      $region15: #{fwd.1} parent=11 // pred_region
        _
      $region16: #{fwd.1} parent=11 // pred_fallthru
        _
      // Predicated region
      $region17: #{fwd.1} parent=11 // pred_check
        %p456 = pneg %p118
      $region18: #{fwd.1} parent=11 // pred_check_branch
        %458 = sbr.rel (%p456) target = $region20
      $region19: #{fwd.1} parent=11 // pred_region
        _
      $region20: #{fwd.1} parent=11 // pred_fallthru
        _
      // Predicated region
      $region21: #{fwd.1} parent=11 // pred_check
        %p459 = pneg %p139
      $region22: #{fwd.1} parent=11 // pred_check_branch
        %461 = sbr.rel (%p459) target = $region24
      $region23: #{fwd.1} parent=11 // pred_region
        _
      $region24: #{fwd.1} parent=11 // pred_fallthru
        _
      // Predicated region
      $region25: #{fwd.1} parent=11 // pred_check
        %p462 = pneg %p160
      $region26: #{fwd.1} parent=11 // pred_check_branch
        %464 = sbr.rel (%p462) target = $region28
      $region27: #{fwd.1} parent=11 // pred_region
        _
      $region28: #{fwd.1} parent=11 // pred_fallthru
        _
      // Predicated region
      $region29: #{fwd.1} parent=11 // pred_check
        %p465 = pneg %p181
      $region30: #{fwd.1} parent=11 // pred_check_branch
        %467 = sbr.rel (%p465) target = $region32
      $region31: #{fwd.1} parent=11 // pred_region
        _
      $region32: #{fwd.1} parent=11 // pred_fallthru
        _
      // Predicated region
      $region33: #{fwd.1} parent=11 // pred_check
        %p468 = pneg %p202
      $region34: #{fwd.1} parent=11 // pred_check_branch
        %470 = sbr.rel (%p468) target = $region36
      $region35: #{fwd.1} parent=11 // pred_region
        _
      $region36: #{fwd.1} parent=11 // pred_fallthru
        _
      // Predicated region
      $region37: #{fwd.1} parent=11 // pred_check
        %p471 = pneg %p223
      $region38: #{fwd.1} parent=11 // pred_check_branch
        %473 = sbr.rel (%p471) target = $region40
      $region39: #{fwd.1} parent=11 // pred_region
        _
      $region40: #{fwd.1} parent=11 // pred_fallthru
        _
      // Predicated region
      $region41: #{fwd.1} parent=11 // pred_check
        %p474 = pneg %p244
      $region42: #{fwd.1} parent=11 // pred_check_branch
        %476 = sbr.rel (%p474) target = $region44
      $region43: #{fwd.1} parent=11 // pred_region
        _
      $region44: #{fwd.1} parent=11 // pred_fallthru
        _
      // Predicated region
      $region45: #{fwd.1} parent=11 // pred_check
        %p477 = pneg %p265
      $region46: #{fwd.1} parent=11 // pred_check_branch
        %479 = sbr.rel (%p477) target = $region48
      $region47: #{fwd.1} parent=11 // pred_region
        _
      $region48: #{fwd.1} parent=11 // pred_fallthru
        _
      // Predicated region
      $region49: #{fwd.1} parent=11 // pred_check
        %p480 = pneg %p286
      $region50: #{fwd.1} parent=11 // pred_check_branch
        %482 = sbr.rel (%p480) target = $region52
      $region51: #{fwd.1} parent=11 // pred_region
        _
      $region52: #{fwd.1} parent=11 // pred_fallthru
        _
      // Predicated region
      $region53: #{fwd.1} parent=11 // pred_check
        %p483 = pneg %p307
      $region54: #{fwd.1} parent=11 // pred_check_branch
        %485 = sbr.rel (%p483) target = $region56
      $region55: #{fwd.1} parent=11 // pred_region
        _
      $region56: #{fwd.1} parent=11 // pred_fallthru
        _
      // Predicated region
      $region57: #{fwd.1} parent=11 // pred_check
        %p486 = pneg %p328
      $region58: #{fwd.1} parent=11 // pred_check_branch
        %488 = sbr.rel (%p486) target = $region60
      $region59: #{fwd.1} parent=11 // pred_region
        _
      $region60: #{fwd.1} parent=11 // pred_fallthru
        _
      // Predicated region
      $region61: #{fwd.1} parent=11 // pred_check
        %p489 = pneg %p349
      $region62: #{fwd.1} parent=11 // pred_check_branch
        %491 = sbr.rel (%p489) target = $region64
      $region63: #{fwd.1} parent=11 // pred_region
        _
      $region64: #{fwd.1} parent=11 // pred_fallthru
        _
      // Predicated region
      $region65: #{fwd.1} parent=11 // pred_check
        %p492 = pneg %p370
      $region66: #{fwd.1} parent=11 // pred_check_branch
        %494 = sbr.rel (%p492) target = $region68
      $region67: #{fwd.1} parent=11 // pred_region
        _
      $region68: #{fwd.1} parent=11 // pred_fallthru
        _
      // Predicated region
      $region69: #{fwd.1} parent=11 // pred_check
        %p495 = pneg %p391
      $region70: #{fwd.1} parent=11 // pred_check_branch
        %497 = sbr.rel (%p495) target = $region72
      $region71: #{fwd.1} parent=11 // pred_region
        _
      $region72: #{fwd.1} parent=11 // pred_fallthru
        _
      // Predicated region
      $region73: #{fwd.1} parent=11 // pred_check
        %p498 = pneg %p412
      $region74: #{fwd.1} parent=11 // pred_check_branch
        %500 = sbr.rel (%p498) target = $region76
      $region75: #{fwd.1} parent=11 // pred_region
        _
      $region76: #{fwd.1} parent=11 // pred_fallthru
        _
    $region12: #{fwd.1} parent=5 // pred_fallthru
      _
    %p501 = scmp.lt.s32.totalorder %s24, 4
    // Predicated region
    $region77: #{fwd.1} parent=5 // pred_check
      %p502 = pneg %p501
    $region78: #{fwd.1} parent=5 // pred_check_branch
      %504 = sbr.rel (%p502) target = $region80
    $region79: #{fwd.1} parent=5 // pred_region
      // Predicated region
      $region81: #{fwd.1} parent=79 // pred_check
        %p505 = pneg %p44
      $region82: #{fwd.1} parent=79 // pred_check_branch
        %507 = sbr.rel (%p505) target = $region84
      $region83: #{fwd.1} parent=79 // pred_region
        %s508 = smul.u32 16, %s24
        %p509 = scmp.lt.s32.totalorder %s508, 63
        %s510 = scalar_select %p509, %s508, 63
        %s511 = smul.addr %s510, 8
        %s512 = scalar_lea.vmem %s0, %s511
        %s513 = smul.u32 16, %s24
      $region84: #{fwd.1} parent=79 // pred_fallthru
        _
      // Predicated region
      $region85: #{fwd.1} parent=79 // pred_check
        %p514 = pneg %p70
      $region86: #{fwd.1} parent=79 // pred_check_branch
        %516 = sbr.rel (%p514) target = $region88
      $region87: #{fwd.1} parent=79 // pred_region
        %s517 = smul.u32 16, %s24
        %p518 = scmp.lt.s32.totalorder %s517, 63
        %s519 = scalar_select %p518, %s517, 63
        %s520 = smul.addr %s519, 8
        %s521 = scalar_lea.vmem %s1, %s520
        %s522 = smul.u32 16, %s24
      $region88: #{fwd.1} parent=79 // pred_fallthru
        _
    $region80: #{fwd.1} parent=5 // pred_fallthru
      _
    %p523 = scmp.le.s32.totalorder 1, %s24
    %p524 = scmp.lt.s32.totalorder %s24, 5
    %p525 = pnand %p523, %p524
    %p526 = pneg %p525
    // Predicated region
    $region89: #{fwd.1} parent=5 // pred_check
      _
    $region90: #{fwd.1} parent=5 // pred_check_branch
      %528 = sbr.rel (%p525) target = $region92
    $region91: #{fwd.1} parent=5 // pred_region
      %s529 = ssub.s32 %s24, 1
      %s530 = smul.u32 16, %s29
      %p531 = scmp.lt.s32.totalorder %s530, 63
      %s532 = scalar_select %p531, %s530, 63
      %s533 = smul.addr %s532, 8
      %s534 = scalar_lea.vmem %s0, %s533
      %p535 = pneg %p50
      %p536 = pneg %p47
      %s537 = smul.u32 16, %s29
      %p538 = scmp.lt.s32.totalorder %s537, 63
      %s539 = scalar_select %p538, %s537, 63
      %s540 = smul.addr %s539, 8
      %s541 = scalar_lea.vmem %s1, %s540
      %p542 = pneg %p76
      %p543 = pneg %p73
      %p544 = pneg %p97
      %p545 = pneg %p94
      %p546 = pneg %p118
      %p547 = pneg %p115
      %p548 = pneg %p139
      %p549 = pneg %p136
      %p550 = pneg %p160
      %p551 = pneg %p157
      %p552 = pneg %p181
      %p553 = pneg %p178
      %p554 = pneg %p202
      %p555 = pneg %p199
      %p556 = pneg %p223
      %p557 = pneg %p220
      %p558 = pneg %p244
      %p559 = pneg %p241
      %p560 = pneg %p265
      %p561 = pneg %p262
      %p562 = pneg %p286
      %p563 = pneg %p283
      %p564 = pneg %p307
      %p565 = pneg %p304
      %p566 = pneg %p328
      %p567 = pneg %p325
      %p568 = pneg %p349
      %p569 = pneg %p346
      %p570 = pneg %p370
      %p571 = pneg %p367
      %p572 = pneg %p391
      %p573 = pneg %p388
      %p574 = pneg %p412
      %p575 = pneg %p409
      %p576 = pneg %p438
      %p577 = pneg %p435
      %p578 = scmp.lt.s32.totalorder %s29, 3
      %s579 = scalar_select %p578, %s29, 3
      %s580 = smul.addr %s579, 4
      %s581 = scalar_lea.vmem %s18, %s580
      %s582 = smul.u32 16, %s29
      %p583 = scmp.lt.s32.totalorder %s582, 63
      %s584 = scalar_select %p583, %s582, 63
      %s585 = smul.addr %s584, 8
      %s586 = scalar_lea.vmem %s0, %s585
      %s587 = smul.u32 16, %s29
      %s588 = smul.u32 16, %s29
      %p589 = scmp.lt.s32.totalorder %s588, 63
      %s590 = scalar_select %p589, %s588, 63
      %s591 = smul.addr %s590, 8
      %s592 = scalar_lea.vmem %s1, %s591
      %s593 = smul.u32 16, %s29
      %p594 = scmp.lt.s32.totalorder %s29, 3
      %s595 = scalar_select %p594, %s29, 3
      %s596 = smul.addr %s595, 4
      %s597 = scalar_lea.vmem %s18, %s596
      %v599 = vld [vmem:[%s586] sm:$0xff]
      %v600 = vld [vmem:[%s586 + $0x8] sm:$0xff]
      %v601 = vld [vmem:[%s586 + $0x10] sm:$0xff]
      %v602 = vld [vmem:[%s586 + $0x18] sm:$0xff]
      %v603 = vld [vmem:[%s586 + $0x20] sm:$0xff]
      %v604 = vld [vmem:[%s586 + $0x28] sm:$0xff]
      %v605 = vld [vmem:[%s586 + $0x30] sm:$0xff]
      %v606 = vld [vmem:[%s586 + $0x38] sm:$0xff]
      %v607 = vld [vmem:[%s586 + $0x40] sm:$0xff]
      %v608 = vld [vmem:[%s586 + $0x48] sm:$0xff]
      %v609 = vld [vmem:[%s586 + $0x50] sm:$0xff]
      %v610 = vld [vmem:[%s586 + $0x58] sm:$0xff]
      %v611 = vld [vmem:[%s586 + $0x60] sm:$0xff]
      %v612 = vld [vmem:[%s586 + $0x68] sm:$0xff]
      %v613 = vld [vmem:[%s586 + $0x70] sm:$0xff]
      %v614 = vld [vmem:[%s586 + $0x78] sm:$0xff]
      %v615 = vpack.c.bf16 %v600, %v599
      %v616 = vpack.c.bf16 %v602, %v601
      %v617 = vpack.c.bf16 %v604, %v603
      %v618 = vpack.c.bf16 %v606, %v605
      %v619 = vpack.c.bf16 %v608, %v607
      %v620 = vpack.c.bf16 %v610, %v609
      %v621 = vpack.c.bf16 %v612, %v611
      %v622 = vpack.c.bf16 %v614, %v613
      %v623 = vld [vmem:[%s2] sm:$0xf]
      %v624 = vld [vmem:[%s2 + $0x4] sm:$0xf]
      %v625 = vld [vmem:[%s2 + $0x8] sm:$0xf]
      %v626 = vld [vmem:[%s2 + $0xc] sm:$0xf]
      %v627 = vld [vmem:[%s3] sm:$0x1]
      %v629 = vlaneseq
      %v630 = vshrl.u32 %v629, 7
      %v631 = vsub.s32 0, %v630
      %v632 = vrot.slane %v627, %v631
      %v638 = vunpack.c.l.b16 %v623
      %v639 = vunpack.c.l.b16 %v624
      %v640 = vunpack.c.l.b16 %v625
      %v641 = vunpack.c.l.b16 %v626
      %v642 = vpack.c.b16 %v639, %v638
      %v643 = vpack.c.b16 %v641, %v640
      %vm646 = vcmask 261120
      %v648 = vsel %vm646, %v615, 0
      %v651 = vsel %vm646, %v616, 0
      %v654 = vsel %vm646, %v617, 0
      %v657 = vsel %vm646, %v618, 0
      %v660 = vsel %vm646, %v619, 0
      %v663 = vsel %vm646, %v620, 0
      %v666 = vsel %vm646, %v621, 0
      %v669 = vsel %vm646, %v622, 0
      %671 = vmatprep.subr.bf16.mxu0 0
      %672 = vmatpush1.bf16.msra.mxu0 %v642
      %673 = vmatprep.subr.bf16.mxu0 0
      %674 = vmatpush1.bf16.msra.mxu0 %v643
      %675 = vmatprep.subr.bf16.mxu0 0
      %676 = vmatpush1.bf16.msra.mxu0 0
      %677 = vmatprep.subr.bf16.mxu0 0
      %678 = vmatpush1.bf16.msra.mxu0 0
      %679 = vmatprep.subr.bf16.mxu0 0
      %680 = vmatpush1.bf16.msra.mxu0 0
      %681 = vmatprep.subr.bf16.mxu0 0
      %682 = vmatpush1.bf16.msra.mxu0 0
      %683 = vmatprep.subr.bf16.mxu0 0
      %684 = vmatpush1.bf16.msra.mxu0 0
      %685 = vmatprep.subr.bf16.mxu0 0
      %686 = vmatpush1.bf16.msra.mxu0 0
      %687 = vmatprep.subr.bf16.mxu0 0
      %688 = vmatpush1.bf16.msra.mxu0 0
      %689 = vmatprep.subr.bf16.mxu0 0
      %690 = vmatpush1.bf16.msra.mxu0 0
      %691 = vmatprep.subr.bf16.mxu0 0
      %692 = vmatpush1.bf16.msra.mxu0 0
      %693 = vmatprep.subr.bf16.mxu0 0
      %694 = vmatpush1.bf16.msra.mxu0 0
      %695 = vmatprep.subr.bf16.mxu0 0
      %696 = vmatpush1.bf16.msra.mxu0 0
      %697 = vmatprep.subr.bf16.mxu0 0
      %698 = vmatpush1.bf16.msra.mxu0 0
      %699 = vmatprep.subr.bf16.mxu0 0
      %700 = vmatpush1.bf16.msra.mxu0 0
      %701 = vmatprep.subr.bf16.mxu0 0
      %702 = vmatpush1.bf16.msra.mxu0 0
      %703 = vmatprep.mubr.bf16.mxu0 0
      %704 = vmatmul.mubr.bf16.gmra.mrb[0].mxu0 %v648
      %v705 = vpop.f32.mrb[0].mxu0
      %v706 = vadd.f32 %v632, %v705
      %v707 = vpop.f32.mrb[0].mxu0
      %v708 = vpop.f32.mrb[0].mxu0
      %v709 = vadd.f32 %v632, %v708
      %v710 = vpop.f32.mrb[0].mxu0
      %711 = vmatprep.mubr.bf16.mxu0 0
      %712 = vmatmul.mubr.bf16.gmra.mrb[0].mxu0 %v651
      %v713 = vpop.f32.mrb[0].mxu0
      %v714 = vadd.f32 %v632, %v713
      %v715 = vpop.f32.mrb[0].mxu0
      %v716 = vpop.f32.mrb[0].mxu0
      %v717 = vadd.f32 %v632, %v716
      %v718 = vpop.f32.mrb[0].mxu0
      %719 = vmatprep.mubr.bf16.mxu0 0
      %720 = vmatmul.mubr.bf16.gmra.mrb[0].mxu0 %v654
      %v721 = vpop.f32.mrb[0].mxu0
      %v722 = vadd.f32 %v632, %v721
      %v723 = vpop.f32.mrb[0].mxu0
      %v724 = vpop.f32.mrb[0].mxu0
      %v725 = vadd.f32 %v632, %v724
      %v726 = vpop.f32.mrb[0].mxu0
      %727 = vmatprep.mubr.bf16.mxu0 0
      %728 = vmatmul.mubr.bf16.gmra.mrb[0].mxu0 %v657
      %v729 = vpop.f32.mrb[0].mxu0
      %v730 = vadd.f32 %v632, %v729
      %v731 = vpop.f32.mrb[0].mxu0
      %v732 = vpop.f32.mrb[0].mxu0
      %v733 = vadd.f32 %v632, %v732
      %v734 = vpop.f32.mrb[0].mxu0
      %735 = vmatprep.mubr.bf16.mxu0 0
      %736 = vmatmul.mubr.bf16.gmra.mrb[0].mxu0 %v660
      %v737 = vpop.f32.mrb[0].mxu0
      %v738 = vadd.f32 %v632, %v737
      %v739 = vpop.f32.mrb[0].mxu0
      %v740 = vpop.f32.mrb[0].mxu0
      %v741 = vadd.f32 %v632, %v740
      %v742 = vpop.f32.mrb[0].mxu0
      %743 = vmatprep.mubr.bf16.mxu0 0
      %744 = vmatmul.mubr.bf16.gmra.mrb[0].mxu0 %v663
      %v745 = vpop.f32.mrb[0].mxu0
      %v746 = vadd.f32 %v632, %v745
      %v747 = vpop.f32.mrb[0].mxu0
      %v748 = vpop.f32.mrb[0].mxu0
      %v749 = vadd.f32 %v632, %v748
      %v750 = vpop.f32.mrb[0].mxu0
      %751 = vmatprep.mubr.bf16.mxu0 0
      %752 = vmatmul.mubr.bf16.gmra.mrb[0].mxu0 %v666
      %v753 = vpop.f32.mrb[0].mxu0
      %v754 = vadd.f32 %v632, %v753
      %v755 = vpop.f32.mrb[0].mxu0
      %v756 = vpop.f32.mrb[0].mxu0
      %v757 = vadd.f32 %v632, %v756
      %v758 = vpop.f32.mrb[0].mxu0
      %759 = vmatprep.mubr.bf16.mxu0 0
      %760 = vmatmul.mubr.bf16.gmra.mrb[0].mxu0 %v669
      %v761 = vpop.f32.mrb[0].mxu0
      %v762 = vadd.f32 %v632, %v761
      %v763 = vpop.f32.mrb[0].mxu0
      %v764 = vpop.f32.mrb[0].mxu0
      %v765 = vadd.f32 %v632, %v764
      %v766 = vpop.f32.mrb[0].mxu0
      %767 = vdwg.mxu0
      %v768 = vmax.f32 %v706, 0.0
      %v769 = vmax.f32 %v709, 0.0
      %v770 = vmax.f32 %v714, 0.0
      %v771 = vmax.f32 %v717, 0.0
      %v772 = vmax.f32 %v722, 0.0
      %v773 = vmax.f32 %v725, 0.0
      %v774 = vmax.f32 %v730, 0.0
      %v775 = vmax.f32 %v733, 0.0
      %v776 = vmax.f32 %v738, 0.0
      %v777 = vmax.f32 %v741, 0.0
      %v778 = vmax.f32 %v746, 0.0
      %v779 = vmax.f32 %v749, 0.0
      %v780 = vmax.f32 %v754, 0.0
      %v781 = vmax.f32 %v757, 0.0
      %v782 = vmax.f32 %v762, 0.0
      %v783 = vmax.f32 %v765, 0.0
      %v784 = vpack.c.bf16 %v769, %v768
      %v785 = vpack.c.bf16 %v771, %v770
      %v786 = vpack.c.bf16 %v773, %v772
      %v787 = vpack.c.bf16 %v775, %v774
      %v788 = vpack.c.bf16 %v777, %v776
      %v789 = vpack.c.bf16 %v779, %v778
      %v790 = vpack.c.bf16 %v781, %v780
      %v791 = vpack.c.bf16 %v783, %v782
      %v792 = vld [vmem:[%s4] sm:$0xf]
      %v793 = vld [vmem:[%s4 + $0x4] sm:$0xf]
      %v794 = vld [vmem:[%s4 + $0x8] sm:$0xf]
      %v795 = vld [vmem:[%s4 + $0xc] sm:$0xf]
      %v796 = vld [vmem:[%s4 + $0x10] sm:$0xf]
      %v797 = vld [vmem:[%s4 + $0x14] sm:$0xf]
      %v798 = vld [vmem:[%s4 + $0x18] sm:$0xf]
      %v799 = vld [vmem:[%s4 + $0x1c] sm:$0xf]
      %v800 = vld [vmem:[%s4 + $0x20] sm:$0xf]
      %v801 = vld [vmem:[%s4 + $0x24] sm:$0xf]
      %v802 = vld [vmem:[%s4 + $0x28] sm:$0xf]
      %v803 = vld [vmem:[%s4 + $0x2c] sm:$0xf]
      %v804 = vld [vmem:[%s4 + $0x30] sm:$0xf]
      %v805 = vld [vmem:[%s4 + $0x34] sm:$0xf]
      %v806 = vld [vmem:[%s4 + $0x38] sm:$0xf]
      %v807 = vld [vmem:[%s4 + $0x3c] sm:$0xf]
      %v808 = vld [vmem:[%s5] sm:$0x1]
      %v810 = vlaneseq
      %v811 = vshrl.u32 %v810, 7
      %v812 = vsub.s32 0, %v811
      %v813 = vrot.slane %v808, %v812
      %v831 = vunpack.c.l.b16 %v792
      %v832 = vunpack.c.l.b16 %v793
      %v833 = vunpack.c.l.b16 %v794
      %v834 = vunpack.c.l.b16 %v795
      %v835 = vunpack.c.l.b16 %v796
      %v836 = vunpack.c.l.b16 %v797
      %v837 = vunpack.c.l.b16 %v798
      %v838 = vunpack.c.l.b16 %v799
      %v839 = vunpack.c.l.b16 %v800
      %v840 = vunpack.c.l.b16 %v801
      %v841 = vunpack.c.l.b16 %v802
      %v842 = vunpack.c.l.b16 %v803
      %v843 = vunpack.c.l.b16 %v804
      %v844 = vunpack.c.l.b16 %v805
      %v845 = vunpack.c.l.b16 %v806
      %v846 = vunpack.c.l.b16 %v807
      %v847 = vpack.c.b16 %v832, %v831
      %v848 = vpack.c.b16 %v834, %v833
      %v849 = vpack.c.b16 %v836, %v835
      %v850 = vpack.c.b16 %v838, %v837
      %v851 = vpack.c.b16 %v840, %v839
      %v852 = vpack.c.b16 %v842, %v841
      %v853 = vpack.c.b16 %v844, %v843
      %v854 = vpack.c.b16 %v846, %v845
      %863 = vmatprep.subr.bf16.mxu0 0
      %864 = vmatpush1.bf16.msra.mxu0 %v847
      %865 = vmatprep.subr.bf16.mxu0 0
      %866 = vmatpush1.bf16.msra.mxu0 %v848
      %867 = vmatprep.subr.bf16.mxu0 0
      %868 = vmatpush1.bf16.msra.mxu0 %v849
      %869 = vmatprep.subr.bf16.mxu0 0
      %870 = vmatpush1.bf16.msra.mxu0 %v850
      %871 = vmatprep.subr.bf16.mxu0 0
      %872 = vmatpush1.bf16.msra.mxu0 %v851
      %873 = vmatprep.subr.bf16.mxu0 0
      %874 = vmatpush1.bf16.msra.mxu0 %v852
      %875 = vmatprep.subr.bf16.mxu0 0
      %876 = vmatpush1.bf16.msra.mxu0 %v853
      %877 = vmatprep.subr.bf16.mxu0 0
      %878 = vmatpush1.bf16.msra.mxu0 %v854
      %879 = vmatprep.subr.bf16.mxu0 0
      %880 = vmatpush1.bf16.msra.mxu0 0
      %881 = vmatprep.subr.bf16.mxu0 0
      %882 = vmatpush1.bf16.msra.mxu0 0
      %883 = vmatprep.subr.bf16.mxu0 0
      %884 = vmatpush1.bf16.msra.mxu0 0
      %885 = vmatprep.subr.bf16.mxu0 0
      %886 = vmatpush1.bf16.msra.mxu0 0
      %887 = vmatprep.subr.bf16.mxu0 0
      %888 = vmatpush1.bf16.msra.mxu0 0
      %889 = vmatprep.subr.bf16.mxu0 0
      %890 = vmatpush1.bf16.msra.mxu0 0
      %891 = vmatprep.subr.bf16.mxu0 0
      %892 = vmatpush1.bf16.msra.mxu0 0
      %893 = vmatprep.subr.bf16.mxu0 0
      %894 = vmatpush1.bf16.msra.mxu0 0
      %895 = vmatprep.mubr.bf16.mxu0 0
      %896 = vmatmul.mubr.bf16.gmra.mrb[0].mxu0 %v784
      %v897 = vpop.f32.mrb[0].mxu0
      %v898 = vadd.f32 %v813, %v897
      %v899 = vpop.f32.mrb[0].mxu0
      %v900 = vpop.f32.mrb[0].mxu0
      %v901 = vadd.f32 %v813, %v900
      %v902 = vpop.f32.mrb[0].mxu0
      %903 = vmatprep.mubr.bf16.mxu0 0
      %904 = vmatmul.mubr.bf16.gmra.mrb[0].mxu0 %v785
      %v905 = vpop.f32.mrb[0].mxu0
      %v906 = vadd.f32 %v813, %v905
      %v907 = vpop.f32.mrb[0].mxu0
      %v908 = vpop.f32.mrb[0].mxu0
      %v909 = vadd.f32 %v813, %v908
      %v910 = vpop.f32.mrb[0].mxu0
      %911 = vmatprep.mubr.bf16.mxu0 0
      %912 = vmatmul.mubr.bf16.gmra.mrb[0].mxu0 %v786
      %v913 = vpop.f32.mrb[0].mxu0
      %v914 = vadd.f32 %v813, %v913
      %v915 = vpop.f32.mrb[0].mxu0
      %v916 = vpop.f32.mrb[0].mxu0
      %v917 = vadd.f32 %v813, %v916
      %v918 = vpop.f32.mrb[0].mxu0
      %919 = vmatprep.mubr.bf16.mxu0 0
      %920 = vmatmul.mubr.bf16.gmra.mrb[0].mxu0 %v787
      %v921 = vpop.f32.mrb[0].mxu0
      %v922 = vadd.f32 %v813, %v921
      %v923 = vpop.f32.mrb[0].mxu0
      %v924 = vpop.f32.mrb[0].mxu0
      %v925 = vadd.f32 %v813, %v924
      %v926 = vpop.f32.mrb[0].mxu0
      %927 = vmatprep.mubr.bf16.mxu0 0
      %928 = vmatmul.mubr.bf16.gmra.mrb[0].mxu0 %v788
      %v929 = vpop.f32.mrb[0].mxu0
      %v930 = vadd.f32 %v813, %v929
      %v931 = vpop.f32.mrb[0].mxu0
      %v932 = vpop.f32.mrb[0].mxu0
      %v933 = vadd.f32 %v813, %v932
      %v934 = vpop.f32.mrb[0].mxu0
      %935 = vmatprep.mubr.bf16.mxu0 0
      %936 = vmatmul.mubr.bf16.gmra.mrb[0].mxu0 %v789
      %v937 = vpop.f32.mrb[0].mxu0
      %v938 = vadd.f32 %v813, %v937
      %v939 = vpop.f32.mrb[0].mxu0
      %v940 = vpop.f32.mrb[0].mxu0
      %v941 = vadd.f32 %v813, %v940
      %v942 = vpop.f32.mrb[0].mxu0
      %943 = vmatprep.mubr.bf16.mxu0 0
      %944 = vmatmul.mubr.bf16.gmra.mrb[0].mxu0 %v790
      %v945 = vpop.f32.mrb[0].mxu0
      %v946 = vadd.f32 %v813, %v945
      %v947 = vpop.f32.mrb[0].mxu0
      %v948 = vpop.f32.mrb[0].mxu0
      %v949 = vadd.f32 %v813, %v948
      %v950 = vpop.f32.mrb[0].mxu0
      %951 = vmatprep.mubr.bf16.mxu0 0
      %952 = vmatmul.mubr.bf16.gmra.mrb[0].mxu0 %v791
      %v953 = vpop.f32.mrb[0].mxu0
      %v954 = vadd.f32 %v813, %v953
      %v955 = vpop.f32.mrb[0].mxu0
      %v956 = vpop.f32.mrb[0].mxu0
      %v957 = vadd.f32 %v813, %v956
      %v958 = vpop.f32.mrb[0].mxu0
      %959 = vdwg.mxu0
      %v960 = vmax.f32 %v898, 0.0
      %v961 = vmax.f32 %v901, 0.0
      %v962 = vmax.f32 %v906, 0.0
      %v963 = vmax.f32 %v909, 0.0
      %v964 = vmax.f32 %v914, 0.0
      %v965 = vmax.f32 %v917, 0.0
      %v966 = vmax.f32 %v922, 0.0
      %v967 = vmax.f32 %v925, 0.0
      %v968 = vmax.f32 %v930, 0.0
      %v969 = vmax.f32 %v933, 0.0
      %v970 = vmax.f32 %v938, 0.0
      %v971 = vmax.f32 %v941, 0.0
      %v972 = vmax.f32 %v946, 0.0
      %v973 = vmax.f32 %v949, 0.0
      %v974 = vmax.f32 %v954, 0.0
      %v975 = vmax.f32 %v957, 0.0
      %v976 = vpack.c.bf16 %v961, %v960
      %v977 = vpack.c.bf16 %v963, %v962
      %v978 = vpack.c.bf16 %v965, %v964
      %v979 = vpack.c.bf16 %v967, %v966
      %v980 = vpack.c.bf16 %v969, %v968
      %v981 = vpack.c.bf16 %v971, %v970
      %v982 = vpack.c.bf16 %v973, %v972
      %v983 = vpack.c.bf16 %v975, %v974
      %v984 = vld [vmem:[%s6] sm:$0xf]
      %v985 = vld [vmem:[%s6 + $0x4] sm:$0xf]
      %v986 = vld [vmem:[%s6 + $0x8] sm:$0xf]
      %v987 = vld [vmem:[%s6 + $0xc] sm:$0xf]
      %v988 = vld [vmem:[%s6 + $0x10] sm:$0xf]
      %v989 = vld [vmem:[%s6 + $0x14] sm:$0xf]
      %v990 = vld [vmem:[%s6 + $0x18] sm:$0xf]
      %v991 = vld [vmem:[%s6 + $0x1c] sm:$0xf]
      %v992 = vld [vmem:[%s6 + $0x20] sm:$0xf]
      %v993 = vld [vmem:[%s6 + $0x24] sm:$0xf]
      %v994 = vld [vmem:[%s6 + $0x28] sm:$0xf]
      %v995 = vld [vmem:[%s6 + $0x2c] sm:$0xf]
      %v996 = vld [vmem:[%s6 + $0x30] sm:$0xf]
      %v997 = vld [vmem:[%s6 + $0x34] sm:$0xf]
      %v998 = vld [vmem:[%s6 + $0x38] sm:$0xf]
      %v999 = vld [vmem:[%s6 + $0x3c] sm:$0xf]
      %v1000 = vld [vmem:[%s7] sm:$0x1]
      %v1002 = vlaneseq
      %v1003 = vshrl.u32 %v1002, 7
      %v1004 = vsub.s32 0, %v1003
      %v1005 = vrot.slane %v1000, %v1004
      %v1023 = vunpack.c.l.b16 %v984
      %v1024 = vunpack.c.l.b16 %v985
      %v1025 = vunpack.c.l.b16 %v986
      %v1026 = vunpack.c.l.b16 %v987
      %v1027 = vunpack.c.l.b16 %v988
      %v1028 = vunpack.c.l.b16 %v989
      %v1029 = vunpack.c.l.b16 %v990
      %v1030 = vunpack.c.l.b16 %v991
      %v1031 = vunpack.c.l.b16 %v992
      %v1032 = vunpack.c.l.b16 %v993
      %v1033 = vunpack.c.l.b16 %v994
      %v1034 = vunpack.c.l.b16 %v995
      %v1035 = vunpack.c.l.b16 %v996
      %v1036 = vunpack.c.l.b16 %v997
      %v1037 = vunpack.c.l.b16 %v998
      %v1038 = vunpack.c.l.b16 %v999
      %v1039 = vpack.c.b16 %v1024, %v1023
      %v1040 = vpack.c.b16 %v1026, %v1025
      %v1041 = vpack.c.b16 %v1028, %v1027
      %v1042 = vpack.c.b16 %v1030, %v1029
      %v1043 = vpack.c.b16 %v1032, %v1031
      %v1044 = vpack.c.b16 %v1034, %v1033
      %v1045 = vpack.c.b16 %v1036, %v1035
      %v1046 = vpack.c.b16 %v1038, %v1037
      %1055 = vmatprep.subr.bf16.mxu0 0
      %1056 = vmatpush1.bf16.msra.mxu0 %v1039
      %1057 = vmatprep.subr.bf16.mxu0 0
      %1058 = vmatpush1.bf16.msra.mxu0 %v1040
      %1059 = vmatprep.subr.bf16.mxu0 0
      %1060 = vmatpush1.bf16.msra.mxu0 %v1041
      %1061 = vmatprep.subr.bf16.mxu0 0
      %1062 = vmatpush1.bf16.msra.mxu0 %v1042
      %1063 = vmatprep.subr.bf16.mxu0 0
      %1064 = vmatpush1.bf16.msra.mxu0 %v1043
      %1065 = vmatprep.subr.bf16.mxu0 0
      %1066 = vmatpush1.bf16.msra.mxu0 %v1044
      %1067 = vmatprep.subr.bf16.mxu0 0
      %1068 = vmatpush1.bf16.msra.mxu0 %v1045
      %1069 = vmatprep.subr.bf16.mxu0 0
      %1070 = vmatpush1.bf16.msra.mxu0 %v1046
      %1071 = vmatprep.subr.bf16.mxu0 0
      %1072 = vmatpush1.bf16.msra.mxu0 0
      %1073 = vmatprep.subr.bf16.mxu0 0
      %1074 = vmatpush1.bf16.msra.mxu0 0
      %1075 = vmatprep.subr.bf16.mxu0 0
      %1076 = vmatpush1.bf16.msra.mxu0 0
      %1077 = vmatprep.subr.bf16.mxu0 0
      %1078 = vmatpush1.bf16.msra.mxu0 0
      %1079 = vmatprep.subr.bf16.mxu0 0
      %1080 = vmatpush1.bf16.msra.mxu0 0
      %1081 = vmatprep.subr.bf16.mxu0 0
      %1082 = vmatpush1.bf16.msra.mxu0 0
      %1083 = vmatprep.subr.bf16.mxu0 0
      %1084 = vmatpush1.bf16.msra.mxu0 0
      %1085 = vmatprep.subr.bf16.mxu0 0
      %1086 = vmatpush1.bf16.msra.mxu0 0
      %1087 = vmatprep.mubr.bf16.mxu0 0
      %1088 = vmatmul.mubr.bf16.gmra.mrb[0].mxu0 %v976
      %v1089 = vpop.f32.mrb[0].mxu0
      %v1090 = vadd.f32 %v1005, %v1089
      %v1091 = vpop.f32.mrb[0].mxu0
      %v1092 = vpop.f32.mrb[0].mxu0
      %v1093 = vadd.f32 %v1005, %v1092
      %v1094 = vpop.f32.mrb[0].mxu0
      %1095 = vmatprep.mubr.bf16.mxu0 0
      %1096 = vmatmul.mubr.bf16.gmra.mrb[0].mxu0 %v977
      %v1097 = vpop.f32.mrb[0].mxu0
      %v1098 = vadd.f32 %v1005, %v1097
      %v1099 = vpop.f32.mrb[0].mxu0
      %v1100 = vpop.f32.mrb[0].mxu0
      %v1101 = vadd.f32 %v1005, %v1100
      %v1102 = vpop.f32.mrb[0].mxu0
      %1103 = vmatprep.mubr.bf16.mxu0 0
      %1104 = vmatmul.mubr.bf16.gmra.mrb[0].mxu0 %v978
      %v1105 = vpop.f32.mrb[0].mxu0
      %v1106 = vadd.f32 %v1005, %v1105
      %v1107 = vpop.f32.mrb[0].mxu0
      %v1108 = vpop.f32.mrb[0].mxu0
      %v1109 = vadd.f32 %v1005, %v1108
      %v1110 = vpop.f32.mrb[0].mxu0
      %1111 = vmatprep.mubr.bf16.mxu0 0
      %1112 = vmatmul.mubr.bf16.gmra.mrb[0].mxu0 %v979
      %v1113 = vpop.f32.mrb[0].mxu0
      %v1114 = vadd.f32 %v1005, %v1113
      %v1115 = vpop.f32.mrb[0].mxu0
      %v1116 = vpop.f32.mrb[0].mxu0
      %v1117 = vadd.f32 %v1005, %v1116
      %v1118 = vpop.f32.mrb[0].mxu0
      %1119 = vmatprep.mubr.bf16.mxu0 0
      %1120 = vmatmul.mubr.bf16.gmra.mrb[0].mxu0 %v980
      %v1121 = vpop.f32.mrb[0].mxu0
      %v1122 = vadd.f32 %v1005, %v1121
      %v1123 = vpop.f32.mrb[0].mxu0
      %v1124 = vpop.f32.mrb[0].mxu0
      %v1125 = vadd.f32 %v1005, %v1124
      %v1126 = vpop.f32.mrb[0].mxu0
      %1127 = vmatprep.mubr.bf16.mxu0 0
      %1128 = vmatmul.mubr.bf16.gmra.mrb[0].mxu0 %v981
      %v1129 = vpop.f32.mrb[0].mxu0
      %v1130 = vadd.f32 %v1005, %v1129
      %v1131 = vpop.f32.mrb[0].mxu0
      %v1132 = vpop.f32.mrb[0].mxu0
      %v1133 = vadd.f32 %v1005, %v1132
      %v1134 = vpop.f32.mrb[0].mxu0
      %1135 = vmatprep.mubr.bf16.mxu0 0
      %1136 = vmatmul.mubr.bf16.gmra.mrb[0].mxu0 %v982
      %v1137 = vpop.f32.mrb[0].mxu0
      %v1138 = vadd.f32 %v1005, %v1137
      %v1139 = vpop.f32.mrb[0].mxu0
      %v1140 = vpop.f32.mrb[0].mxu0
      %v1141 = vadd.f32 %v1005, %v1140
      %v1142 = vpop.f32.mrb[0].mxu0
      %1143 = vmatprep.mubr.bf16.mxu0 0
      %1144 = vmatmul.mubr.bf16.gmra.mrb[0].mxu0 %v983
      %v1145 = vpop.f32.mrb[0].mxu0
      %v1146 = vadd.f32 %v1005, %v1145
      %v1147 = vpop.f32.mrb[0].mxu0
      %v1148 = vpop.f32.mrb[0].mxu0
      %v1149 = vadd.f32 %v1005, %v1148
      %v1150 = vpop.f32.mrb[0].mxu0
      %1151 = vdwg.mxu0
      %v1152 = vmax.f32 %v1090, 0.0
      %v1153 = vmax.f32 %v1093, 0.0
      %v1154 = vmax.f32 %v1098, 0.0
      %v1155 = vmax.f32 %v1101, 0.0
      %v1156 = vmax.f32 %v1106, 0.0
      %v1157 = vmax.f32 %v1109, 0.0
      %v1158 = vmax.f32 %v1114, 0.0
      %v1159 = vmax.f32 %v1117, 0.0
      %v1160 = vmax.f32 %v1122, 0.0
      %v1161 = vmax.f32 %v1125, 0.0
      %v1162 = vmax.f32 %v1130, 0.0
      %v1163 = vmax.f32 %v1133, 0.0
      %v1164 = vmax.f32 %v1138, 0.0
      %v1165 = vmax.f32 %v1141, 0.0
      %v1166 = vmax.f32 %v1146, 0.0
      %v1167 = vmax.f32 %v1149, 0.0
      %v1168 = vpack.c.bf16 %v1153, %v1152
      %v1169 = vpack.c.bf16 %v1155, %v1154
      %v1170 = vpack.c.bf16 %v1157, %v1156
      %v1171 = vpack.c.bf16 %v1159, %v1158
      %v1172 = vpack.c.bf16 %v1161, %v1160
      %v1173 = vpack.c.bf16 %v1163, %v1162
      %v1174 = vpack.c.bf16 %v1165, %v1164
      %v1175 = vpack.c.bf16 %v1167, %v1166
      %v1176 = vld [vmem:[%s8] sm:$0xf]
      %v1177 = vld [vmem:[%s8 + $0x4] sm:$0xf]
      %v1178 = vld [vmem:[%s8 + $0x8] sm:$0xf]
      %v1179 = vld [vmem:[%s8 + $0xc] sm:$0xf]
      %v1180 = vld [vmem:[%s8 + $0x10] sm:$0xf]
      %v1181 = vld [vmem:[%s8 + $0x14] sm:$0xf]
      %v1182 = vld [vmem:[%s8 + $0x18] sm:$0xf]
      %v1183 = vld [vmem:[%s8 + $0x1c] sm:$0xf]
      %v1184 = vld [vmem:[%s8 + $0x20] sm:$0xf]
      %v1185 = vld [vmem:[%s8 + $0x24] sm:$0xf]
      %v1186 = vld [vmem:[%s8 + $0x28] sm:$0xf]
      %v1187 = vld [vmem:[%s8 + $0x2c] sm:$0xf]
      %v1188 = vld [vmem:[%s8 + $0x30] sm:$0xf]
      %v1189 = vld [vmem:[%s8 + $0x34] sm:$0xf]
      %v1190 = vld [vmem:[%s8 + $0x38] sm:$0xf]
      %v1191 = vld [vmem:[%s8 + $0x3c] sm:$0xf]
      %v1192 = vld [vmem:[%s9] sm:$0x1]
      %v1194 = vlaneseq
      %v1195 = vshrl.u32 %v1194, 7
      %v1196 = vsub.s32 0, %v1195
      %v1197 = vrot.slane %v1192, %v1196
      %v1215 = vunpack.c.l.b16 %v1176
      %v1216 = vunpack.c.l.b16 %v1177
      %v1217 = vunpack.c.l.b16 %v1178
      %v1218 = vunpack.c.l.b16 %v1179
      %v1219 = vunpack.c.l.b16 %v1180
      %v1220 = vunpack.c.l.b16 %v1181
      %v1221 = vunpack.c.l.b16 %v1182
      %v1222 = vunpack.c.l.b16 %v1183
      %v1223 = vunpack.c.l.b16 %v1184
      %v1224 = vunpack.c.l.b16 %v1185
      %v1225 = vunpack.c.l.b16 %v1186
      %v1226 = vunpack.c.l.b16 %v1187
      %v1227 = vunpack.c.l.b16 %v1188
      %v1228 = vunpack.c.l.b16 %v1189
      %v1229 = vunpack.c.l.b16 %v1190
      %v1230 = vunpack.c.l.b16 %v1191
      %v1231 = vpack.c.b16 %v1216, %v1215
      %v1232 = vpack.c.b16 %v1218, %v1217
      %v1233 = vpack.c.b16 %v1220, %v1219
      %v1234 = vpack.c.b16 %v1222, %v1221
      %v1235 = vpack.c.b16 %v1224, %v1223
      %v1236 = vpack.c.b16 %v1226, %v1225
      %v1237 = vpack.c.b16 %v1228, %v1227
      %v1238 = vpack.c.b16 %v1230, %v1229
      %1247 = vmatprep.subr.bf16.mxu0 0
      %1248 = vmatpush1.bf16.msra.mxu0 %v1231
      %1249 = vmatprep.subr.bf16.mxu0 0
      %1250 = vmatpush1.bf16.msra.mxu0 %v1232
      %1251 = vmatprep.subr.bf16.mxu0 0
      %1252 = vmatpush1.bf16.msra.mxu0 %v1233
      %1253 = vmatprep.subr.bf16.mxu0 0
      %1254 = vmatpush1.bf16.msra.mxu0 %v1234
      %1255 = vmatprep.subr.bf16.mxu0 0
      %1256 = vmatpush1.bf16.msra.mxu0 %v1235
      %1257 = vmatprep.subr.bf16.mxu0 0
      %1258 = vmatpush1.bf16.msra.mxu0 %v1236
      %1259 = vmatprep.subr.bf16.mxu0 0
      %1260 = vmatpush1.bf16.msra.mxu0 %v1237
      %1261 = vmatprep.subr.bf16.mxu0 0
      %1262 = vmatpush1.bf16.msra.mxu0 %v1238
      %1263 = vmatprep.subr.bf16.mxu0 0
      %1264 = vmatpush1.bf16.msra.mxu0 0
      %1265 = vmatprep.subr.bf16.mxu0 0
      %1266 = vmatpush1.bf16.msra.mxu0 0
      %1267 = vmatprep.subr.bf16.mxu0 0
      %1268 = vmatpush1.bf16.msra.mxu0 0
      %1269 = vmatprep.subr.bf16.mxu0 0
      %1270 = vmatpush1.bf16.msra.mxu0 0
      %1271 = vmatprep.subr.bf16.mxu0 0
      %1272 = vmatpush1.bf16.msra.mxu0 0
      %1273 = vmatprep.subr.bf16.mxu0 0
      %1274 = vmatpush1.bf16.msra.mxu0 0
      %1275 = vmatprep.subr.bf16.mxu0 0
      %1276 = vmatpush1.bf16.msra.mxu0 0
      %1277 = vmatprep.subr.bf16.mxu0 0
      %1278 = vmatpush1.bf16.msra.mxu0 0
      %1279 = vmatprep.mubr.bf16.mxu0 0
      %1280 = vmatmul.mubr.bf16.gmra.mrb[0].mxu0 %v1168
      %v1281 = vpop.f32.mrb[0].mxu0
      %v1282 = vadd.f32 %v1197, %v1281
      %v1283 = vpop.f32.mrb[0].mxu0
      %v1284 = vpop.f32.mrb[0].mxu0
      %v1285 = vadd.f32 %v1197, %v1284
      %v1286 = vpop.f32.mrb[0].mxu0
      %1287 = vmatprep.mubr.bf16.mxu0 0
      %1288 = vmatmul.mubr.bf16.gmra.mrb[0].mxu0 %v1169
      %v1289 = vpop.f32.mrb[0].mxu0
      %v1290 = vadd.f32 %v1197, %v1289
      %v1291 = vpop.f32.mrb[0].mxu0
      %v1292 = vpop.f32.mrb[0].mxu0
      %v1293 = vadd.f32 %v1197, %v1292
      %v1294 = vpop.f32.mrb[0].mxu0
      %1295 = vmatprep.mubr.bf16.mxu0 0
      %1296 = vmatmul.mubr.bf16.gmra.mrb[0].mxu0 %v1170
      %v1297 = vpop.f32.mrb[0].mxu0
      %v1298 = vadd.f32 %v1197, %v1297
      %v1299 = vpop.f32.mrb[0].mxu0
      %v1300 = vpop.f32.mrb[0].mxu0
      %v1301 = vadd.f32 %v1197, %v1300
      %v1302 = vpop.f32.mrb[0].mxu0
      %1303 = vmatprep.mubr.bf16.mxu0 0
      %1304 = vmatmul.mubr.bf16.gmra.mrb[0].mxu0 %v1171
      %v1305 = vpop.f32.mrb[0].mxu0
      %v1306 = vadd.f32 %v1197, %v1305
      %v1307 = vpop.f32.mrb[0].mxu0
      %v1308 = vpop.f32.mrb[0].mxu0
      %v1309 = vadd.f32 %v1197, %v1308
      %v1310 = vpop.f32.mrb[0].mxu0
      %1311 = vmatprep.mubr.bf16.mxu0 0
      %1312 = vmatmul.mubr.bf16.gmra.mrb[0].mxu0 %v1172
      %v1313 = vpop.f32.mrb[0].mxu0
      %v1314 = vadd.f32 %v1197, %v1313
      %v1315 = vpop.f32.mrb[0].mxu0
      %v1316 = vpop.f32.mrb[0].mxu0
      %v1317 = vadd.f32 %v1197, %v1316
      %v1318 = vpop.f32.mrb[0].mxu0
      %1319 = vmatprep.mubr.bf16.mxu0 0
      %1320 = vmatmul.mubr.bf16.gmra.mrb[0].mxu0 %v1173
      %v1321 = vpop.f32.mrb[0].mxu0
      %v1322 = vadd.f32 %v1197, %v1321
      %v1323 = vpop.f32.mrb[0].mxu0
      %v1324 = vpop.f32.mrb[0].mxu0
      %v1325 = vadd.f32 %v1197, %v1324
      %v1326 = vpop.f32.mrb[0].mxu0
      %1327 = vmatprep.mubr.bf16.mxu0 0
      %1328 = vmatmul.mubr.bf16.gmra.mrb[0].mxu0 %v1174
      %v1329 = vpop.f32.mrb[0].mxu0
      %v1330 = vadd.f32 %v1197, %v1329
      %v1331 = vpop.f32.mrb[0].mxu0
      %v1332 = vpop.f32.mrb[0].mxu0
      %v1333 = vadd.f32 %v1197, %v1332
      %v1334 = vpop.f32.mrb[0].mxu0
      %1335 = vmatprep.mubr.bf16.mxu0 0
      %1336 = vmatmul.mubr.bf16.gmra.mrb[0].mxu0 %v1175
      %v1337 = vpop.f32.mrb[0].mxu0
      %v1338 = vadd.f32 %v1197, %v1337
      %v1339 = vpop.f32.mrb[0].mxu0
      %v1340 = vpop.f32.mrb[0].mxu0
      %v1341 = vadd.f32 %v1197, %v1340
      %v1342 = vpop.f32.mrb[0].mxu0
      %1343 = vdwg.mxu0
      %v1344 = vld [vmem:[%s592] sm:$0xff]
      %v1345 = vld [vmem:[%s592 + $0x8] sm:$0xff]
      %v1346 = vld [vmem:[%s592 + $0x10] sm:$0xff]
      %v1347 = vld [vmem:[%s592 + $0x18] sm:$0xff]
      %v1348 = vld [vmem:[%s592 + $0x20] sm:$0xff]
      %v1349 = vld [vmem:[%s592 + $0x28] sm:$0xff]
      %v1350 = vld [vmem:[%s592 + $0x30] sm:$0xff]
      %v1351 = vld [vmem:[%s592 + $0x38] sm:$0xff]
      %v1352 = vld [vmem:[%s592 + $0x40] sm:$0xff]
      %v1353 = vld [vmem:[%s592 + $0x48] sm:$0xff]
      %v1354 = vld [vmem:[%s592 + $0x50] sm:$0xff]
      %v1355 = vld [vmem:[%s592 + $0x58] sm:$0xff]
      %v1356 = vld [vmem:[%s592 + $0x60] sm:$0xff]
      %v1357 = vld [vmem:[%s592 + $0x68] sm:$0xff]
      %v1358 = vld [vmem:[%s592 + $0x70] sm:$0xff]
      %v1359 = vld [vmem:[%s592 + $0x78] sm:$0xff]
      %v1360 = vmul.f32 %v1282, 0.5
      %v1361 = vmul.f32 %v1285, 0.5
      %v1362 = vmul.f32 %v1290, 0.5
      %v1363 = vmul.f32 %v1293, 0.5
      %v1364 = vmul.f32 %v1298, 0.5
      %v1365 = vmul.f32 %v1301, 0.5
      %v1366 = vmul.f32 %v1306, 0.5
      %v1367 = vmul.f32 %v1309, 0.5
      %v1368 = vmul.f32 %v1314, 0.5
      %v1369 = vmul.f32 %v1317, 0.5
      %v1370 = vmul.f32 %v1322, 0.5
      %v1371 = vmul.f32 %v1325, 0.5
      %v1372 = vmul.f32 %v1330, 0.5
      %v1373 = vmul.f32 %v1333, 0.5
      %v1374 = vmul.f32 %v1338, 0.5
      %v1375 = vmul.f32 %v1341, 0.5
      %v1376 = vmul.f32 %v1360, 1.442695
      %v1377 = vpow.pop %v1376
      %v1378 = vmul.f32 %v1361, 1.442695
      %v1379 = vpow.pop %v1378
      %v1380 = vmul.f32 %v1362, 1.442695
      %v1381 = vpow.pop %v1380
      %v1382 = vmul.f32 %v1363, 1.442695
      %v1383 = vpow.pop %v1382
      %v1384 = vmul.f32 %v1364, 1.442695
      %v1385 = vpow.pop %v1384
      %v1386 = vmul.f32 %v1365, 1.442695
      %v1387 = vpow.pop %v1386
      %v1388 = vmul.f32 %v1366, 1.442695
      %v1389 = vpow.pop %v1388
      %v1390 = vmul.f32 %v1367, 1.442695
      %v1391 = vpow.pop %v1390
      %v1392 = vmul.f32 %v1368, 1.442695
      %v1393 = vpow.pop %v1392
      %v1394 = vmul.f32 %v1369, 1.442695
      %v1395 = vpow.pop %v1394
      %v1396 = vmul.f32 %v1370, 1.442695
      %v1397 = vpow.pop %v1396
      %v1398 = vmul.f32 %v1371, 1.442695
      %v1399 = vpow.pop %v1398
      %v1400 = vmul.f32 %v1372, 1.442695
      %v1401 = vpow.pop %v1400
      %v1402 = vmul.f32 %v1373, 1.442695
      %v1403 = vpow.pop %v1402
      %v1404 = vmul.f32 %v1374, 1.442695
      %v1405 = vpow.pop %v1404
      %v1406 = vmul.f32 %v1375, 1.442695
      %v1407 = vpow.pop %v1406
      %1424 = vrot.lane.b32.xlu0 %v1377, 120
      %v1425 = vpop.permute.xlu0 %1424
      %1426 = vrot.lane.b32.xlu0 %v1379, 120
      %v1427 = vpop.permute.xlu0 %1426
      %1428 = vrot.lane.b32.xlu0 %v1381, 120
      %v1429 = vpop.permute.xlu0 %1428
      %1430 = vrot.lane.b32.xlu0 %v1383, 120
      %v1431 = vpop.permute.xlu0 %1430
      %1432 = vrot.lane.b32.xlu0 %v1385, 120
      %v1433 = vpop.permute.xlu0 %1432
      %1434 = vrot.lane.b32.xlu0 %v1387, 120
      %v1435 = vpop.permute.xlu0 %1434
      %1436 = vrot.lane.b32.xlu0 %v1389, 120
      %v1437 = vpop.permute.xlu0 %1436
      %1438 = vrot.lane.b32.xlu0 %v1391, 120
      %v1439 = vpop.permute.xlu0 %1438
      %1440 = vrot.lane.b32.xlu0 %v1393, 120
      %v1441 = vpop.permute.xlu0 %1440
      %1442 = vrot.lane.b32.xlu0 %v1395, 120
      %v1443 = vpop.permute.xlu0 %1442
      %1444 = vrot.lane.b32.xlu0 %v1397, 120
      %v1445 = vpop.permute.xlu0 %1444
      %1446 = vrot.lane.b32.xlu0 %v1399, 120
      %v1447 = vpop.permute.xlu0 %1446
      %1448 = vrot.lane.b32.xlu0 %v1401, 120
      %v1449 = vpop.permute.xlu0 %1448
      %1450 = vrot.lane.b32.xlu0 %v1403, 120
      %v1451 = vpop.permute.xlu0 %1450
      %1452 = vrot.lane.b32.xlu0 %v1405, 120
      %v1453 = vpop.permute.xlu0 %1452
      %1454 = vrot.lane.b32.xlu0 %v1407, 120
      %v1455 = vpop.permute.xlu0 %1454
      %v1472 = vmul.f32 %v1344, %v1425
      %v1473 = vmul.f32 %v1345, %v1427
      %v1474 = vmul.f32 %v1346, %v1429
      %v1475 = vmul.f32 %v1347, %v1431
      %v1476 = vmul.f32 %v1348, %v1433
      %v1477 = vmul.f32 %v1349, %v1435
      %v1478 = vmul.f32 %v1350, %v1437
      %v1479 = vmul.f32 %v1351, %v1439
      %v1480 = vmul.f32 %v1352, %v1441
      %v1481 = vmul.f32 %v1353, %v1443
      %v1482 = vmul.f32 %v1354, %v1445
      %v1483 = vmul.f32 %v1355, %v1447
      %v1484 = vmul.f32 %v1356, %v1449
      %v1485 = vmul.f32 %v1357, %v1451
      %v1486 = vmul.f32 %v1358, %v1453
      %v1487 = vmul.f32 %v1359, %v1455
      %v1488 = vadd.f32 %v1282, %v1472
      %v1489 = vadd.f32 %v1285, %v1473
      %v1490 = vadd.f32 %v1290, %v1474
      %v1491 = vadd.f32 %v1293, %v1475
      %v1492 = vadd.f32 %v1298, %v1476
      %v1493 = vadd.f32 %v1301, %v1477
      %v1494 = vadd.f32 %v1306, %v1478
      %v1495 = vadd.f32 %v1309, %v1479
      %v1496 = vadd.f32 %v1314, %v1480
      %v1497 = vadd.f32 %v1317, %v1481
      %v1498 = vadd.f32 %v1322, %v1482
      %v1499 = vadd.f32 %v1325, %v1483
      %v1500 = vadd.f32 %v1330, %v1484
      %v1501 = vadd.f32 %v1333, %v1485
      %v1502 = vadd.f32 %v1338, %v1486
      %v1503 = vadd.f32 %v1341, %v1487
      %v1504 = vpack.c.bf16 %v1489, %v1488
      %v1505 = vpack.c.bf16 %v1491, %v1490
      %v1506 = vpack.c.bf16 %v1493, %v1492
      %v1507 = vpack.c.bf16 %v1495, %v1494
      %v1508 = vpack.c.bf16 %v1497, %v1496
      %v1509 = vpack.c.bf16 %v1499, %v1498
      %v1510 = vpack.c.bf16 %v1501, %v1500
      %v1511 = vpack.c.bf16 %v1503, %v1502
      %v1512 = vld [vmem:[%s10] sm:$0xf]
      %v1513 = vld [vmem:[%s11] sm:$0x1]
      %v1515 = vlaneseq
      %v1516 = vshrl.u32 %v1515, 7
      %v1517 = vsub.s32 0, %v1516
      %v1518 = vrot.slane %v1513, %v1517
      %vm1520 = vcmask 64512
      %v1522 = vsel %vm1520, %v1504, 0
      %v1525 = vsel %vm1520, %v1505, 0
      %v1528 = vsel %vm1520, %v1506, 0
      %v1531 = vsel %vm1520, %v1507, 0
      %v1534 = vsel %vm1520, %v1508, 0
      %v1537 = vsel %vm1520, %v1509, 0
      %v1540 = vsel %vm1520, %v1510, 0
      %v1543 = vsel %vm1520, %v1511, 0
      %vm1545 = vcmask 1043456
      %v1547 = vsel %vm1545, %v1512, 0
      %1549 = vmatprep.subr.bf16.mxu0 0
      %1550 = vmatpush1.bf16.msra.mxu0 %v1547
      %1551 = vmatprep.subr.bf16.mxu0 0
      %1552 = vmatpush1.bf16.msra.mxu0 0
      %1553 = vmatprep.subr.bf16.mxu0 0
      %1554 = vmatpush1.bf16.msra.mxu0 0
      %1555 = vmatprep.subr.bf16.mxu0 0
      %1556 = vmatpush1.bf16.msra.mxu0 0
      %1557 = vmatprep.subr.bf16.mxu0 0
      %1558 = vmatpush1.bf16.msra.mxu0 0
      %1559 = vmatprep.subr.bf16.mxu0 0
      %1560 = vmatpush1.bf16.msra.mxu0 0
      %1561 = vmatprep.subr.bf16.mxu0 0
      %1562 = vmatpush1.bf16.msra.mxu0 0
      %1563 = vmatprep.subr.bf16.mxu0 0
      %1564 = vmatpush1.bf16.msra.mxu0 0
      %1565 = vmatprep.subr.bf16.mxu0 0
      %1566 = vmatpush1.bf16.msra.mxu0 0
      %1567 = vmatprep.subr.bf16.mxu0 0
      %1568 = vmatpush1.bf16.msra.mxu0 0
      %1569 = vmatprep.subr.bf16.mxu0 0
      %1570 = vmatpush1.bf16.msra.mxu0 0
      %1571 = vmatprep.subr.bf16.mxu0 0
      %1572 = vmatpush1.bf16.msra.mxu0 0
      %1573 = vmatprep.subr.bf16.mxu0 0
      %1574 = vmatpush1.bf16.msra.mxu0 0
      %1575 = vmatprep.subr.bf16.mxu0 0
      %1576 = vmatpush1.bf16.msra.mxu0 0
      %1577 = vmatprep.subr.bf16.mxu0 0
      %1578 = vmatpush1.bf16.msra.mxu0 0
      %1579 = vmatprep.subr.bf16.mxu0 0
      %1580 = vmatpush1.bf16.msra.mxu0 0
      %1581 = vmatprep.mubr.bf16.mxu0 0
      %1582 = vmatmul.mubr.bf16.gmra.mrb[0].mxu0 %v1522
      %v1583 = vpop.f32.mrb[0].mxu0
      %v1584 = vadd.f32 %v1518, %v1583
      %v1585 = vpop.f32.mrb[0].mxu0
      %v1586 = vpop.f32.mrb[0].mxu0
      %v1587 = vadd.f32 %v1518, %v1586
      %v1588 = vpop.f32.mrb[0].mxu0
      %1589 = vmatprep.mubr.bf16.mxu0 0
      %1590 = vmatmul.mubr.bf16.gmra.mrb[0].mxu0 %v1525
      %v1591 = vpop.f32.mrb[0].mxu0
      %v1592 = vadd.f32 %v1518, %v1591
      %v1593 = vpop.f32.mrb[0].mxu0
      %v1594 = vpop.f32.mrb[0].mxu0
      %v1595 = vadd.f32 %v1518, %v1594
      %v1596 = vpop.f32.mrb[0].mxu0
      %1597 = vmatprep.mubr.bf16.mxu0 0
      %1598 = vmatmul.mubr.bf16.gmra.mrb[0].mxu0 %v1528
      %v1599 = vpop.f32.mrb[0].mxu0
      %v1600 = vadd.f32 %v1518, %v1599
      %v1601 = vpop.f32.mrb[0].mxu0
      %v1602 = vpop.f32.mrb[0].mxu0
      %v1603 = vadd.f32 %v1518, %v1602
      %v1604 = vpop.f32.mrb[0].mxu0
      %1605 = vmatprep.mubr.bf16.mxu0 0
      %1606 = vmatmul.mubr.bf16.gmra.mrb[0].mxu0 %v1531
      %v1607 = vpop.f32.mrb[0].mxu0
      %v1608 = vadd.f32 %v1518, %v1607
      %v1609 = vpop.f32.mrb[0].mxu0
      %v1610 = vpop.f32.mrb[0].mxu0
      %v1611 = vadd.f32 %v1518, %v1610
      %v1612 = vpop.f32.mrb[0].mxu0
      %1613 = vmatprep.mubr.bf16.mxu0 0
      %1614 = vmatmul.mubr.bf16.gmra.mrb[0].mxu0 %v1534
      %v1615 = vpop.f32.mrb[0].mxu0
      %v1616 = vadd.f32 %v1518, %v1615
      %v1617 = vpop.f32.mrb[0].mxu0
      %v1618 = vpop.f32.mrb[0].mxu0
      %v1619 = vadd.f32 %v1518, %v1618
      %v1620 = vpop.f32.mrb[0].mxu0
      %1621 = vmatprep.mubr.bf16.mxu0 0
      %1622 = vmatmul.mubr.bf16.gmra.mrb[0].mxu0 %v1537
      %v1623 = vpop.f32.mrb[0].mxu0
      %v1624 = vadd.f32 %v1518, %v1623
      %v1625 = vpop.f32.mrb[0].mxu0
      %v1626 = vpop.f32.mrb[0].mxu0
      %v1627 = vadd.f32 %v1518, %v1626
      %v1628 = vpop.f32.mrb[0].mxu0
      %1629 = vmatprep.mubr.bf16.mxu0 0
      %1630 = vmatmul.mubr.bf16.gmra.mrb[0].mxu0 %v1540
      %v1631 = vpop.f32.mrb[0].mxu0
      %v1632 = vadd.f32 %v1518, %v1631
      %v1633 = vpop.f32.mrb[0].mxu0
      %v1634 = vpop.f32.mrb[0].mxu0
      %v1635 = vadd.f32 %v1518, %v1634
      %v1636 = vpop.f32.mrb[0].mxu0
      %1637 = vmatprep.mubr.bf16.mxu0 0
      %1638 = vmatmul.mubr.bf16.gmra.mrb[0].mxu0 %v1543
      %v1639 = vpop.f32.mrb[0].mxu0
      %v1640 = vadd.f32 %v1518, %v1639
      %v1641 = vpop.f32.mrb[0].mxu0
      %v1642 = vpop.f32.mrb[0].mxu0
      %v1643 = vadd.f32 %v1518, %v1642
      %v1644 = vpop.f32.mrb[0].mxu0
      %1645 = vdwg.mxu0
      %v1646 = vmax.f32 %v1584, 0.0
      %v1647 = vmax.f32 %v1587, 0.0
      %v1648 = vmax.f32 %v1592, 0.0
      %v1649 = vmax.f32 %v1595, 0.0
      %v1650 = vmax.f32 %v1600, 0.0
      %v1651 = vmax.f32 %v1603, 0.0
      %v1652 = vmax.f32 %v1608, 0.0
      %v1653 = vmax.f32 %v1611, 0.0
      %v1654 = vmax.f32 %v1616, 0.0
      %v1655 = vmax.f32 %v1619, 0.0
      %v1656 = vmax.f32 %v1624, 0.0
      %v1657 = vmax.f32 %v1627, 0.0
      %v1658 = vmax.f32 %v1632, 0.0
      %v1659 = vmax.f32 %v1635, 0.0
      %v1660 = vmax.f32 %v1640, 0.0
      %v1661 = vmax.f32 %v1643, 0.0
      %v1662 = vpack.c.bf16 %v1647, %v1646
      %v1663 = vpack.c.bf16 %v1649, %v1648
      %v1664 = vpack.c.bf16 %v1651, %v1650
      %v1665 = vpack.c.bf16 %v1653, %v1652
      %v1666 = vpack.c.bf16 %v1655, %v1654
      %v1667 = vpack.c.bf16 %v1657, %v1656
      %v1668 = vpack.c.bf16 %v1659, %v1658
      %v1669 = vpack.c.bf16 %v1661, %v1660
      %v1670 = vld [vmem:[%s12] sm:$0xf]
      %v1671 = vld [vmem:[%s12 + $0x4] sm:$0xf]
      %v1672 = vld [vmem:[%s12 + $0x8] sm:$0xf]
      %v1673 = vld [vmem:[%s12 + $0xc] sm:$0xf]
      %v1674 = vld [vmem:[%s12 + $0x10] sm:$0xf]
      %v1675 = vld [vmem:[%s12 + $0x14] sm:$0xf]
      %v1676 = vld [vmem:[%s12 + $0x18] sm:$0xf]
      %v1677 = vld [vmem:[%s12 + $0x1c] sm:$0xf]
      %v1678 = vld [vmem:[%s12 + $0x20] sm:$0xf]
      %v1679 = vld [vmem:[%s12 + $0x24] sm:$0xf]
      %v1680 = vld [vmem:[%s12 + $0x28] sm:$0xf]
      %v1681 = vld [vmem:[%s12 + $0x2c] sm:$0xf]
      %v1682 = vld [vmem:[%s12 + $0x30] sm:$0xf]
      %v1683 = vld [vmem:[%s12 + $0x34] sm:$0xf]
      %v1684 = vld [vmem:[%s12 + $0x38] sm:$0xf]
      %v1685 = vld [vmem:[%s12 + $0x3c] sm:$0xf]
      %v1686 = vld [vmem:[%s13] sm:$0x1]
      %v1688 = vlaneseq
      %v1689 = vshrl.u32 %v1688, 7
      %v1690 = vsub.s32 0, %v1689
      %v1691 = vrot.slane %v1686, %v1690
      %v1709 = vunpack.c.l.b16 %v1670
      %v1710 = vunpack.c.l.b16 %v1671
      %v1711 = vunpack.c.l.b16 %v1672
      %v1712 = vunpack.c.l.b16 %v1673
      %v1713 = vunpack.c.l.b16 %v1674
      %v1714 = vunpack.c.l.b16 %v1675
      %v1715 = vunpack.c.l.b16 %v1676
      %v1716 = vunpack.c.l.b16 %v1677
      %v1717 = vunpack.c.l.b16 %v1678
      %v1718 = vunpack.c.l.b16 %v1679
      %v1719 = vunpack.c.l.b16 %v1680
      %v1720 = vunpack.c.l.b16 %v1681
      %v1721 = vunpack.c.l.b16 %v1682
      %v1722 = vunpack.c.l.b16 %v1683
      %v1723 = vunpack.c.l.b16 %v1684
      %v1724 = vunpack.c.l.b16 %v1685
      %v1725 = vpack.c.b16 %v1710, %v1709
      %v1726 = vpack.c.b16 %v1712, %v1711
      %v1727 = vpack.c.b16 %v1714, %v1713
      %v1728 = vpack.c.b16 %v1716, %v1715
      %v1729 = vpack.c.b16 %v1718, %v1717
      %v1730 = vpack.c.b16 %v1720, %v1719
      %v1731 = vpack.c.b16 %v1722, %v1721
      %v1732 = vpack.c.b16 %v1724, %v1723
      %1741 = vmatprep.subr.bf16.mxu0 0
      %1742 = vmatpush1.bf16.msra.mxu0 %v1725
      %1743 = vmatprep.subr.bf16.mxu0 0
      %1744 = vmatpush1.bf16.msra.mxu0 %v1726
      %1745 = vmatprep.subr.bf16.mxu0 0
      %1746 = vmatpush1.bf16.msra.mxu0 %v1727
      %1747 = vmatprep.subr.bf16.mxu0 0
      %1748 = vmatpush1.bf16.msra.mxu0 %v1728
      %1749 = vmatprep.subr.bf16.mxu0 0
      %1750 = vmatpush1.bf16.msra.mxu0 %v1729
      %1751 = vmatprep.subr.bf16.mxu0 0
      %1752 = vmatpush1.bf16.msra.mxu0 %v1730
      %1753 = vmatprep.subr.bf16.mxu0 0
      %1754 = vmatpush1.bf16.msra.mxu0 %v1731
      %1755 = vmatprep.subr.bf16.mxu0 0
      %1756 = vmatpush1.bf16.msra.mxu0 %v1732
      %1757 = vmatprep.subr.bf16.mxu0 0
      %1758 = vmatpush1.bf16.msra.mxu0 0
      %1759 = vmatprep.subr.bf16.mxu0 0
      %1760 = vmatpush1.bf16.msra.mxu0 0
      %1761 = vmatprep.subr.bf16.mxu0 0
      %1762 = vmatpush1.bf16.msra.mxu0 0
      %1763 = vmatprep.subr.bf16.mxu0 0
      %1764 = vmatpush1.bf16.msra.mxu0 0
      %1765 = vmatprep.subr.bf16.mxu0 0
      %1766 = vmatpush1.bf16.msra.mxu0 0
      %1767 = vmatprep.subr.bf16.mxu0 0
      %1768 = vmatpush1.bf16.msra.mxu0 0
      %1769 = vmatprep.subr.bf16.mxu0 0
      %1770 = vmatpush1.bf16.msra.mxu0 0
      %1771 = vmatprep.subr.bf16.mxu0 0
      %1772 = vmatpush1.bf16.msra.mxu0 0
      %1773 = vmatprep.mubr.bf16.mxu0 0
      %1774 = vmatmul.mubr.bf16.gmra.mrb[0].mxu0 %v1662
      %v1775 = vpop.f32.mrb[0].mxu0
      %v1776 = vadd.f32 %v1691, %v1775
      %v1777 = vpop.f32.mrb[0].mxu0
      %v1778 = vpop.f32.mrb[0].mxu0
      %v1779 = vadd.f32 %v1691, %v1778
      %v1780 = vpop.f32.mrb[0].mxu0
      %1781 = vmatprep.mubr.bf16.mxu0 0
      %1782 = vmatmul.mubr.bf16.gmra.mrb[0].mxu0 %v1663
      %v1783 = vpop.f32.mrb[0].mxu0
      %v1784 = vadd.f32 %v1691, %v1783
      %v1785 = vpop.f32.mrb[0].mxu0
      %v1786 = vpop.f32.mrb[0].mxu0
      %v1787 = vadd.f32 %v1691, %v1786
      %v1788 = vpop.f32.mrb[0].mxu0
      %1789 = vmatprep.mubr.bf16.mxu0 0
      %1790 = vmatmul.mubr.bf16.gmra.mrb[0].mxu0 %v1664
      %v1791 = vpop.f32.mrb[0].mxu0
      %v1792 = vadd.f32 %v1691, %v1791
      %v1793 = vpop.f32.mrb[0].mxu0
      %v1794 = vpop.f32.mrb[0].mxu0
      %v1795 = vadd.f32 %v1691, %v1794
      %v1796 = vpop.f32.mrb[0].mxu0
      %1797 = vmatprep.mubr.bf16.mxu0 0
      %1798 = vmatmul.mubr.bf16.gmra.mrb[0].mxu0 %v1665
      %v1799 = vpop.f32.mrb[0].mxu0
      %v1800 = vadd.f32 %v1691, %v1799
      %v1801 = vpop.f32.mrb[0].mxu0
      %v1802 = vpop.f32.mrb[0].mxu0
      %v1803 = vadd.f32 %v1691, %v1802
      %v1804 = vpop.f32.mrb[0].mxu0
      %1805 = vmatprep.mubr.bf16.mxu0 0
      %1806 = vmatmul.mubr.bf16.gmra.mrb[0].mxu0 %v1666
      %v1807 = vpop.f32.mrb[0].mxu0
      %v1808 = vadd.f32 %v1691, %v1807
      %v1809 = vpop.f32.mrb[0].mxu0
      %v1810 = vpop.f32.mrb[0].mxu0
      %v1811 = vadd.f32 %v1691, %v1810
      %v1812 = vpop.f32.mrb[0].mxu0
      %1813 = vmatprep.mubr.bf16.mxu0 0
      %1814 = vmatmul.mubr.bf16.gmra.mrb[0].mxu0 %v1667
      %v1815 = vpop.f32.mrb[0].mxu0
      %v1816 = vadd.f32 %v1691, %v1815
      %v1817 = vpop.f32.mrb[0].mxu0
      %v1818 = vpop.f32.mrb[0].mxu0
      %v1819 = vadd.f32 %v1691, %v1818
      %v1820 = vpop.f32.mrb[0].mxu0
      %1821 = vmatprep.mubr.bf16.mxu0 0
      %1822 = vmatmul.mubr.bf16.gmra.mrb[0].mxu0 %v1668
      %v1823 = vpop.f32.mrb[0].mxu0
      %v1824 = vadd.f32 %v1691, %v1823
      %v1825 = vpop.f32.mrb[0].mxu0
      %v1826 = vpop.f32.mrb[0].mxu0
      %v1827 = vadd.f32 %v1691, %v1826
      %v1828 = vpop.f32.mrb[0].mxu0
      %1829 = vmatprep.mubr.bf16.mxu0 0
      %1830 = vmatmul.mubr.bf16.gmra.mrb[0].mxu0 %v1669
      %v1831 = vpop.f32.mrb[0].mxu0
      %v1832 = vadd.f32 %v1691, %v1831
      %v1833 = vpop.f32.mrb[0].mxu0
      %v1834 = vpop.f32.mrb[0].mxu0
      %v1835 = vadd.f32 %v1691, %v1834
      %v1836 = vpop.f32.mrb[0].mxu0
      %1837 = vdwg.mxu0
      %v1838 = vmax.f32 %v1776, 0.0
      %v1839 = vmax.f32 %v1779, 0.0
      %v1840 = vmax.f32 %v1784, 0.0
      %v1841 = vmax.f32 %v1787, 0.0
      %v1842 = vmax.f32 %v1792, 0.0
      %v1843 = vmax.f32 %v1795, 0.0
      %v1844 = vmax.f32 %v1800, 0.0
      %v1845 = vmax.f32 %v1803, 0.0
      %v1846 = vmax.f32 %v1808, 0.0
      %v1847 = vmax.f32 %v1811, 0.0
      %v1848 = vmax.f32 %v1816, 0.0
      %v1849 = vmax.f32 %v1819, 0.0
      %v1850 = vmax.f32 %v1824, 0.0
      %v1851 = vmax.f32 %v1827, 0.0
      %v1852 = vmax.f32 %v1832, 0.0
      %v1853 = vmax.f32 %v1835, 0.0
      %v1854 = vpack.c.bf16 %v1839, %v1838
      %v1855 = vpack.c.bf16 %v1841, %v1840
      %v1856 = vpack.c.bf16 %v1843, %v1842
      %v1857 = vpack.c.bf16 %v1845, %v1844
      %v1858 = vpack.c.bf16 %v1847, %v1846
      %v1859 = vpack.c.bf16 %v1849, %v1848
      %v1860 = vpack.c.bf16 %v1851, %v1850
      %v1861 = vpack.c.bf16 %v1853, %v1852
      %v1862 = vld [vmem:[%s14] sm:$0xf]
      %v1863 = vld [vmem:[%s14 + $0x4] sm:$0xf]
      %v1864 = vld [vmem:[%s14 + $0x8] sm:$0xf]
      %v1865 = vld [vmem:[%s14 + $0xc] sm:$0xf]
      %v1866 = vld [vmem:[%s14 + $0x10] sm:$0xf]
      %v1867 = vld [vmem:[%s14 + $0x14] sm:$0xf]
      %v1868 = vld [vmem:[%s14 + $0x18] sm:$0xf]
      %v1869 = vld [vmem:[%s14 + $0x1c] sm:$0xf]
      %v1870 = vld [vmem:[%s14 + $0x20] sm:$0xf]
      %v1871 = vld [vmem:[%s14 + $0x24] sm:$0xf]
      %v1872 = vld [vmem:[%s14 + $0x28] sm:$0xf]
      %v1873 = vld [vmem:[%s14 + $0x2c] sm:$0xf]
      %v1874 = vld [vmem:[%s14 + $0x30] sm:$0xf]
      %v1875 = vld [vmem:[%s14 + $0x34] sm:$0xf]
      %v1876 = vld [vmem:[%s14 + $0x38] sm:$0xf]
      %v1877 = vld [vmem:[%s14 + $0x3c] sm:$0xf]
      %v1878 = vld [vmem:[%s15] sm:$0x1]
      %v1880 = vlaneseq
      %v1881 = vshrl.u32 %v1880, 7
      %v1882 = vsub.s32 0, %v1881
      %v1883 = vrot.slane %v1878, %v1882
      %v1901 = vunpack.c.l.b16 %v1862
      %v1902 = vunpack.c.l.b16 %v1863
      %v1903 = vunpack.c.l.b16 %v1864
      %v1904 = vunpack.c.l.b16 %v1865
      %v1905 = vunpack.c.l.b16 %v1866
      %v1906 = vunpack.c.l.b16 %v1867
      %v1907 = vunpack.c.l.b16 %v1868
      %v1908 = vunpack.c.l.b16 %v1869
      %v1909 = vunpack.c.l.b16 %v1870
      %v1910 = vunpack.c.l.b16 %v1871
      %v1911 = vunpack.c.l.b16 %v1872
      %v1912 = vunpack.c.l.b16 %v1873
      %v1913 = vunpack.c.l.b16 %v1874
      %v1914 = vunpack.c.l.b16 %v1875
      %v1915 = vunpack.c.l.b16 %v1876
      %v1916 = vunpack.c.l.b16 %v1877
      %v1917 = vpack.c.b16 %v1902, %v1901
      %v1918 = vpack.c.b16 %v1904, %v1903
      %v1919 = vpack.c.b16 %v1906, %v1905
      %v1920 = vpack.c.b16 %v1908, %v1907
      %v1921 = vpack.c.b16 %v1910, %v1909
      %v1922 = vpack.c.b16 %v1912, %v1911
      %v1923 = vpack.c.b16 %v1914, %v1913
      %v1924 = vpack.c.b16 %v1916, %v1915
      %1933 = vmatprep.subr.bf16.mxu0 0
      %1934 = vmatpush1.bf16.msra.mxu0 %v1917
      %1935 = vmatprep.subr.bf16.mxu0 0
      %1936 = vmatpush1.bf16.msra.mxu0 %v1918
      %1937 = vmatprep.subr.bf16.mxu0 0
      %1938 = vmatpush1.bf16.msra.mxu0 %v1919
      %1939 = vmatprep.subr.bf16.mxu0 0
      %1940 = vmatpush1.bf16.msra.mxu0 %v1920
      %1941 = vmatprep.subr.bf16.mxu0 0
      %1942 = vmatpush1.bf16.msra.mxu0 %v1921
      %1943 = vmatprep.subr.bf16.mxu0 0
      %1944 = vmatpush1.bf16.msra.mxu0 %v1922
      %1945 = vmatprep.subr.bf16.mxu0 0
      %1946 = vmatpush1.bf16.msra.mxu0 %v1923
      %1947 = vmatprep.subr.bf16.mxu0 0
      %1948 = vmatpush1.bf16.msra.mxu0 %v1924
      %1949 = vmatprep.subr.bf16.mxu0 0
      %1950 = vmatpush1.bf16.msra.mxu0 0
      %1951 = vmatprep.subr.bf16.mxu0 0
      %1952 = vmatpush1.bf16.msra.mxu0 0
      %1953 = vmatprep.subr.bf16.mxu0 0
      %1954 = vmatpush1.bf16.msra.mxu0 0
      %1955 = vmatprep.subr.bf16.mxu0 0
      %1956 = vmatpush1.bf16.msra.mxu0 0
      %1957 = vmatprep.subr.bf16.mxu0 0
      %1958 = vmatpush1.bf16.msra.mxu0 0
      %1959 = vmatprep.subr.bf16.mxu0 0
      %1960 = vmatpush1.bf16.msra.mxu0 0
      %1961 = vmatprep.subr.bf16.mxu0 0
      %1962 = vmatpush1.bf16.msra.mxu0 0
      %1963 = vmatprep.subr.bf16.mxu0 0
      %1964 = vmatpush1.bf16.msra.mxu0 0
      %1965 = vmatprep.mubr.bf16.mxu0 0
      %1966 = vmatmul.mubr.bf16.gmra.mrb[0].mxu0 %v1854
      %v1967 = vpop.f32.mrb[0].mxu0
      %v1968 = vadd.f32 %v1883, %v1967
      %v1969 = vpop.f32.mrb[0].mxu0
      %v1970 = vpop.f32.mrb[0].mxu0
      %v1971 = vadd.f32 %v1883, %v1970
      %v1972 = vpop.f32.mrb[0].mxu0
      %1973 = vmatprep.mubr.bf16.mxu0 0
      %1974 = vmatmul.mubr.bf16.gmra.mrb[0].mxu0 %v1855
      %v1975 = vpop.f32.mrb[0].mxu0
      %v1976 = vadd.f32 %v1883, %v1975
      %v1977 = vpop.f32.mrb[0].mxu0
      %v1978 = vpop.f32.mrb[0].mxu0
      %v1979 = vadd.f32 %v1883, %v1978
      %v1980 = vpop.f32.mrb[0].mxu0
      %1981 = vmatprep.mubr.bf16.mxu0 0
      %1982 = vmatmul.mubr.bf16.gmra.mrb[0].mxu0 %v1856
      %v1983 = vpop.f32.mrb[0].mxu0
      %v1984 = vadd.f32 %v1883, %v1983
      %v1985 = vpop.f32.mrb[0].mxu0
      %v1986 = vpop.f32.mrb[0].mxu0
      %v1987 = vadd.f32 %v1883, %v1986
      %v1988 = vpop.f32.mrb[0].mxu0
      %1989 = vmatprep.mubr.bf16.mxu0 0
      %1990 = vmatmul.mubr.bf16.gmra.mrb[0].mxu0 %v1857
      %v1991 = vpop.f32.mrb[0].mxu0
      %v1992 = vadd.f32 %v1883, %v1991
      %v1993 = vpop.f32.mrb[0].mxu0
      %v1994 = vpop.f32.mrb[0].mxu0
      %v1995 = vadd.f32 %v1883, %v1994
      %v1996 = vpop.f32.mrb[0].mxu0
      %1997 = vmatprep.mubr.bf16.mxu0 0
      %1998 = vmatmul.mubr.bf16.gmra.mrb[0].mxu0 %v1858
      %v1999 = vpop.f32.mrb[0].mxu0
      %v2000 = vadd.f32 %v1883, %v1999
      %v2001 = vpop.f32.mrb[0].mxu0
      %v2002 = vpop.f32.mrb[0].mxu0
      %v2003 = vadd.f32 %v1883, %v2002
      %v2004 = vpop.f32.mrb[0].mxu0
      %2005 = vmatprep.mubr.bf16.mxu0 0
      %2006 = vmatmul.mubr.bf16.gmra.mrb[0].mxu0 %v1859
      %v2007 = vpop.f32.mrb[0].mxu0
      %v2008 = vadd.f32 %v1883, %v2007
      %v2009 = vpop.f32.mrb[0].mxu0
      %v2010 = vpop.f32.mrb[0].mxu0
      %v2011 = vadd.f32 %v1883, %v2010
      %v2012 = vpop.f32.mrb[0].mxu0
      %2013 = vmatprep.mubr.bf16.mxu0 0
      %2014 = vmatmul.mubr.bf16.gmra.mrb[0].mxu0 %v1860
      %v2015 = vpop.f32.mrb[0].mxu0
      %v2016 = vadd.f32 %v1883, %v2015
      %v2017 = vpop.f32.mrb[0].mxu0
      %v2018 = vpop.f32.mrb[0].mxu0
      %v2019 = vadd.f32 %v1883, %v2018
      %v2020 = vpop.f32.mrb[0].mxu0
      %2021 = vmatprep.mubr.bf16.mxu0 0
      %2022 = vmatmul.mubr.bf16.gmra.mrb[0].mxu0 %v1861
      %v2023 = vpop.f32.mrb[0].mxu0
      %v2024 = vadd.f32 %v1883, %v2023
      %v2025 = vpop.f32.mrb[0].mxu0
      %v2026 = vpop.f32.mrb[0].mxu0
      %v2027 = vadd.f32 %v1883, %v2026
      %v2028 = vpop.f32.mrb[0].mxu0
      %2029 = vdwg.mxu0
      %v2030 = vmax.f32 %v1968, 0.0
      %v2031 = vmax.f32 %v1971, 0.0
      %v2032 = vmax.f32 %v1976, 0.0
      %v2033 = vmax.f32 %v1979, 0.0
      %v2034 = vmax.f32 %v1984, 0.0
      %v2035 = vmax.f32 %v1987, 0.0
      %v2036 = vmax.f32 %v1992, 0.0
      %v2037 = vmax.f32 %v1995, 0.0
      %v2038 = vmax.f32 %v2000, 0.0
      %v2039 = vmax.f32 %v2003, 0.0
      %v2040 = vmax.f32 %v2008, 0.0
      %v2041 = vmax.f32 %v2011, 0.0
      %v2042 = vmax.f32 %v2016, 0.0
      %v2043 = vmax.f32 %v2019, 0.0
      %v2044 = vmax.f32 %v2024, 0.0
      %v2045 = vmax.f32 %v2027, 0.0
      %v2046 = vpack.c.bf16 %v2031, %v2030
      %v2047 = vpack.c.bf16 %v2033, %v2032
      %v2048 = vpack.c.bf16 %v2035, %v2034
      %v2049 = vpack.c.bf16 %v2037, %v2036
      %v2050 = vpack.c.bf16 %v2039, %v2038
      %v2051 = vpack.c.bf16 %v2041, %v2040
      %v2052 = vpack.c.bf16 %v2043, %v2042
      %v2053 = vpack.c.bf16 %v2045, %v2044
      %v2054 = vld [vmem:[%s16] sm:$0xf]
      %v2055 = vld [vmem:[%s16 + $0x4] sm:$0xf]
      %v2056 = vld [vmem:[%s16 + $0x8] sm:$0xf]
      %v2057 = vld [vmem:[%s16 + $0xc] sm:$0xf]
      %v2058 = vld [vmem:[%s16 + $0x10] sm:$0xf]
      %v2059 = vld [vmem:[%s16 + $0x14] sm:$0xf]
      %v2060 = vld [vmem:[%s16 + $0x18] sm:$0xf]
      %v2061 = vld [vmem:[%s16 + $0x1c] sm:$0xf]
      %v2062 = vld [vmem:[%s16 + $0x20] sm:$0xf]
      %v2063 = vld [vmem:[%s16 + $0x24] sm:$0xf]
      %v2064 = vld [vmem:[%s16 + $0x28] sm:$0xf]
      %v2065 = vld [vmem:[%s16 + $0x2c] sm:$0xf]
      %v2066 = vld [vmem:[%s16 + $0x30] sm:$0xf]
      %v2067 = vld [vmem:[%s16 + $0x34] sm:$0xf]
      %v2068 = vld [vmem:[%s16 + $0x38] sm:$0xf]
      %v2069 = vld [vmem:[%s16 + $0x3c] sm:$0xf]
      %v2070 = vld [vmem:[%s17] sm:$0x1]
      %v2072 = vlaneseq
      %v2073 = vshrl.u32 %v2072, 7
      %v2074 = vsub.s32 0, %v2073
      %v2075 = vrot.slane %v2070, %v2074
      %v2093 = vunpack.c.l.b16 %v2054
      %v2094 = vunpack.c.l.b16 %v2055
      %v2095 = vunpack.c.l.b16 %v2056
      %v2096 = vunpack.c.l.b16 %v2057
      %v2097 = vunpack.c.l.b16 %v2058
      %v2098 = vunpack.c.l.b16 %v2059
      %v2099 = vunpack.c.l.b16 %v2060
      %v2100 = vunpack.c.l.b16 %v2061
      %v2101 = vunpack.c.l.b16 %v2062
      %v2102 = vunpack.c.l.b16 %v2063
      %v2103 = vunpack.c.l.b16 %v2064
      %v2104 = vunpack.c.l.b16 %v2065
      %v2105 = vunpack.c.l.b16 %v2066
      %v2106 = vunpack.c.l.b16 %v2067
      %v2107 = vunpack.c.l.b16 %v2068
      %v2108 = vunpack.c.l.b16 %v2069
      %v2109 = vpack.c.b16 %v2094, %v2093
      %v2110 = vpack.c.b16 %v2096, %v2095
      %v2111 = vpack.c.b16 %v2098, %v2097
      %v2112 = vpack.c.b16 %v2100, %v2099
      %v2113 = vpack.c.b16 %v2102, %v2101
      %v2114 = vpack.c.b16 %v2104, %v2103
      %v2115 = vpack.c.b16 %v2106, %v2105
      %v2116 = vpack.c.b16 %v2108, %v2107
      %2125 = vmatprep.subr.bf16.mxu0 0
      %2126 = vmatpush1.bf16.msra.mxu0 %v2109
      %2127 = vmatprep.subr.bf16.mxu0 0
      %2128 = vmatpush1.bf16.msra.mxu0 %v2110
      %2129 = vmatprep.subr.bf16.mxu0 0
      %2130 = vmatpush1.bf16.msra.mxu0 %v2111
      %2131 = vmatprep.subr.bf16.mxu0 0
      %2132 = vmatpush1.bf16.msra.mxu0 %v2112
      %2133 = vmatprep.subr.bf16.mxu0 0
      %2134 = vmatpush1.bf16.msra.mxu0 %v2113
      %2135 = vmatprep.subr.bf16.mxu0 0
      %2136 = vmatpush1.bf16.msra.mxu0 %v2114
      %2137 = vmatprep.subr.bf16.mxu0 0
      %2138 = vmatpush1.bf16.msra.mxu0 %v2115
      %2139 = vmatprep.subr.bf16.mxu0 0
      %2140 = vmatpush1.bf16.msra.mxu0 %v2116
      %2141 = vmatprep.subr.bf16.mxu0 0
      %2142 = vmatpush1.bf16.msra.mxu0 0
      %2143 = vmatprep.subr.bf16.mxu0 0
      %2144 = vmatpush1.bf16.msra.mxu0 0
      %2145 = vmatprep.subr.bf16.mxu0 0
      %2146 = vmatpush1.bf16.msra.mxu0 0
      %2147 = vmatprep.subr.bf16.mxu0 0
      %2148 = vmatpush1.bf16.msra.mxu0 0
      %2149 = vmatprep.subr.bf16.mxu0 0
      %2150 = vmatpush1.bf16.msra.mxu0 0
      %2151 = vmatprep.subr.bf16.mxu0 0
      %2152 = vmatpush1.bf16.msra.mxu0 0
      %2153 = vmatprep.subr.bf16.mxu0 0
      %2154 = vmatpush1.bf16.msra.mxu0 0
      %2155 = vmatprep.subr.bf16.mxu0 0
      %2156 = vmatpush1.bf16.msra.mxu0 0
      %2157 = vmatprep.mubr.bf16.mxu0 0
      %2158 = vmatmul.mubr.bf16.gmra.mrb[0].mxu0 %v2046
      %v2159 = vpop.f32.mrb[0].mxu0
      %v2160 = vadd.f32 %v2075, %v2159
      %v2161 = vpop.f32.mrb[0].mxu0
      %v2162 = vpop.f32.mrb[0].mxu0
      %v2163 = vadd.f32 %v2075, %v2162
      %v2164 = vpop.f32.mrb[0].mxu0
      %2165 = vmatprep.mubr.bf16.mxu0 0
      %2166 = vmatmul.mubr.bf16.gmra.mrb[0].mxu0 %v2047
      %v2167 = vpop.f32.mrb[0].mxu0
      %v2168 = vadd.f32 %v2075, %v2167
      %v2169 = vpop.f32.mrb[0].mxu0
      %v2170 = vpop.f32.mrb[0].mxu0
      %v2171 = vadd.f32 %v2075, %v2170
      %v2172 = vpop.f32.mrb[0].mxu0
      %2173 = vmatprep.mubr.bf16.mxu0 0
      %2174 = vmatmul.mubr.bf16.gmra.mrb[0].mxu0 %v2048
      %v2175 = vpop.f32.mrb[0].mxu0
      %v2176 = vadd.f32 %v2075, %v2175
      %v2177 = vpop.f32.mrb[0].mxu0
      %v2178 = vpop.f32.mrb[0].mxu0
      %v2179 = vadd.f32 %v2075, %v2178
      %v2180 = vpop.f32.mrb[0].mxu0
      %2181 = vmatprep.mubr.bf16.mxu0 0
      %2182 = vmatmul.mubr.bf16.gmra.mrb[0].mxu0 %v2049
      %v2183 = vpop.f32.mrb[0].mxu0
      %v2184 = vadd.f32 %v2075, %v2183
      %v2185 = vpop.f32.mrb[0].mxu0
      %v2186 = vpop.f32.mrb[0].mxu0
      %v2187 = vadd.f32 %v2075, %v2186
      %v2188 = vpop.f32.mrb[0].mxu0
      %2189 = vmatprep.mubr.bf16.mxu0 0
      %2190 = vmatmul.mubr.bf16.gmra.mrb[0].mxu0 %v2050
      %v2191 = vpop.f32.mrb[0].mxu0
      %v2192 = vadd.f32 %v2075, %v2191
      %v2193 = vpop.f32.mrb[0].mxu0
      %v2194 = vpop.f32.mrb[0].mxu0
      %v2195 = vadd.f32 %v2075, %v2194
      %v2196 = vpop.f32.mrb[0].mxu0
      %2197 = vmatprep.mubr.bf16.mxu0 0
      %2198 = vmatmul.mubr.bf16.gmra.mrb[0].mxu0 %v2051
      %v2199 = vpop.f32.mrb[0].mxu0
      %v2200 = vadd.f32 %v2075, %v2199
      %v2201 = vpop.f32.mrb[0].mxu0
      %v2202 = vpop.f32.mrb[0].mxu0
      %v2203 = vadd.f32 %v2075, %v2202
      %v2204 = vpop.f32.mrb[0].mxu0
      %2205 = vmatprep.mubr.bf16.mxu0 0
      %2206 = vmatmul.mubr.bf16.gmra.mrb[0].mxu0 %v2052
      %v2207 = vpop.f32.mrb[0].mxu0
      %v2208 = vadd.f32 %v2075, %v2207
      %v2209 = vpop.f32.mrb[0].mxu0
      %v2210 = vpop.f32.mrb[0].mxu0
      %v2211 = vadd.f32 %v2075, %v2210
      %v2212 = vpop.f32.mrb[0].mxu0
      %2213 = vmatprep.mubr.bf16.mxu0 0
      %2214 = vmatmul.mubr.bf16.gmra.mrb[0].mxu0 %v2053
      %v2215 = vpop.f32.mrb[0].mxu0
      %v2216 = vadd.f32 %v2075, %v2215
      %v2217 = vpop.f32.mrb[0].mxu0
      %v2218 = vpop.f32.mrb[0].mxu0
      %v2219 = vadd.f32 %v2075, %v2218
      %v2220 = vpop.f32.mrb[0].mxu0
      %2221 = vdwg.mxu0
      %v2222 = vsub.f32 %v2160, %v599
      %v2223 = vsub.f32 %v2163, %v600
      %v2224 = vsub.f32 %v2168, %v601
      %v2225 = vsub.f32 %v2171, %v602
      %v2226 = vsub.f32 %v2176, %v603
      %v2227 = vsub.f32 %v2179, %v604
      %v2228 = vsub.f32 %v2184, %v605
      %v2229 = vsub.f32 %v2187, %v606
      %v2230 = vsub.f32 %v2192, %v607
      %v2231 = vsub.f32 %v2195, %v608
      %v2232 = vsub.f32 %v2200, %v609
      %v2233 = vsub.f32 %v2203, %v610
      %v2234 = vsub.f32 %v2208, %v611
      %v2235 = vsub.f32 %v2211, %v612
      %v2236 = vsub.f32 %v2216, %v613
      %v2237 = vsub.f32 %v2219, %v614
      %v2238 = vmul.f32 %v2222, %v2222
      %v2239 = vmul.f32 %v2223, %v2223
      %v2240 = vmul.f32 %v2224, %v2224
      %v2241 = vmul.f32 %v2225, %v2225
      %v2242 = vmul.f32 %v2226, %v2226
      %v2243 = vmul.f32 %v2227, %v2227
      %v2244 = vmul.f32 %v2228, %v2228
      %v2245 = vmul.f32 %v2229, %v2229
      %v2246 = vmul.f32 %v2230, %v2230
      %v2247 = vmul.f32 %v2231, %v2231
      %v2248 = vmul.f32 %v2232, %v2232
      %v2249 = vmul.f32 %v2233, %v2233
      %v2250 = vmul.f32 %v2234, %v2234
      %v2251 = vmul.f32 %v2235, %v2235
      %v2252 = vmul.f32 %v2236, %v2236
      %v2253 = vmul.f32 %v2237, %v2237
      %v2254 = vsel %vm646, %v2238, 0.0
      %2255 = vadd.xlane.f32.xlu0 %v2254
      %v2256 = vpop.xlane.xlu0 %2255
      %v2257 = vsel %vm646, %v2239, 0.0
      %2258 = vadd.xlane.f32.xlu0 %v2257
      %v2259 = vpop.xlane.xlu0 %2258
      %v2260 = vsel %vm646, %v2240, 0.0
      %2261 = vadd.xlane.f32.xlu0 %v2260
      %v2262 = vpop.xlane.xlu0 %2261
      %v2263 = vsel %vm646, %v2241, 0.0
      %2264 = vadd.xlane.f32.xlu0 %v2263
      %v2265 = vpop.xlane.xlu0 %2264
      %v2266 = vsel %vm646, %v2242, 0.0
      %2267 = vadd.xlane.f32.xlu0 %v2266
      %v2268 = vpop.xlane.xlu0 %2267
      %v2269 = vsel %vm646, %v2243, 0.0
      %2270 = vadd.xlane.f32.xlu0 %v2269
      %v2271 = vpop.xlane.xlu0 %2270
      %v2272 = vsel %vm646, %v2244, 0.0
      %2273 = vadd.xlane.f32.xlu0 %v2272
      %v2274 = vpop.xlane.xlu0 %2273
      %v2275 = vsel %vm646, %v2245, 0.0
      %2276 = vadd.xlane.f32.xlu0 %v2275
      %v2277 = vpop.xlane.xlu0 %2276
      %v2278 = vsel %vm646, %v2246, 0.0
      %2279 = vadd.xlane.f32.xlu0 %v2278
      %v2280 = vpop.xlane.xlu0 %2279
      %v2281 = vsel %vm646, %v2247, 0.0
      %2282 = vadd.xlane.f32.xlu0 %v2281
      %v2283 = vpop.xlane.xlu0 %2282
      %v2284 = vsel %vm646, %v2248, 0.0
      %2285 = vadd.xlane.f32.xlu0 %v2284
      %v2286 = vpop.xlane.xlu0 %2285
      %v2287 = vsel %vm646, %v2249, 0.0
      %2288 = vadd.xlane.f32.xlu0 %v2287
      %v2289 = vpop.xlane.xlu0 %2288
      %v2290 = vsel %vm646, %v2250, 0.0
      %2291 = vadd.xlane.f32.xlu0 %v2290
      %v2292 = vpop.xlane.xlu0 %2291
      %v2293 = vsel %vm646, %v2251, 0.0
      %2294 = vadd.xlane.f32.xlu0 %v2293
      %v2295 = vpop.xlane.xlu0 %2294
      %v2296 = vsel %vm646, %v2252, 0.0
      %2297 = vadd.xlane.f32.xlu0 %v2296
      %v2298 = vpop.xlane.xlu0 %2297
      %v2299 = vsel %vm646, %v2253, 0.0
      %2300 = vadd.xlane.f32.xlu0 %v2299
      %v2301 = vpop.xlane.xlu0 %2300
      %v2302 = vrsqrt.pop %v2256
      %v2303 = vmul.f32 %v2256, %v2302
      %vm2304 = vcmp.eq.f32.partialorder %v2256, inf
      %v2305 = vsel %vm2304, %v2256, %v2303
      %vm2306 = vcmp.eq.f32.partialorder %v2256, 0.0
      %v2307 = vand.u32 %v2256, 2147483648
      %v2308 = vsel %vm2306, %v2307, %v2305
      %v2309 = vrsqrt.pop %v2259
      %v2310 = vmul.f32 %v2259, %v2309
      %vm2311 = vcmp.eq.f32.partialorder %v2259, inf
      %v2312 = vsel %vm2311, %v2259, %v2310
      %vm2313 = vcmp.eq.f32.partialorder %v2259, 0.0
      %v2314 = vand.u32 %v2259, 2147483648
      %v2315 = vsel %vm2313, %v2314, %v2312
      %v2316 = vrsqrt.pop %v2262
      %v2317 = vmul.f32 %v2262, %v2316
      %vm2318 = vcmp.eq.f32.partialorder %v2262, inf
      %v2319 = vsel %vm2318, %v2262, %v2317
      %vm2320 = vcmp.eq.f32.partialorder %v2262, 0.0
      %v2321 = vand.u32 %v2262, 2147483648
      %v2322 = vsel %vm2320, %v2321, %v2319
      %v2323 = vrsqrt.pop %v2265
      %v2324 = vmul.f32 %v2265, %v2323
      %vm2325 = vcmp.eq.f32.partialorder %v2265, inf
      %v2326 = vsel %vm2325, %v2265, %v2324
      %vm2327 = vcmp.eq.f32.partialorder %v2265, 0.0
      %v2328 = vand.u32 %v2265, 2147483648
      %v2329 = vsel %vm2327, %v2328, %v2326
      %v2330 = vrsqrt.pop %v2268
      %v2331 = vmul.f32 %v2268, %v2330
      %vm2332 = vcmp.eq.f32.partialorder %v2268, inf
      %v2333 = vsel %vm2332, %v2268, %v2331
      %vm2334 = vcmp.eq.f32.partialorder %v2268, 0.0
      %v2335 = vand.u32 %v2268, 2147483648
      %v2336 = vsel %vm2334, %v2335, %v2333
      %v2337 = vrsqrt.pop %v2271
      %v2338 = vmul.f32 %v2271, %v2337
      %vm2339 = vcmp.eq.f32.partialorder %v2271, inf
      %v2340 = vsel %vm2339, %v2271, %v2338
      %vm2341 = vcmp.eq.f32.partialorder %v2271, 0.0
      %v2342 = vand.u32 %v2271, 2147483648
      %v2343 = vsel %vm2341, %v2342, %v2340
      %v2344 = vrsqrt.pop %v2274
      %v2345 = vmul.f32 %v2274, %v2344
      %vm2346 = vcmp.eq.f32.partialorder %v2274, inf
      %v2347 = vsel %vm2346, %v2274, %v2345
      %vm2348 = vcmp.eq.f32.partialorder %v2274, 0.0
      %v2349 = vand.u32 %v2274, 2147483648
      %v2350 = vsel %vm2348, %v2349, %v2347
      %v2351 = vrsqrt.pop %v2277
      %v2352 = vmul.f32 %v2277, %v2351
      %vm2353 = vcmp.eq.f32.partialorder %v2277, inf
      %v2354 = vsel %vm2353, %v2277, %v2352
      %vm2355 = vcmp.eq.f32.partialorder %v2277, 0.0
      %v2356 = vand.u32 %v2277, 2147483648
      %v2357 = vsel %vm2355, %v2356, %v2354
      %v2358 = vrsqrt.pop %v2280
      %v2359 = vmul.f32 %v2280, %v2358
      %vm2360 = vcmp.eq.f32.partialorder %v2280, inf
      %v2361 = vsel %vm2360, %v2280, %v2359
      %vm2362 = vcmp.eq.f32.partialorder %v2280, 0.0
      %v2363 = vand.u32 %v2280, 2147483648
      %v2364 = vsel %vm2362, %v2363, %v2361
      %v2365 = vrsqrt.pop %v2283
      %v2366 = vmul.f32 %v2283, %v2365
      %vm2367 = vcmp.eq.f32.partialorder %v2283, inf
      %v2368 = vsel %vm2367, %v2283, %v2366
      %vm2369 = vcmp.eq.f32.partialorder %v2283, 0.0
      %v2370 = vand.u32 %v2283, 2147483648
      %v2371 = vsel %vm2369, %v2370, %v2368
      %v2372 = vrsqrt.pop %v2286
      %v2373 = vmul.f32 %v2286, %v2372
      %vm2374 = vcmp.eq.f32.partialorder %v2286, inf
      %v2375 = vsel %vm2374, %v2286, %v2373
      %vm2376 = vcmp.eq.f32.partialorder %v2286, 0.0
      %v2377 = vand.u32 %v2286, 2147483648
      %v2378 = vsel %vm2376, %v2377, %v2375
      %v2379 = vrsqrt.pop %v2289
      %v2380 = vmul.f32 %v2289, %v2379
      %vm2381 = vcmp.eq.f32.partialorder %v2289, inf
      %v2382 = vsel %vm2381, %v2289, %v2380
      %vm2383 = vcmp.eq.f32.partialorder %v2289, 0.0
      %v2384 = vand.u32 %v2289, 2147483648
      %v2385 = vsel %vm2383, %v2384, %v2382
      %v2386 = vrsqrt.pop %v2292
      %v2387 = vmul.f32 %v2292, %v2386
      %vm2388 = vcmp.eq.f32.partialorder %v2292, inf
      %v2389 = vsel %vm2388, %v2292, %v2387
      %vm2390 = vcmp.eq.f32.partialorder %v2292, 0.0
      %v2391 = vand.u32 %v2292, 2147483648
      %v2392 = vsel %vm2390, %v2391, %v2389
      %v2393 = vrsqrt.pop %v2295
      %v2394 = vmul.f32 %v2295, %v2393
      %vm2395 = vcmp.eq.f32.partialorder %v2295, inf
      %v2396 = vsel %vm2395, %v2295, %v2394
      %vm2397 = vcmp.eq.f32.partialorder %v2295, 0.0
      %v2398 = vand.u32 %v2295, 2147483648
      %v2399 = vsel %vm2397, %v2398, %v2396
      %v2400 = vrsqrt.pop %v2298
      %v2401 = vmul.f32 %v2298, %v2400
      %vm2402 = vcmp.eq.f32.partialorder %v2298, inf
      %v2403 = vsel %vm2402, %v2298, %v2401
      %vm2404 = vcmp.eq.f32.partialorder %v2298, 0.0
      %v2405 = vand.u32 %v2298, 2147483648
      %v2406 = vsel %vm2404, %v2405, %v2403
      %v2407 = vrsqrt.pop %v2301
      %v2408 = vmul.f32 %v2301, %v2407
      %vm2409 = vcmp.eq.f32.partialorder %v2301, inf
      %v2410 = vsel %vm2409, %v2301, %v2408
      %vm2411 = vcmp.eq.f32.partialorder %v2301, 0.0
      %v2412 = vand.u32 %v2301, 2147483648
      %v2413 = vsel %vm2411, %v2412, %v2410
      %v2414 = vadd.f32 %v1282, 1.0
      %v2415 = vadd.f32 %v1285, 1.0
      %v2416 = vadd.f32 %v1290, 1.0
      %v2417 = vadd.f32 %v1293, 1.0
      %v2418 = vadd.f32 %v1298, 1.0
      %v2419 = vadd.f32 %v1301, 1.0
      %v2420 = vadd.f32 %v1306, 1.0
      %v2421 = vadd.f32 %v1309, 1.0
      %v2422 = vadd.f32 %v1314, 1.0
      %v2423 = vadd.f32 %v1317, 1.0
      %v2424 = vadd.f32 %v1322, 1.0
      %v2425 = vadd.f32 %v1325, 1.0
      %v2426 = vadd.f32 %v1330, 1.0
      %v2427 = vadd.f32 %v1333, 1.0
      %v2428 = vadd.f32 %v1338, 1.0
      %v2429 = vadd.f32 %v1341, 1.0
      %v2430 = vmul.f32 %v1282, %v1282
      %v2431 = vmul.f32 %v1285, %v1285
      %v2432 = vmul.f32 %v1290, %v1290
      %v2433 = vmul.f32 %v1293, %v1293
      %v2434 = vmul.f32 %v1298, %v1298
      %v2435 = vmul.f32 %v1301, %v1301
      %v2436 = vmul.f32 %v1306, %v1306
      %v2437 = vmul.f32 %v1309, %v1309
      %v2438 = vmul.f32 %v1314, %v1314
      %v2439 = vmul.f32 %v1317, %v1317
      %v2440 = vmul.f32 %v1322, %v1322
      %v2441 = vmul.f32 %v1325, %v1325
      %v2442 = vmul.f32 %v1330, %v1330
      %v2443 = vmul.f32 %v1333, %v1333
      %v2444 = vmul.f32 %v1338, %v1338
      %v2445 = vmul.f32 %v1341, %v1341
      %2462 = vrot.lane.b32.xlu0 %v2430, 8
      %v2463 = vpop.permute.xlu0 %2462
      %2464 = vrot.lane.b32.xlu0 %v2431, 8
      %v2465 = vpop.permute.xlu0 %2464
      %2466 = vrot.lane.b32.xlu0 %v2432, 8
      %v2467 = vpop.permute.xlu0 %2466
      %2468 = vrot.lane.b32.xlu0 %v2433, 8
      %v2469 = vpop.permute.xlu0 %2468
      %2470 = vrot.lane.b32.xlu0 %v2434, 8
      %v2471 = vpop.permute.xlu0 %2470
      %2472 = vrot.lane.b32.xlu0 %v2435, 8
      %v2473 = vpop.permute.xlu0 %2472
      %2474 = vrot.lane.b32.xlu0 %v2436, 8
      %v2475 = vpop.permute.xlu0 %2474
      %2476 = vrot.lane.b32.xlu0 %v2437, 8
      %v2477 = vpop.permute.xlu0 %2476
      %2478 = vrot.lane.b32.xlu0 %v2438, 8
      %v2479 = vpop.permute.xlu0 %2478
      %2480 = vrot.lane.b32.xlu0 %v2439, 8
      %v2481 = vpop.permute.xlu0 %2480
      %2482 = vrot.lane.b32.xlu0 %v2440, 8
      %v2483 = vpop.permute.xlu0 %2482
      %2484 = vrot.lane.b32.xlu0 %v2441, 8
      %v2485 = vpop.permute.xlu0 %2484
      %2486 = vrot.lane.b32.xlu0 %v2442, 8
      %v2487 = vpop.permute.xlu0 %2486
      %2488 = vrot.lane.b32.xlu0 %v2443, 8
      %v2489 = vpop.permute.xlu0 %2488
      %2490 = vrot.lane.b32.xlu0 %v2444, 8
      %v2491 = vpop.permute.xlu0 %2490
      %2492 = vrot.lane.b32.xlu0 %v2445, 8
      %v2493 = vpop.permute.xlu0 %2492
      %v2510 = vsub.f32 %v2414, %v2463
      %v2511 = vsub.f32 %v2415, %v2465
      %v2512 = vsub.f32 %v2416, %v2467
      %v2513 = vsub.f32 %v2417, %v2469
      %v2514 = vsub.f32 %v2418, %v2471
      %v2515 = vsub.f32 %v2419, %v2473
      %v2516 = vsub.f32 %v2420, %v2475
      %v2517 = vsub.f32 %v2421, %v2477
      %v2518 = vsub.f32 %v2422, %v2479
      %v2519 = vsub.f32 %v2423, %v2481
      %v2520 = vsub.f32 %v2424, %v2483
      %v2521 = vsub.f32 %v2425, %v2485
      %v2522 = vsub.f32 %v2426, %v2487
      %v2523 = vsub.f32 %v2427, %v2489
      %v2524 = vsub.f32 %v2428, %v2491
      %v2525 = vsub.f32 %v2429, %v2493
      %v2526 = vmul.f32 %v1282, 1.442695
      %v2527 = vpow.pop %v2526
      %v2528 = vmul.f32 %v1285, 1.442695
      %v2529 = vpow.pop %v2528
      %v2530 = vmul.f32 %v1290, 1.442695
      %v2531 = vpow.pop %v2530
      %v2532 = vmul.f32 %v1293, 1.442695
      %v2533 = vpow.pop %v2532
      %v2534 = vmul.f32 %v1298, 1.442695
      %v2535 = vpow.pop %v2534
      %v2536 = vmul.f32 %v1301, 1.442695
      %v2537 = vpow.pop %v2536
      %v2538 = vmul.f32 %v1306, 1.442695
      %v2539 = vpow.pop %v2538
      %v2540 = vmul.f32 %v1309, 1.442695
      %v2541 = vpow.pop %v2540
      %v2542 = vmul.f32 %v1314, 1.442695
      %v2543 = vpow.pop %v2542
      %v2544 = vmul.f32 %v1317, 1.442695
      %v2545 = vpow.pop %v2544
      %v2546 = vmul.f32 %v1322, 1.442695
      %v2547 = vpow.pop %v2546
      %v2548 = vmul.f32 %v1325, 1.442695
      %v2549 = vpow.pop %v2548
      %v2550 = vmul.f32 %v1330, 1.442695
      %v2551 = vpow.pop %v2550
      %v2552 = vmul.f32 %v1333, 1.442695
      %v2553 = vpow.pop %v2552
      %v2554 = vmul.f32 %v1338, 1.442695
      %v2555 = vpow.pop %v2554
      %v2556 = vmul.f32 %v1341, 1.442695
      %v2557 = vpow.pop %v2556
      %v2558 = vsub.f32 %v2510, %v2527
      %v2559 = vsub.f32 %v2511, %v2529
      %v2560 = vsub.f32 %v2512, %v2531
      %v2561 = vsub.f32 %v2513, %v2533
      %v2562 = vsub.f32 %v2514, %v2535
      %v2563 = vsub.f32 %v2515, %v2537
      %v2564 = vsub.f32 %v2516, %v2539
      %v2565 = vsub.f32 %v2517, %v2541
      %v2566 = vsub.f32 %v2518, %v2543
      %v2567 = vsub.f32 %v2519, %v2545
      %v2568 = vsub.f32 %v2520, %v2547
      %v2569 = vsub.f32 %v2521, %v2549
      %v2570 = vsub.f32 %v2522, %v2551
      %v2571 = vsub.f32 %v2523, %v2553
      %v2572 = vsub.f32 %v2524, %v2555
      %v2573 = vsub.f32 %v2525, %v2557
      %v2574 = vmul.f32 %v2558, -5.0
      %v2575 = vmul.f32 %v2559, -5.0
      %v2576 = vmul.f32 %v2560, -5.0
      %v2577 = vmul.f32 %v2561, -5.0
      %v2578 = vmul.f32 %v2562, -5.0
      %v2579 = vmul.f32 %v2563, -5.0
      %v2580 = vmul.f32 %v2564, -5.0
      %v2581 = vmul.f32 %v2565, -5.0
      %v2582 = vmul.f32 %v2566, -5.0
      %v2583 = vmul.f32 %v2567, -5.0
      %v2584 = vmul.f32 %v2568, -5.0
      %v2585 = vmul.f32 %v2569, -5.0
      %v2586 = vmul.f32 %v2570, -5.0
      %v2587 = vmul.f32 %v2571, -5.0
      %v2588 = vmul.f32 %v2572, -5.0
      %v2589 = vmul.f32 %v2573, -5.0
      %2606 = vrot.lane.b32.xlu0 %v2574, 120
      %v2607 = vpop.permute.xlu0 %2606
      %2608 = vrot.lane.b32.xlu0 %v2575, 120
      %v2609 = vpop.permute.xlu0 %2608
      %2610 = vrot.lane.b32.xlu0 %v2576, 120
      %v2611 = vpop.permute.xlu0 %2610
      %2612 = vrot.lane.b32.xlu0 %v2577, 120
      %v2613 = vpop.permute.xlu0 %2612
      %2614 = vrot.lane.b32.xlu0 %v2578, 120
      %v2615 = vpop.permute.xlu0 %2614
      %2616 = vrot.lane.b32.xlu0 %v2579, 120
      %v2617 = vpop.permute.xlu0 %2616
      %2618 = vrot.lane.b32.xlu0 %v2580, 120
      %v2619 = vpop.permute.xlu0 %2618
      %2620 = vrot.lane.b32.xlu0 %v2581, 120
      %v2621 = vpop.permute.xlu0 %2620
      %2622 = vrot.lane.b32.xlu0 %v2582, 120
      %v2623 = vpop.permute.xlu0 %2622
      %2624 = vrot.lane.b32.xlu0 %v2583, 120
      %v2625 = vpop.permute.xlu0 %2624
      %2626 = vrot.lane.b32.xlu0 %v2584, 120
      %v2627 = vpop.permute.xlu0 %2626
      %2628 = vrot.lane.b32.xlu0 %v2585, 120
      %v2629 = vpop.permute.xlu0 %2628
      %2630 = vrot.lane.b32.xlu0 %v2586, 120
      %v2631 = vpop.permute.xlu0 %2630
      %2632 = vrot.lane.b32.xlu0 %v2587, 120
      %v2633 = vpop.permute.xlu0 %2632
      %2634 = vrot.lane.b32.xlu0 %v2588, 120
      %v2635 = vpop.permute.xlu0 %2634
      %2636 = vrot.lane.b32.xlu0 %v2589, 120
      %v2637 = vpop.permute.xlu0 %2636
      %v2654 = vsel %vm1520, %v2607, 0.0
      %2655 = vadd.xlane.f32.xlu0 %v2654
      %v2656 = vpop.xlane.xlu0 %2655
      %v2657 = vsel %vm1520, %v2609, 0.0
      %2658 = vadd.xlane.f32.xlu0 %v2657
      %v2659 = vpop.xlane.xlu0 %2658
      %v2660 = vsel %vm1520, %v2611, 0.0
      %2661 = vadd.xlane.f32.xlu0 %v2660
      %v2662 = vpop.xlane.xlu0 %2661
      %v2663 = vsel %vm1520, %v2613, 0.0
      %2664 = vadd.xlane.f32.xlu0 %v2663
      %v2665 = vpop.xlane.xlu0 %2664
      %v2666 = vsel %vm1520, %v2615, 0.0
      %2667 = vadd.xlane.f32.xlu0 %v2666
      %v2668 = vpop.xlane.xlu0 %2667
      %v2669 = vsel %vm1520, %v2617, 0.0
      %2670 = vadd.xlane.f32.xlu0 %v2669
      %v2671 = vpop.xlane.xlu0 %2670
      %v2672 = vsel %vm1520, %v2619, 0.0
      %2673 = vadd.xlane.f32.xlu0 %v2672
      %v2674 = vpop.xlane.xlu0 %2673
      %v2675 = vsel %vm1520, %v2621, 0.0
      %2676 = vadd.xlane.f32.xlu0 %v2675
      %v2677 = vpop.xlane.xlu0 %2676
      %v2678 = vsel %vm1520, %v2623, 0.0
      %2679 = vadd.xlane.f32.xlu0 %v2678
      %v2680 = vpop.xlane.xlu0 %2679
      %v2681 = vsel %vm1520, %v2625, 0.0
      %2682 = vadd.xlane.f32.xlu0 %v2681
      %v2683 = vpop.xlane.xlu0 %2682
      %v2684 = vsel %vm1520, %v2627, 0.0
      %2685 = vadd.xlane.f32.xlu0 %v2684
      %v2686 = vpop.xlane.xlu0 %2685
      %v2687 = vsel %vm1520, %v2629, 0.0
      %2688 = vadd.xlane.f32.xlu0 %v2687
      %v2689 = vpop.xlane.xlu0 %2688
      %v2690 = vsel %vm1520, %v2631, 0.0
      %2691 = vadd.xlane.f32.xlu0 %v2690
      %v2692 = vpop.xlane.xlu0 %2691
      %v2693 = vsel %vm1520, %v2633, 0.0
      %2694 = vadd.xlane.f32.xlu0 %v2693
      %v2695 = vpop.xlane.xlu0 %2694
      %v2696 = vsel %vm1520, %v2635, 0.0
      %2697 = vadd.xlane.f32.xlu0 %v2696
      %v2698 = vpop.xlane.xlu0 %2697
      %v2699 = vsel %vm1520, %v2637, 0.0
      %2700 = vadd.xlane.f32.xlu0 %v2699
      %v2701 = vpop.xlane.xlu0 %2700
      %v2702 = vmul.f32 %v2308, 3.5
      %v2703 = vmul.f32 %v2315, 3.5
      %v2704 = vmul.f32 %v2322, 3.5
      %v2705 = vmul.f32 %v2329, 3.5
      %v2706 = vmul.f32 %v2336, 3.5
      %v2707 = vmul.f32 %v2343, 3.5
      %v2708 = vmul.f32 %v2350, 3.5
      %v2709 = vmul.f32 %v2357, 3.5
      %v2710 = vmul.f32 %v2364, 3.5
      %v2711 = vmul.f32 %v2371, 3.5
      %v2712 = vmul.f32 %v2378, 3.5
      %v2713 = vmul.f32 %v2385, 3.5
      %v2714 = vmul.f32 %v2392, 3.5
      %v2715 = vmul.f32 %v2399, 3.5
      %v2716 = vmul.f32 %v2406, 3.5
      %v2717 = vmul.f32 %v2413, 3.5
      %v2718 = vadd.f32 %v2702, 1.0
      %v2719 = vadd.f32 %v2703, 1.0
      %v2720 = vadd.f32 %v2704, 1.0
      %v2721 = vadd.f32 %v2705, 1.0
      %v2722 = vadd.f32 %v2706, 1.0
      %v2723 = vadd.f32 %v2707, 1.0
      %v2724 = vadd.f32 %v2708, 1.0
      %v2725 = vadd.f32 %v2709, 1.0
      %v2726 = vadd.f32 %v2710, 1.0
      %v2727 = vadd.f32 %v2711, 1.0
      %v2728 = vadd.f32 %v2712, 1.0
      %v2729 = vadd.f32 %v2713, 1.0
      %v2730 = vadd.f32 %v2714, 1.0
      %v2731 = vadd.f32 %v2715, 1.0
      %v2732 = vadd.f32 %v2716, 1.0
      %v2733 = vadd.f32 %v2717, 1.0
      %v2734 = vrcp.pop %v2718
      %v2735 = vrcp.pop %v2719
      %v2736 = vrcp.pop %v2720
      %v2737 = vrcp.pop %v2721
      %v2738 = vrcp.pop %v2722
      %v2739 = vrcp.pop %v2723
      %v2740 = vrcp.pop %v2724
      %v2741 = vrcp.pop %v2725
      %v2742 = vrcp.pop %v2726
      %v2743 = vrcp.pop %v2727
      %v2744 = vrcp.pop %v2728
      %v2745 = vrcp.pop %v2729
      %v2746 = vrcp.pop %v2730
      %v2747 = vrcp.pop %v2731
      %v2748 = vrcp.pop %v2732
      %v2749 = vrcp.pop %v2733
      %v2766 = vlaneseq
      %v2767 = vand.u32 %v2766, 127
      %v2768 = vlaneseq
      %v2769 = vshrl.u32 %v2768, 7
      %v2770 = vsub.s32 %v2767, %v2769
      %v2771 = vrot.slane %v2734, %v2770
      %v2772 = vadd.s32 %v2767, 4294967288
      %v2773 = vlaneseq
      %v2774 = vshrl.u32 %v2773, 7
      %v2775 = vsub.s32 %v2772, %v2774
      %v2776 = vrot.slane %v2735, %v2775
      %vm2777 = vcmask 130112
      %v2778 = vsel %vm2777, %v2776, %v2771
      %v2779 = vadd.s32 %v2767, 4294967280
      %v2780 = vlaneseq
      %v2781 = vshrl.u32 %v2780, 7
      %v2782 = vsub.s32 %v2779, %v2781
      %v2783 = vrot.slane %v2736, %v2782
      %vm2784 = vcmask 195712
      %v2785 = vsel %vm2784, %v2783, %v2778
      %v2786 = vadd.s32 %v2767, 4294967272
      %v2787 = vlaneseq
      %v2788 = vshrl.u32 %v2787, 7
      %v2789 = vsub.s32 %v2786, %v2788
      %v2790 = vrot.slane %v2737, %v2789
      %vm2791 = vcmask 261312
      %v2792 = vsel %vm2791, %v2790, %v2785
      %v2793 = vadd.s32 %v2767, 4294967264
      %v2794 = vlaneseq
      %v2795 = vshrl.u32 %v2794, 7
      %v2796 = vsub.s32 %v2793, %v2795
      %v2797 = vrot.slane %v2738, %v2796
      %vm2798 = vcmask 326912
      %v2799 = vsel %vm2798, %v2797, %v2792
      %v2800 = vadd.s32 %v2767, 4294967256
      %v2801 = vlaneseq
      %v2802 = vshrl.u32 %v2801, 7
      %v2803 = vsub.s32 %v2800, %v2802
      %v2804 = vrot.slane %v2739, %v2803
      %vm2805 = vcmask 392512
      %v2806 = vsel %vm2805, %v2804, %v2799
      %v2807 = vadd.s32 %v2767, 4294967248
      %v2808 = vlaneseq
      %v2809 = vshrl.u32 %v2808, 7
      %v2810 = vsub.s32 %v2807, %v2809
      %v2811 = vrot.slane %v2740, %v2810
      %vm2812 = vcmask 458112
      %v2813 = vsel %vm2812, %v2811, %v2806
      %v2814 = vadd.s32 %v2767, 4294967240
      %v2815 = vlaneseq
      %v2816 = vshrl.u32 %v2815, 7
      %v2817 = vsub.s32 %v2814, %v2816
      %v2818 = vrot.slane %v2741, %v2817
      %vm2819 = vcmask 523712
      %v2820 = vsel %vm2819, %v2818, %v2813
      %v2821 = vadd.s32 %v2767, 4294967232
      %v2822 = vlaneseq
      %v2823 = vshrl.u32 %v2822, 7
      %v2824 = vsub.s32 %v2821, %v2823
      %v2825 = vrot.slane %v2742, %v2824
      %vm2826 = vcmask 589312
      %v2827 = vsel %vm2826, %v2825, %v2820
      %v2828 = vadd.s32 %v2767, 4294967224
      %v2829 = vlaneseq
      %v2830 = vshrl.u32 %v2829, 7
      %v2831 = vsub.s32 %v2828, %v2830
      %v2832 = vrot.slane %v2743, %v2831
      %vm2833 = vcmask 654912
      %v2834 = vsel %vm2833, %v2832, %v2827
      %v2835 = vadd.s32 %v2767, 4294967216
      %v2836 = vlaneseq
      %v2837 = vshrl.u32 %v2836, 7
      %v2838 = vsub.s32 %v2835, %v2837
      %v2839 = vrot.slane %v2744, %v2838
      %vm2840 = vcmask 720512
      %v2841 = vsel %vm2840, %v2839, %v2834
      %v2842 = vadd.s32 %v2767, 4294967208
      %v2843 = vlaneseq
      %v2844 = vshrl.u32 %v2843, 7
      %v2845 = vsub.s32 %v2842, %v2844
      %v2846 = vrot.slane %v2745, %v2845
      %vm2847 = vcmask 786112
      %v2848 = vsel %vm2847, %v2846, %v2841
      %v2849 = vadd.s32 %v2767, 4294967200
      %v2850 = vlaneseq
      %v2851 = vshrl.u32 %v2850, 7
      %v2852 = vsub.s32 %v2849, %v2851
      %v2853 = vrot.slane %v2746, %v2852
      %vm2854 = vcmask 851712
      %v2855 = vsel %vm2854, %v2853, %v2848
      %v2856 = vadd.s32 %v2767, 4294967192
      %v2857 = vlaneseq
      %v2858 = vshrl.u32 %v2857, 7
      %v2859 = vsub.s32 %v2856, %v2858
      %v2860 = vrot.slane %v2747, %v2859
      %vm2861 = vcmask 917312
      %v2862 = vsel %vm2861, %v2860, %v2855
      %v2863 = vadd.s32 %v2767, 4294967184
      %v2864 = vlaneseq
      %v2865 = vshrl.u32 %v2864, 7
      %v2866 = vsub.s32 %v2863, %v2865
      %v2867 = vrot.slane %v2748, %v2866
      %vm2868 = vcmask 982912
      %v2869 = vsel %vm2868, %v2867, %v2862
      %v2870 = vadd.s32 %v2767, 4294967176
      %v2871 = vlaneseq
      %v2872 = vshrl.u32 %v2871, 7
      %v2873 = vsub.s32 %v2870, %v2872
      %v2874 = vrot.slane %v2749, %v2873
      %vm2875 = vcmask 1048512
      %v2876 = vsel %vm2875, %v2874, %v2869
      %2878 = vst [vmem:[%s597] sm:$0x1] %v2876
      %v2895 = vlaneseq
      %v2896 = vshrl.u32 %v2895, 7
      %v2897 = vsub.s32 %v2767, %v2896
      %v2898 = vrot.slane %v2308, %v2897
      %v2899 = vlaneseq
      %v2900 = vshrl.u32 %v2899, 7
      %v2901 = vsub.s32 %v2772, %v2900
      %v2902 = vrot.slane %v2315, %v2901
      %v2903 = vsel %vm2777, %v2902, %v2898
      %v2904 = vlaneseq
      %v2905 = vshrl.u32 %v2904, 7
      %v2906 = vsub.s32 %v2779, %v2905
      %v2907 = vrot.slane %v2322, %v2906
      %v2908 = vsel %vm2784, %v2907, %v2903
      %v2909 = vlaneseq
      %v2910 = vshrl.u32 %v2909, 7
      %v2911 = vsub.s32 %v2786, %v2910
      %v2912 = vrot.slane %v2329, %v2911
      %v2913 = vsel %vm2791, %v2912, %v2908
      %v2914 = vlaneseq
      %v2915 = vshrl.u32 %v2914, 7
      %v2916 = vsub.s32 %v2793, %v2915
      %v2917 = vrot.slane %v2336, %v2916
      %v2918 = vsel %vm2798, %v2917, %v2913
      %v2919 = vlaneseq
      %v2920 = vshrl.u32 %v2919, 7
      %v2921 = vsub.s32 %v2800, %v2920
      %v2922 = vrot.slane %v2343, %v2921
      %v2923 = vsel %vm2805, %v2922, %v2918
      %v2924 = vlaneseq
      %v2925 = vshrl.u32 %v2924, 7
      %v2926 = vsub.s32 %v2807, %v2925
      %v2927 = vrot.slane %v2350, %v2926
      %v2928 = vsel %vm2812, %v2927, %v2923
      %v2929 = vlaneseq
      %v2930 = vshrl.u32 %v2929, 7
      %v2931 = vsub.s32 %v2814, %v2930
      %v2932 = vrot.slane %v2357, %v2931
      %v2933 = vsel %vm2819, %v2932, %v2928
      %v2934 = vlaneseq
      %v2935 = vshrl.u32 %v2934, 7
      %v2936 = vsub.s32 %v2821, %v2935
      %v2937 = vrot.slane %v2364, %v2936
      %v2938 = vsel %vm2826, %v2937, %v2933
      %v2939 = vlaneseq
      %v2940 = vshrl.u32 %v2939, 7
      %v2941 = vsub.s32 %v2828, %v2940
      %v2942 = vrot.slane %v2371, %v2941
      %v2943 = vsel %vm2833, %v2942, %v2938
      %v2944 = vlaneseq
      %v2945 = vshrl.u32 %v2944, 7
      %v2946 = vsub.s32 %v2835, %v2945
      %v2947 = vrot.slane %v2378, %v2946
      %v2948 = vsel %vm2840, %v2947, %v2943
      %v2949 = vlaneseq
      %v2950 = vshrl.u32 %v2949, 7
      %v2951 = vsub.s32 %v2842, %v2950
      %v2952 = vrot.slane %v2385, %v2951
      %v2953 = vsel %vm2847, %v2952, %v2948
      %v2954 = vlaneseq
      %v2955 = vshrl.u32 %v2954, 7
      %v2956 = vsub.s32 %v2849, %v2955
      %v2957 = vrot.slane %v2392, %v2956
      %v2958 = vsel %vm2854, %v2957, %v2953
      %v2959 = vlaneseq
      %v2960 = vshrl.u32 %v2959, 7
      %v2961 = vsub.s32 %v2856, %v2960
      %v2962 = vrot.slane %v2399, %v2961
      %v2963 = vsel %vm2861, %v2962, %v2958
      %v2964 = vlaneseq
      %v2965 = vshrl.u32 %v2964, 7
      %v2966 = vsub.s32 %v2863, %v2965
      %v2967 = vrot.slane %v2406, %v2966
      %v2968 = vsel %vm2868, %v2967, %v2963
      %v2969 = vlaneseq
      %v2970 = vshrl.u32 %v2969, 7
      %v2971 = vsub.s32 %v2870, %v2970
      %v2972 = vrot.slane %v2413, %v2971
      %v2973 = vsel %vm2875, %v2972, %v2968
      %2975 = vst [vmem:[%s597 + $0x1] sm:$0x1] %v2973
      %v2992 = vlaneseq
      %v2993 = vshrl.u32 %v2992, 7
      %v2994 = vsub.s32 %v2767, %v2993
      %v2995 = vrot.slane %v2656, %v2994
      %v2996 = vlaneseq
      %v2997 = vshrl.u32 %v2996, 7
      %v2998 = vsub.s32 %v2772, %v2997
      %v2999 = vrot.slane %v2659, %v2998
      %v3000 = vsel %vm2777, %v2999, %v2995
      %v3001 = vlaneseq
      %v3002 = vshrl.u32 %v3001, 7
      %v3003 = vsub.s32 %v2779, %v3002
      %v3004 = vrot.slane %v2662, %v3003
      %v3005 = vsel %vm2784, %v3004, %v3000
      %v3006 = vlaneseq
      %v3007 = vshrl.u32 %v3006, 7
      %v3008 = vsub.s32 %v2786, %v3007
      %v3009 = vrot.slane %v2665, %v3008
      %v3010 = vsel %vm2791, %v3009, %v3005
      %v3011 = vlaneseq
      %v3012 = vshrl.u32 %v3011, 7
      %v3013 = vsub.s32 %v2793, %v3012
      %v3014 = vrot.slane %v2668, %v3013
      %v3015 = vsel %vm2798, %v3014, %v3010
      %v3016 = vlaneseq
      %v3017 = vshrl.u32 %v3016, 7
      %v3018 = vsub.s32 %v2800, %v3017
      %v3019 = vrot.slane %v2671, %v3018
      %v3020 = vsel %vm2805, %v3019, %v3015
      %v3021 = vlaneseq
      %v3022 = vshrl.u32 %v3021, 7
      %v3023 = vsub.s32 %v2807, %v3022
      %v3024 = vrot.slane %v2674, %v3023
      %v3025 = vsel %vm2812, %v3024, %v3020
      %v3026 = vlaneseq
      %v3027 = vshrl.u32 %v3026, 7
      %v3028 = vsub.s32 %v2814, %v3027
      %v3029 = vrot.slane %v2677, %v3028
      %v3030 = vsel %vm2819, %v3029, %v3025
      %v3031 = vlaneseq
      %v3032 = vshrl.u32 %v3031, 7
      %v3033 = vsub.s32 %v2821, %v3032
      %v3034 = vrot.slane %v2680, %v3033
      %v3035 = vsel %vm2826, %v3034, %v3030
      %v3036 = vlaneseq
      %v3037 = vshrl.u32 %v3036, 7
      %v3038 = vsub.s32 %v2828, %v3037
      %v3039 = vrot.slane %v2683, %v3038
      %v3040 = vsel %vm2833, %v3039, %v3035
      %v3041 = vlaneseq
      %v3042 = vshrl.u32 %v3041, 7
      %v3043 = vsub.s32 %v2835, %v3042
      %v3044 = vrot.slane %v2686, %v3043
      %v3045 = vsel %vm2840, %v3044, %v3040
      %v3046 = vlaneseq
      %v3047 = vshrl.u32 %v3046, 7
      %v3048 = vsub.s32 %v2842, %v3047
      %v3049 = vrot.slane %v2689, %v3048
      %v3050 = vsel %vm2847, %v3049, %v3045
      %v3051 = vlaneseq
      %v3052 = vshrl.u32 %v3051, 7
      %v3053 = vsub.s32 %v2849, %v3052
      %v3054 = vrot.slane %v2692, %v3053
      %v3055 = vsel %vm2854, %v3054, %v3050
      %v3056 = vlaneseq
      %v3057 = vshrl.u32 %v3056, 7
      %v3058 = vsub.s32 %v2856, %v3057
      %v3059 = vrot.slane %v2695, %v3058
      %v3060 = vsel %vm2861, %v3059, %v3055
      %v3061 = vlaneseq
      %v3062 = vshrl.u32 %v3061, 7
      %v3063 = vsub.s32 %v2863, %v3062
      %v3064 = vrot.slane %v2698, %v3063
      %v3065 = vsel %vm2868, %v3064, %v3060
      %v3066 = vlaneseq
      %v3067 = vshrl.u32 %v3066, 7
      %v3068 = vsub.s32 %v2870, %v3067
      %v3069 = vrot.slane %v2701, %v3068
      %v3070 = vsel %vm2875, %v3069, %v3065
      %3072 = vst [vmem:[%s597 + $0x2] sm:$0x1] %v3070
      %p3073 = scmp.lt.s32.totalorder %s29, 3
      %s3074 = scalar_select %p3073, %s29, 3
      %s3075 = smul.addr %s3074, 4
      %s3076 = scalar_lea.vmem %s18, %s3075
      // Predicated region
      $region93: #{fwd.1} parent=91 // pred_check
        %p3077 = pneg %p435
      $region94: #{fwd.1} parent=91 // pred_check_branch
        %3079 = sbr.rel (%p3077) target = $region96
      $region95: #{fwd.1} parent=91 // pred_region
        _
      $region96: #{fwd.1} parent=91 // pred_fallthru
        _
    $region92: #{fwd.1} parent=5 // pred_fallthru
      _
    %p3080 = scmp.le.s32.totalorder 2, %s24
    // Predicated region
    $region97: #{fwd.1} parent=5 // pred_check
      %p3081 = pneg %p3080
    $region98: #{fwd.1} parent=5 // pred_check_branch
      %3083 = sbr.rel (%p3081) target = $region100
    $region99: #{fwd.1} parent=5 // pred_region
      %s3084 = ssub.s32 %s24, 2
      // Predicated region
      $region101: #{fwd.1} parent=99 // pred_check
        %p3085 = pneg %p441
      $region102: #{fwd.1} parent=99 // pred_check_branch
        %3087 = sbr.rel (%p3085) target = $region104
      $region103: #{fwd.1} parent=99 // pred_region
        %p3088 = scmp.lt.s32.totalorder %s30, 3
        %s3089 = scalar_select %p3088, %s30, 3
        %s3090 = smul.addr %s3089, 4
        %s3091 = scalar_lea.vmem %s18, %s3090
      $region104: #{fwd.1} parent=99 // pred_fallthru
        _
    $region100: #{fwd.1} parent=5 // pred_fallthru
      _
  $region6: #{fwd.1} parent=0 // loop_footer
    %s28 = sadd.s32 1, %s24
  $region7: #{fwd.1} parent=0 // loop_footer_branch
    %23 = sbr.rel target = $region3
  $region8: #{fwd.1} parent=0 // loop_exit
    _

</llo_original>
